<compile_context>
chip_gen: v6e
topology: v6e:2x2x1
jax: 0.10.0
libtpu: 0.0.40
codegen_flags: <defaults>
</compile_context>

<pallas_src>
import functools
import math

import jax
import jax.numpy as jnp
from jax.experimental import pallas as pl
from jax.experimental.pallas import tpu as pltpu

BN_EPS = 1e-5


# --------------------------------------------------------------------------
# Small helpers
# --------------------------------------------------------------------------
def _round_up(x, m):
    return ((x + m - 1) // m) * m


def _vmem_limit_bytes():
    # <= 75% of physical VMEM (v7x only has 64 MiB per TensorCore), capped at
    # 64 MiB on v5e/v6e.
    try:
        cap = int(pltpu.get_tpu_info().vmem_capacity_bytes)
    except Exception:
        cap = 64 * 1024 * 1024
    return min(64 * 1024 * 1024, cap * 3 // 4)


VMEM_LIMIT = _vmem_limit_bytes()


def _row_tiles(M, max_tile=512, mult=16):
    """Pick a row-tile (multiple of `mult`) and padded row count; prefer >=2 tiles."""
    Mp = _round_up(M, mult)
    tm = min(max_tile, Mp)
    if Mp > mult and Mp // tm < 2:
        tm = min(tm, _round_up((Mp + 1) // 2, mult))
    Mp = _round_up(Mp, tm)
    return tm, Mp, Mp // tm


def _pad_rows(a, Mp):
    M = a.shape[0]
    if Mp == M:
        return a
    return jnp.pad(a, ((0, Mp - M),) + ((0, 0),) * (a.ndim - 1))


# --------------------------------------------------------------------------
# Conv2d (bias=False) as per-tap MXU matmuls with f32 accumulation
# --------------------------------------------------------------------------
def _conv_tap_kernel(a_ref, w_ref, o_ref, acc_ref):
    t = pl.program_id(2)

    @pl.when(t == 0)
    def _():
        acc_ref[...] = jnp.zeros_like(acc_ref)

    acc_ref[...] += jnp.dot(a_ref[0], w_ref[0],
                            preferred_element_type=jnp.float32)

    @pl.when(t == pl.num_programs(2) - 1)
    def _():
        o_ref[...] = acc_ref[...]


def conv2d(x_nhwc, w_taps, *, stride, padding, ksize):
    """F.conv2d(bias=False). x: NHWC f32; w_taps: (KH*KW, Cin, Cout) bf16."""
    N, H, W, Cin = x_nhwc.shape
    KK, _, Cout = w_taps.shape
    OH = (H + 2 * padding - ksize) // stride + 1
    OW = (W + 2 * padding - ksize) // stride + 1
    xp = x_nhwc
    if padding:
        xp = jnp.pad(x_nhwc,
                     ((0, 0), (padding, padding), (padding, padding), (0, 0)))
    taps = []
    for kh in range(ksize):
        for kw in range(ksize):
            taps.append(xp[:, kh:kh + OH * stride:stride,
                           kw:kw + OW * stride:stride, :])
    M = N * OH * OW
    a = jnp.stack(taps, axis=0).reshape(KK, M, Cin).astype(jnp.bfloat16)

    tm, Mp, gm = _row_tiles(M, max_tile=512)
    if Mp != M:
        a = jnp.pad(a, ((0, 0), (0, Mp - M), (0, 0)))
    tn = Cout if Cout <= 256 else 256
    gn = Cout // tn

    out = pl.pallas_call(
        _conv_tap_kernel,
        out_shape=jax.ShapeDtypeStruct((Mp, Cout), jnp.float32),
        grid=(gm, gn, KK),
        in_specs=[pl.BlockSpec((1, tm, Cin), lambda i, j, t: (t, i, 0)),
                  pl.BlockSpec((1, Cin, tn), lambda i, j, t: (t, 0, j))],
        out_specs=pl.BlockSpec((tm, tn), lambda i, j, t: (i, j)),
        scratch_shapes=[pltpu.VMEM((tm, tn), jnp.float32)],
        compiler_params=pltpu.CompilerParams(
            dimension_semantics=("parallel", "parallel", "arbitrary"),
            vmem_limit_bytes=VMEM_LIMIT),
    )(a, w_taps)
    return out[:M].reshape(N, OH, OW, Cout)


# --------------------------------------------------------------------------
# BatchNorm: tiled stats reduction + fused tiled normalize(+residual)(+relu)
# --------------------------------------------------------------------------
def _bn_stats_kernel(x_ref, sum_ref, sq_ref):
    @pl.when(pl.program_id(0) == 0)
    def _():
        sum_ref[...] = jnp.zeros_like(sum_ref)
        sq_ref[...] = jnp.zeros_like(sq_ref)

    x = x_ref[...]
    sum_ref[...] += jnp.sum(x, axis=0, keepdims=True)
    sq_ref[...] += jnp.sum(x * x, axis=0, keepdims=True)


def pallas_bn_stats(x2d):
    """Per-channel sum and sum-of-squares over the rows of (M, C)."""
    M, C = x2d.shape
    tm, Mp, gm = _row_tiles(M, max_tile=1024)
    xp = _pad_rows(x2d, Mp)  # zero rows leave sum / sum-sq unchanged
    return pl.pallas_call(
        _bn_stats_kernel,
        out_shape=(jax.ShapeDtypeStruct((1, C), jnp.float32),
                   jax.ShapeDtypeStruct((1, C), jnp.float32)),
        grid=(gm,),
        in_specs=[pl.BlockSpec((tm, C), lambda i: (i, 0))],
        out_specs=(pl.BlockSpec((1, C), lambda i: (0, 0)),
                   pl.BlockSpec((1, C), lambda i: (0, 0))),
        compiler_params=pltpu.CompilerParams(
            dimension_semantics=("arbitrary",),
            vmem_limit_bytes=VMEM_LIMIT),
    )(xp)


def _normalize(x, s, q, g, b, m_count, eps):
    mean = s * (1.0 / m_count)
    # Reference training branch uses torch.var(..., unbiased=True).
    var = (q - m_count * mean * mean) * (1.0 / max(m_count - 1.0, 1.0))
    var = jnp.maximum(var, 0.0)
    return (x - mean) * jax.lax.rsqrt(var + eps) * g + b


def _bn_apply_kernel(*refs, m_count, eps, relu, res_mode):
    if res_mode == "bn":
        (x_ref, s_ref, q_ref, g_ref, b_ref,
         r_ref, rs_ref, rq_ref, rg_ref, rb_ref, o_ref) = refs
    elif res_mode == "raw":
        x_ref, s_ref, q_ref, g_ref, b_ref, r_ref, o_ref = refs
    else:
        x_ref, s_ref, q_ref, g_ref, b_ref, o_ref = refs

    y = _normalize(x_ref[...], s_ref[...], q_ref[...], g_ref[...], b_ref[...],
                   m_count, eps)
    if res_mode == "bn":
        y = y + _normalize(r_ref[...], rs_ref[...], rq_ref[...],
                           rg_ref[...], rb_ref[...], m_count, eps)
    elif res_mode == "raw":
        y = y + r_ref[...]
    if relu:
        y = jnp.maximum(y, 0.0)
    o_ref[...] = y


def pallas_bn_apply(x2d, stats, gamma, beta, *, relu,
                    res=None, res_stats=None, res_gamma=None, res_beta=None):
    """Normalize x (per-channel batch stats), optionally add residual
    (raw, or itself batch-normalized), optionally ReLU — one fused kernel."""
    M, C = x2d.shape
    tm, Mp, gm = _row_tiles(M, max_tile=1024)
    row_spec = pl.BlockSpec((tm, C), lambda i: (i, 0))
    vec_spec = pl.BlockSpec((1, C), lambda i: (0, 0))

    s, q = stats
    args = [_pad_rows(x2d, Mp), s, q, gamma.reshape(1, C), beta.reshape(1, C)]
    in_specs = [row_spec, vec_spec, vec_spec, vec_spec, vec_spec]
    res_mode = None
    if res is not None:
        args.append(_pad_rows(res, Mp))
        in_specs.append(row_spec)
        if res_stats is not None:
            rs, rq = res_stats
            args += [rs, rq, res_gamma.reshape(1, C), res_beta.reshape(1, C)]
            in_specs += [vec_spec, vec_spec, vec_spec, vec_spec]
            res_mode = "bn"
        else:
            res_mode = "raw"

    kern = functools.partial(_bn_apply_kernel, m_count=float(M), eps=BN_EPS,
                             relu=relu, res_mode=res_mode)
    y = pl.pallas_call(
        kern,
        out_shape=jax.ShapeDtypeStruct((Mp, C), jnp.float32),
        grid=(gm,),
        in_specs=in_specs,
        out_specs=row_spec,
        compiler_params=pltpu.CompilerParams(
            dimension_semantics=("parallel",),
            vmem_limit_bytes=VMEM_LIMIT),
    )(*args)
    return y[:M]


# --------------------------------------------------------------------------
# ResidualBlock / BlockGroup forward
# --------------------------------------------------------------------------
def residual_block(x_nhwc, bp, stride):
    l1 = conv2d(x_nhwc, bp["conv1_w"], stride=stride, padding=1, ksize=3)
    N, OH, OW, Cout = l1.shape
    M = N * OH * OW
    l1 = l1.reshape(M, Cout)
    a1 = pallas_bn_apply(l1, pallas_bn_stats(l1), bp["bn1_w"], bp["bn1_b"],
                         relu=True).reshape(N, OH, OW, Cout)
    l2 = conv2d(a1, bp["conv2_w"], stride=1, padding=1, ksize=3).reshape(M, Cout)
    s2 = pallas_bn_stats(l2)
    if "convr_w" in bp:
        r = conv2d(x_nhwc, bp["convr_w"], stride=stride, padding=0,
                   ksize=1).reshape(M, Cout)
        out = pallas_bn_apply(l2, s2, bp["bn2_w"], bp["bn2_b"], relu=True,
                              res=r, res_stats=pallas_bn_stats(r),
                              res_gamma=bp["bnr_w"], res_beta=bp["bnr_b"])
    else:
        out = pallas_bn_apply(l2, s2, bp["bn2_w"], bp["bn2_b"], relu=True,
                              res=x_nhwc.reshape(M, Cout))
    return out.reshape(N, OH, OW, Cout)


def block_group_forward(x_nchw, blocks, first_stride):
    """BlockGroup.forward: (N, in_feats, H, W) -> (N, out_feats, H/s, W/s)."""
    x = jnp.transpose(x_nchw.astype(jnp.float32), (0, 2, 3, 1))  # NCHW -> NHWC
    for bidx, bp in enumerate(blocks):
        stride = first_stride if bidx == 0 else 1
        x = residual_block(x, bp, stride)
    return jnp.transpose(x, (0, 3, 1, 2))  # back to NCHW


# --------------------------------------------------------------------------
# Deterministic parameter init (shapes / init match the PyTorch module;
# conv weights pre-transformed once to (KH*KW, Cin, Cout) bf16 for the MXU)
# --------------------------------------------------------------------------
def init_block_group_params(key, n_blocks, in_feats, out_feats, first_stride):
    counter = [0]

    def nk():
        counter[0] += 1
        return jax.random.fold_in(key, counter[0])

    def conv_taps(out_c, in_c, k):
        bound = math.sqrt(1.0 / (in_c * k * k))
        w = jax.random.uniform(nk(), (out_c, in_c, k, k), jnp.float32,
                               minval=-bound, maxval=bound)
        return (jnp.transpose(w, (2, 3, 1, 0))
                .reshape(k * k, in_c, out_c).astype(jnp.bfloat16))

    blocks = []
    for bidx in range(n_blocks):
        bi = in_feats if bidx == 0 else out_feats
        stride = first_stride if bidx == 0 else 1
        bp = {
            "conv1_w": conv_taps(out_feats, bi, 3),
            "bn1_w": jnp.ones((out_feats,), jnp.float32),
            "bn1_b": jnp.zeros((out_feats,), jnp.float32),
            "conv2_w": conv_taps(out_feats, out_feats, 3),
            "bn2_w": jnp.ones((out_feats,), jnp.float32),
            "bn2_b": jnp.zeros((out_feats,), jnp.float32),
        }
        if not (stride == 1 and bi == out_feats):
            bp["convr_w"] = conv_taps(out_feats, bi, 1)
            bp["bnr_w"] = jnp.ones((out_feats,), jnp.float32)
            bp["bnr_b"] = jnp.zeros((out_feats,), jnp.float32)
        blocks.append(bp)
    return blocks


if __name__ == "__main__":
    key = jax.random.PRNGKey(0)
    # Small BlockGroup: 2 blocks, 64 -> 128 channels, first_stride=2,
    # input (batch=2, channels=64, 16, 16).
    n_blocks, in_feats, out_feats, first_stride = 2, 64, 128, 2
    blocks = init_block_group_params(jax.random.fold_in(key, 1),
                                     n_blocks, in_feats, out_feats, first_stride)
    x = jax.random.normal(jax.random.fold_in(key, 2), (2, in_feats, 16, 16),
                          dtype=jnp.float32)
    fwd = jax.jit(functools.partial(block_group_forward,
                                    first_stride=first_stride))
    out = jax.block_until_ready(fwd(x, blocks))
    assert out.shape == (2, out_feats, 16 // first_stride, 16 // first_stride), out.shape
    assert bool(jnp.all(jnp.isfinite(out)))
    print("KERNEL_OK")
</pallas_src>

<mosaic_0001>
module attributes {stable_mosaic.version = 11 : i64} {
  func.func @_bn_apply_kernel(%arg0: i32, %arg1: memref<64x128xf32, #tpu.memory_space<vmem>>, %arg2: memref<1x128xf32, #tpu.memory_space<vmem>>, %arg3: memref<1x128xf32, #tpu.memory_space<vmem>>, %arg4: memref<1x128xf32, #tpu.memory_space<vmem>>, %arg5: memref<1x128xf32, #tpu.memory_space<vmem>>, %arg6: memref<64x128xf32, #tpu.memory_space<vmem>>) attributes {dimension_semantics = [#tpu.dimension_semantics<parallel>], iteration_bounds = array<i64: 2>, scalar_prefetch = 0 : i64, scratch_operands = 0 : i64, tpu.core_type = #tpu.core_type<tc>, window_params = [{transform_indices = @transform_0, window_bounds = array<i64: 64, 128>}, {pipeline_mode = #tpu.pipeline_mode<synchronous>, transform_indices = @transform_1, window_bounds = array<i64: 1, 128>}, {pipeline_mode = #tpu.pipeline_mode<synchronous>, transform_indices = @transform_2, window_bounds = array<i64: 1, 128>}, {pipeline_mode = #tpu.pipeline_mode<synchronous>, transform_indices = @transform_3, window_bounds = array<i64: 1, 128>}, {pipeline_mode = #tpu.pipeline_mode<synchronous>, transform_indices = @transform_4, window_bounds = array<i64: 1, 128>}, {transform_indices = @transform_5, window_bounds = array<i64: 64, 128>}]} {
    %c0 = arith.constant 0 : index
    %c0_0 = arith.constant 0 : index
    %0 = vector.load %arg1[%c0, %c0_0] : memref<64x128xf32, #tpu.memory_space<vmem>>, vector<64x128xf32>
    %c0_1 = arith.constant 0 : index
    %c0_2 = arith.constant 0 : index
    %1 = vector.load %arg2[%c0_1, %c0_2] : memref<1x128xf32, #tpu.memory_space<vmem>>, vector<1x128xf32>
    %c0_3 = arith.constant 0 : index
    %c0_4 = arith.constant 0 : index
    %2 = vector.load %arg3[%c0_3, %c0_4] : memref<1x128xf32, #tpu.memory_space<vmem>>, vector<1x128xf32>
    %c0_5 = arith.constant 0 : index
    %c0_6 = arith.constant 0 : index
    %3 = vector.load %arg4[%c0_5, %c0_6] : memref<1x128xf32, #tpu.memory_space<vmem>>, vector<1x128xf32>
    %c0_7 = arith.constant 0 : index
    %c0_8 = arith.constant 0 : index
    %4 = vector.load %arg5[%c0_7, %c0_8] : memref<1x128xf32, #tpu.memory_space<vmem>>, vector<1x128xf32>
    %cst = arith.constant 7.812500e-03 : f32
    %5 = vector.broadcast %cst : f32 to vector<1x128xf32>
    %6 = arith.mulf %1, %5 : vector<1x128xf32>
    %cst_9 = arith.constant 1.280000e+02 : f32
    %7 = vector.broadcast %cst_9 : f32 to vector<1x128xf32>
    %8 = arith.mulf %7, %6 : vector<1x128xf32>
    %9 = arith.mulf %8, %6 : vector<1x128xf32>
    %10 = arith.subf %2, %9 : vector<1x128xf32>
    %cst_10 = arith.constant 0.00787401571 : f32
    %11 = vector.broadcast %cst_10 : f32 to vector<1x128xf32>
    %12 = arith.mulf %10, %11 : vector<1x128xf32>
    %cst_11 = arith.constant 0.000000e+00 : f32
    %13 = vector.broadcast %cst_11 : f32 to vector<1x128xf32>
    %14 = arith.maximumf %12, %13 : vector<1x128xf32>
    %15 = vector.broadcast %6 : vector<1x128xf32> to vector<64x128xf32>
    %16 = arith.subf %0, %15 : vector<64x128xf32>
    %cst_12 = arith.constant 9.99999974E-6 : f32
    %17 = vector.broadcast %cst_12 : f32 to vector<1x128xf32>
    %18 = arith.addf %14, %17 : vector<1x128xf32>
    %19 = math.rsqrt %18 : vector<1x128xf32>
    %20 = vector.broadcast %19 : vector<1x128xf32> to vector<64x128xf32>
    %21 = arith.mulf %16, %20 : vector<64x128xf32>
    %22 = vector.broadcast %3 : vector<1x128xf32> to vector<64x128xf32>
    %23 = arith.mulf %21, %22 : vector<64x128xf32>
    %24 = vector.broadcast %4 : vector<1x128xf32> to vector<64x128xf32>
    %25 = arith.addf %23, %24 : vector<64x128xf32>
    %cst_13 = arith.constant 0.000000e+00 : f32
    %26 = vector.broadcast %cst_13 : f32 to vector<64x128xf32>
    %27 = arith.maximumf %25, %26 : vector<64x128xf32>
    %c0_14 = arith.constant 0 : index
    %c0_15 = arith.constant 0 : index
    %28 = vector.load %arg6[%c0_14, %c0_15] : memref<64x128xf32, #tpu.memory_space<vmem>>, vector<64x128xf32>
    tpu.vector_store %arg6[%c0_14, %c0_15], %27 {strides = array<i32>} : memref<64x128xf32, #tpu.memory_space<vmem>>, vector<64x128xf32>,
    return
  }
  func.func @transform_0(%arg0: i32) -> (i32, i32) {
    %c0_i32 = arith.constant 0 : i32
    %c0_i32_0 = arith.constant 0 : i32
    return %arg0, %c0_i32 : i32, i32
  }
  func.func @transform_1(%arg0: i32) -> (i32, i32) {
    %c0_i32 = arith.constant 0 : i32
    %c0_i32_0 = arith.constant 0 : i32
    %c0_i32_1 = arith.constant 0 : i32
    return %c0_i32, %c0_i32_0 : i32, i32
  }
  func.func @transform_2(%arg0: i32) -> (i32, i32) {
    %c0_i32 = arith.constant 0 : i32
    %c0_i32_0 = arith.constant 0 : i32
    %c0_i32_1 = arith.constant 0 : i32
    return %c0_i32, %c0_i32_0 : i32, i32
  }
  func.func @transform_3(%arg0: i32) -> (i32, i32) {
    %c0_i32 = arith.constant 0 : i32
    %c0_i32_0 = arith.constant 0 : i32
    %c0_i32_1 = arith.constant 0 : i32
    return %c0_i32, %c0_i32_0 : i32, i32
  }
  func.func @transform_4(%arg0: i32) -> (i32, i32) {
    %c0_i32 = arith.constant 0 : i32
    %c0_i32_0 = arith.constant 0 : i32
    %c0_i32_1 = arith.constant 0 : i32
    return %c0_i32, %c0_i32_0 : i32, i32
  }
  func.func @transform_5(%arg0: i32) -> (i32, i32) {
    %c0_i32 = arith.constant 0 : i32
    %c0_i32_0 = arith.constant 0 : i32
    return %arg0, %c0_i32 : i32, i32
  }
}

module attributes {stable_mosaic.version = 11 : i64} {
  func.func @_conv_tap_kernel(%arg0: i32, %arg1: i32, %arg2: i32, %arg3: memref<1x64x64xbf16, #tpu.memory_space<vmem>>, %arg4: memref<1x64x128xbf16, #tpu.memory_space<vmem>>, %arg5: memref<64x128xf32, #tpu.memory_space<vmem>>, %arg6: memref<64x128xf32, #tpu.memory_space<vmem>>) attributes {dimension_semantics = [#tpu.dimension_semantics<parallel>, #tpu.dimension_semantics<parallel>, #tpu.dimension_semantics<arbitrary>], iteration_bounds = array<i64: 2, 1, 9>, scalar_prefetch = 0 : i64, scratch_operands = 1 : i64, tpu.core_type = #tpu.core_type<tc>, window_params = [{transform_indices = @transform_0, window_bounds = array<i64: 1, 64, 64>}, {transform_indices = @transform_1, window_bounds = array<i64: 1, 64, 128>}, {transform_indices = @transform_2, window_bounds = array<i64: 64, 128>}]} {
    %c0_i32 = arith.constant 0 : i32
    %0 = arith.cmpi eq, %arg2, %c0_i32 : i32
    %1 = arith.extui %0 : i1 to i32
    %c0_i32_0 = arith.constant 0 : i32
    %2 = arith.cmpi ne, %1, %c0_i32_0 : i32
    scf.if %2 {
      %cst_11 = arith.constant 0.000000e+00 : f32
      %14 = vector.broadcast %cst_11 : f32 to vector<64x128xf32>
      %c0_12 = arith.constant 0 : index
      %c0_13 = arith.constant 0 : index
      %15 = vector.load %arg6[%c0_12, %c0_13] : memref<64x128xf32, #tpu.memory_space<vmem>>, vector<64x128xf32>
      tpu.vector_store %arg6[%c0_12, %c0_13], %14 {strides = array<i32>} : memref<64x128xf32, #tpu.memory_space<vmem>>, vector<64x128xf32>,
    } else {
    }
    %c0 = arith.constant 0 : index
    %c0_1 = arith.constant 0 : index
    %3 = vector.load %arg6[%c0, %c0_1] : memref<64x128xf32, #tpu.memory_space<vmem>>, vector<64x128xf32>
    %c0_2 = arith.constant 0 : index
    %c0_3 = arith.constant 0 : index
    %c0_4 = arith.constant 0 : index
    %4 = vector.load %arg3[%c0_2, %c0_3, %c0_4] : memref<1x64x64xbf16, #tpu.memory_space<vmem>>, vector<1x64x64xbf16>
    %5 = vector.shape_cast %4 : vector<1x64x64xbf16> to vector<64x64xbf16>
    %c0_5 = arith.constant 0 : index
    %c0_6 = arith.constant 0 : index
    %c0_7 = arith.constant 0 : index
    %6 = vector.load %arg4[%c0_5, %c0_6, %c0_7] : memref<1x64x128xbf16, #tpu.memory_space<vmem>>, vector<1x64x128xbf16>
    %7 = vector.shape_cast %6 : vector<1x64x128xbf16> to vector<64x128xbf16>
    %cst = arith.constant dense<0.000000e+00> : vector<64x128xf32>
    %8 = tpu.matmul %5, %7, %cst {dimension_numbers = #tpu.dot_dimension_numbers<[1], [0], [0], [1], [0, 0, 1, 1], [], []>} : vector<64x64xbf16>, vector<64x128xbf16>, vector<64x128xf32> -> vector<64x128xf32>
    %9 = arith.addf %3, %8 : vector<64x128xf32>
    %c0_8 = arith.constant 0 : index
    %c0_9 = arith.constant 0 : index
    %10 = vector.load %arg6[%c0_8, %c0_9] : memref<64x128xf32, #tpu.memory_space<vmem>>, vector<64x128xf32>
    tpu.vector_store %arg6[%c0_8, %c0_9], %9 {strides = array<i32>} : memref<64x128xf32, #tpu.memory_space<vmem>>, vector<64x128xf32>,
    %c8_i32 = arith.constant 8 : i32
    %11 = arith.cmpi eq, %arg2, %c8_i32 : i32
    %12 = arith.extui %11 : i1 to i32
    %c0_i32_10 = arith.constant 0 : i32
    %13 = arith.cmpi ne, %12, %c0_i32_10 : i32
    scf.if %13 {
      %c0_11 = arith.constant 0 : index
      %c0_12 = arith.constant 0 : index
      %14 = vector.load %arg6[%c0_11, %c0_12] : memref<64x128xf32, #tpu.memory_space<vmem>>, vector<64x128xf32>
      %c0_13 = arith.constant 0 : index
      %c0_14 = arith.constant 0 : index
      %15 = vector.load %arg5[%c0_13, %c0_14] : memref<64x128xf32, #tpu.memory_space<vmem>>, vector<64x128xf32>
      tpu.vector_store %arg5[%c0_13, %c0_14], %14 {strides = array<i32>} : memref<64x128xf32, #tpu.memory_space<vmem>>, vector<64x128xf32>,
    } else {
    }
    return
  }
  func.func @transform_0(%arg0: i32, %arg1: i32, %arg2: i32) -> (i32, i32, i32) {
    %c0_i32 = arith.constant 0 : i32
    %c0_i32_0 = arith.constant 0 : i32
    return %arg2, %arg0, %c0_i32 : i32, i32, i32
  }
  func.func @transform_1(%arg0: i32, %arg1: i32, %arg2: i32) -> (i32, i32, i32) {
    %c0_i32 = arith.constant 0 : i32
    %c0_i32_0 = arith.constant 0 : i32
    return %arg2, %c0_i32, %arg1 : i32, i32, i32
  }
  func.func @transform_2(%arg0: i32, %arg1: i32, %arg2: i32) -> (i32, i32) {
    %c0_i32 = arith.constant 0 : i32
    return %arg0, %arg1 : i32, i32
  }
}

module attributes {stable_mosaic.version = 11 : i64} {
  func.func @_bn_stats_kernel(%arg0: i32, %arg1: memref<64x128xf32, #tpu.memory_space<vmem>>, %arg2: memref<1x128xf32, #tpu.memory_space<vmem>>, %arg3: memref<1x128xf32, #tpu.memory_space<vmem>>) attributes {dimension_semantics = [#tpu.dimension_semantics<arbitrary>], iteration_bounds = array<i64: 2>, scalar_prefetch = 0 : i64, scratch_operands = 0 : i64, tpu.core_type = #tpu.core_type<tc>, window_params = [{transform_indices = @transform_0, window_bounds = array<i64: 64, 128>}, {pipeline_mode = #tpu.pipeline_mode<synchronous>, transform_indices = @transform_1, window_bounds = array<i64: 1, 128>}, {pipeline_mode = #tpu.pipeline_mode<synchronous>, transform_indices = @transform_2, window_bounds = array<i64: 1, 128>}]} {
    %c0_i32 = arith.constant 0 : i32
    %0 = arith.cmpi eq, %arg0, %c0_i32 : i32
    %1 = arith.extui %0 : i1 to i32
    %c0_i32_0 = arith.constant 0 : i32
    %2 = arith.cmpi ne, %1, %c0_i32_0 : i32
    scf.if %2 {
      %cst_11 = arith.constant 0.000000e+00 : f32
      %15 = vector.broadcast %cst_11 : f32 to vector<1x128xf32>
      %c0_12 = arith.constant 0 : index
      %c0_13 = arith.constant 0 : index
      %16 = vector.load %arg2[%c0_12, %c0_13] : memref<1x128xf32, #tpu.memory_space<vmem>>, vector<1x128xf32>
      tpu.vector_store %arg2[%c0_12, %c0_13], %15 {strides = array<i32>} : memref<1x128xf32, #tpu.memory_space<vmem>>, vector<1x128xf32>,
      %cst_14 = arith.constant 0.000000e+00 : f32
      %17 = vector.broadcast %cst_14 : f32 to vector<1x128xf32>
      %c0_15 = arith.constant 0 : index
      %c0_16 = arith.constant 0 : index
      %18 = vector.load %arg3[%c0_15, %c0_16] : memref<1x128xf32, #tpu.memory_space<vmem>>, vector<1x128xf32>
      tpu.vector_store %arg3[%c0_15, %c0_16], %17 {strides = array<i32>} : memref<1x128xf32, #tpu.memory_space<vmem>>, vector<1x128xf32>,
    } else {
    }
    %c0 = arith.constant 0 : index
    %c0_1 = arith.constant 0 : index
    %3 = vector.load %arg1[%c0, %c0_1] : memref<64x128xf32, #tpu.memory_space<vmem>>, vector<64x128xf32>
    %c0_2 = arith.constant 0 : index
    %c0_3 = arith.constant 0 : index
    %4 = vector.load %arg2[%c0_2, %c0_3] : memref<1x128xf32, #tpu.memory_space<vmem>>, vector<1x128xf32>
    %cst = arith.constant dense<0.000000e+00> : vector<128xf32>
    %5 = vector.multi_reduction <add>, %3, %cst [0] : vector<64x128xf32> to vector<128xf32>
    %6 = vector.shape_cast %5 : vector<128xf32> to vector<1x128xf32>
    %7 = arith.addf %4, %6 : vector<1x128xf32>
    %c0_4 = arith.constant 0 : index
    %c0_5 = arith.constant 0 : index
    %8 = vector.load %arg2[%c0_4, %c0_5] : memref<1x128xf32, #tpu.memory_space<vmem>>, vector<1x128xf32>
    tpu.vector_store %arg2[%c0_4, %c0_5], %7 {strides = array<i32>} : memref<1x128xf32, #tpu.memory_space<vmem>>, vector<1x128xf32>,
    %c0_6 = arith.constant 0 : index
    %c0_7 = arith.constant 0 : index
    %9 = vector.load %arg3[%c0_6, %c0_7] : memref<1x128xf32, #tpu.memory_space<vmem>>, vector<1x128xf32>
    %10 = arith.mulf %3, %3 : vector<64x128xf32>
    %cst_8 = arith.constant dense<0.000000e+00> : vector<128xf32>
    %11 = vector.multi_reduction <add>, %10, %cst_8 [0] : vector<64x128xf32> to vector<128xf32>
    %12 = vector.shape_cast %11 : vector<128xf32> to vector<1x128xf32>
    %13 = arith.addf %9, %12 : vector<1x128xf32>
    %c0_9 = arith.constant 0 : index
    %c0_10 = arith.constant 0 : index
    %14 = vector.load %arg3[%c0_9, %c0_10] : memref<1x128xf32, #tpu.memory_space<vmem>>, vector<1x128xf32>
    tpu.vector_store %arg3[%c0_9, %c0_10], %13 {strides = array<i32>} : memref<1x128xf32, #tpu.memory_space<vmem>>, vector<1x128xf32>,
    return
  }
  func.func @transform_0(%arg0: i32) -> (i32, i32) {
    %c0_i32 = arith.constant 0 : i32
    %c0_i32_0 = arith.constant 0 : i32
    return %arg0, %c0_i32 : i32, i32
  }
  func.func @transform_1(%arg0: i32) -> (i32, i32) {
    %c0_i32 = arith.constant 0 : i32
    %c0_i32_0 = arith.constant 0 : i32
    %c0_i32_1 = arith.constant 0 : i32
    return %c0_i32, %c0_i32_0 : i32, i32
  }
  func.func @transform_2(%arg0: i32) -> (i32, i32) {
    %c0_i32 = arith.constant 0 : i32
    %c0_i32_0 = arith.constant 0 : i32
    %c0_i32_1 = arith.constant 0 : i32
    return %c0_i32, %c0_i32_0 : i32, i32
  }
}

module attributes {stable_mosaic.version = 11 : i64} {
  func.func @_conv_tap_kernel(%arg0: i32, %arg1: i32, %arg2: i32, %arg3: memref<1x64x64xbf16, #tpu.memory_space<vmem>>, %arg4: memref<1x64x128xbf16, #tpu.memory_space<vmem>>, %arg5: memref<64x128xf32, #tpu.memory_space<vmem>>, %arg6: memref<64x128xf32, #tpu.memory_space<vmem>>) attributes {dimension_semantics = [#tpu.dimension_semantics<parallel>, #tpu.dimension_semantics<parallel>, #tpu.dimension_semantics<arbitrary>], iteration_bounds = array<i64: 2, 1, 1>, scalar_prefetch = 0 : i64, scratch_operands = 1 : i64, tpu.core_type = #tpu.core_type<tc>, window_params = [{transform_indices = @transform_0, window_bounds = array<i64: 1, 64, 64>}, {transform_indices = @transform_1, window_bounds = array<i64: 1, 64, 128>}, {transform_indices = @transform_2, window_bounds = array<i64: 64, 128>}]} {
    %c0_i32 = arith.constant 0 : i32
    %0 = arith.cmpi eq, %arg2, %c0_i32 : i32
    %1 = arith.extui %0 : i1 to i32
    %c0_i32_0 = arith.constant 0 : i32
    %2 = arith.cmpi ne, %1, %c0_i32_0 : i32
    scf.if %2 {
      %cst_12 = arith.constant 0.000000e+00 : f32
      %14 = vector.broadcast %cst_12 : f32 to vector<64x128xf32>
      %c0_13 = arith.constant 0 : index
      %c0_14 = arith.constant 0 : index
      %15 = vector.load %arg6[%c0_13, %c0_14] : memref<64x128xf32, #tpu.memory_space<vmem>>, vector<64x128xf32>
      tpu.vector_store %arg6[%c0_13, %c0_14], %14 {strides = array<i32>} : memref<64x128xf32, #tpu.memory_space<vmem>>, vector<64x128xf32>,
    } else {
    }
    %c0 = arith.constant 0 : index
    %c0_1 = arith.constant 0 : index
    %3 = vector.load %arg6[%c0, %c0_1] : memref<64x128xf32, #tpu.memory_space<vmem>>, vector<64x128xf32>
    %c0_2 = arith.constant 0 : index
    %c0_3 = arith.constant 0 : index
    %c0_4 = arith.constant 0 : index
    %4 = vector.load %arg3[%c0_2, %c0_3, %c0_4] : memref<1x64x64xbf16, #tpu.memory_space<vmem>>, vector<1x64x64xbf16>
    %5 = vector.shape_cast %4 : vector<1x64x64xbf16> to vector<64x64xbf16>
    %c0_5 = arith.constant 0 : index
    %c0_6 = arith.constant 0 : index
    %c0_7 = arith.constant 0 : index
    %6 = vector.load %arg4[%c0_5, %c0_6, %c0_7] : memref<1x64x128xbf16, #tpu.memory_space<vmem>>, vector<1x64x128xbf16>
    %7 = vector.shape_cast %6 : vector<1x64x128xbf16> to vector<64x128xbf16>
    %cst = arith.constant dense<0.000000e+00> : vector<64x128xf32>
    %8 = tpu.matmul %5, %7, %cst {dimension_numbers = #tpu.dot_dimension_numbers<[1], [0], [0], [1], [0, 0, 1, 1], [], []>} : vector<64x64xbf16>, vector<64x128xbf16>, vector<64x128xf32> -> vector<64x128xf32>
    %9 = arith.addf %3, %8 : vector<64x128xf32>
    %c0_8 = arith.constant 0 : index
    %c0_9 = arith.constant 0 : index
    %10 = vector.load %arg6[%c0_8, %c0_9] : memref<64x128xf32, #tpu.memory_space<vmem>>, vector<64x128xf32>
    tpu.vector_store %arg6[%c0_8, %c0_9], %9 {strides = array<i32>} : memref<64x128xf32, #tpu.memory_space<vmem>>, vector<64x128xf32>,
    %c0_i32_10 = arith.constant 0 : i32
    %11 = arith.cmpi eq, %arg2, %c0_i32_10 : i32
    %12 = arith.extui %11 : i1 to i32
    %c0_i32_11 = arith.constant 0 : i32
    %13 = arith.cmpi ne, %12, %c0_i32_11 : i32
    scf.if %13 {
      %c0_12 = arith.constant 0 : index
      %c0_13 = arith.constant 0 : index
      %14 = vector.load %arg6[%c0_12, %c0_13] : memref<64x128xf32, #tpu.memory_space<vmem>>, vector<64x128xf32>
      %c0_14 = arith.constant 0 : index
      %c0_15 = arith.constant 0 : index
      %15 = vector.load %arg5[%c0_14, %c0_15] : memref<64x128xf32, #tpu.memory_space<vmem>>, vector<64x128xf32>
      tpu.vector_store %arg5[%c0_14, %c0_15], %14 {strides = array<i32>} : memref<64x128xf32, #tpu.memory_space<vmem>>, vector<64x128xf32>,
    } else {
    }
    return
  }
  func.func @transform_0(%arg0: i32, %arg1: i32, %arg2: i32) -> (i32, i32, i32) {
    %c0_i32 = arith.constant 0 : i32
    %c0_i32_0 = arith.constant 0 : i32
    return %arg2, %arg0, %c0_i32 : i32, i32, i32
  }
  func.func @transform_1(%arg0: i32, %arg1: i32, %arg2: i32) -> (i32, i32, i32) {
    %c0_i32 = arith.constant 0 : i32
    %c0_i32_0 = arith.constant 0 : i32
    return %arg2, %c0_i32, %arg1 : i32, i32, i32
  }
  func.func @transform_2(%arg0: i32, %arg1: i32, %arg2: i32) -> (i32, i32) {
    %c0_i32 = arith.constant 0 : i32
    return %arg0, %arg1 : i32, i32
  }
}

module attributes {stable_mosaic.version = 11 : i64} {
  func.func @_bn_apply_kernel(%arg0: i32, %arg1: memref<64x128xf32, #tpu.memory_space<vmem>>, %arg2: memref<1x128xf32, #tpu.memory_space<vmem>>, %arg3: memref<1x128xf32, #tpu.memory_space<vmem>>, %arg4: memref<1x128xf32, #tpu.memory_space<vmem>>, %arg5: memref<1x128xf32, #tpu.memory_space<vmem>>, %arg6: memref<64x128xf32, #tpu.memory_space<vmem>>, %arg7: memref<64x128xf32, #tpu.memory_space<vmem>>) attributes {dimension_semantics = [#tpu.dimension_semantics<parallel>], iteration_bounds = array<i64: 2>, scalar_prefetch = 0 : i64, scratch_operands = 0 : i64, tpu.core_type = #tpu.core_type<tc>, window_params = [{transform_indices = @transform_0, window_bounds = array<i64: 64, 128>}, {pipeline_mode = #tpu.pipeline_mode<synchronous>, transform_indices = @transform_1, window_bounds = array<i64: 1, 128>}, {pipeline_mode = #tpu.pipeline_mode<synchronous>, transform_indices = @transform_2, window_bounds = array<i64: 1, 128>}, {pipeline_mode = #tpu.pipeline_mode<synchronous>, transform_indices = @transform_3, window_bounds = array<i64: 1, 128>}, {pipeline_mode = #tpu.pipeline_mode<synchronous>, transform_indices = @transform_4, window_bounds = array<i64: 1, 128>}, {transform_indices = @transform_5, window_bounds = array<i64: 64, 128>}, {transform_indices = @transform_6, window_bounds = array<i64: 64, 128>}]} {
    %c0 = arith.constant 0 : index
    %c0_0 = arith.constant 0 : index
    %0 = vector.load %arg1[%c0, %c0_0] : memref<64x128xf32, #tpu.memory_space<vmem>>, vector<64x128xf32>
    %c0_1 = arith.constant 0 : index
    %c0_2 = arith.constant 0 : index
    %1 = vector.load %arg2[%c0_1, %c0_2] : memref<1x128xf32, #tpu.memory_space<vmem>>, vector<1x128xf32>
    %c0_3 = arith.constant 0 : index
    %c0_4 = arith.constant 0 : index
    %2 = vector.load %arg3[%c0_3, %c0_4] : memref<1x128xf32, #tpu.memory_space<vmem>>, vector<1x128xf32>
    %c0_5 = arith.constant 0 : index
    %c0_6 = arith.constant 0 : index
    %3 = vector.load %arg4[%c0_5, %c0_6] : memref<1x128xf32, #tpu.memory_space<vmem>>, vector<1x128xf32>
    %c0_7 = arith.constant 0 : index
    %c0_8 = arith.constant 0 : index
    %4 = vector.load %arg5[%c0_7, %c0_8] : memref<1x128xf32, #tpu.memory_space<vmem>>, vector<1x128xf32>
    %cst = arith.constant 7.812500e-03 : f32
    %5 = vector.broadcast %cst : f32 to vector<1x128xf32>
    %6 = arith.mulf %1, %5 : vector<1x128xf32>
    %cst_9 = arith.constant 1.280000e+02 : f32
    %7 = vector.broadcast %cst_9 : f32 to vector<1x128xf32>
    %8 = arith.mulf %7, %6 : vector<1x128xf32>
    %9 = arith.mulf %8, %6 : vector<1x128xf32>
    %10 = arith.subf %2, %9 : vector<1x128xf32>
    %cst_10 = arith.constant 0.00787401571 : f32
    %11 = vector.broadcast %cst_10 : f32 to vector<1x128xf32>
    %12 = arith.mulf %10, %11 : vector<1x128xf32>
    %cst_11 = arith.constant 0.000000e+00 : f32
    %13 = vector.broadcast %cst_11 : f32 to vector<1x128xf32>
    %14 = arith.maximumf %12, %13 : vector<1x128xf32>
    %15 = vector.broadcast %6 : vector<1x128xf32> to vector<64x128xf32>
    %16 = arith.subf %0, %15 : vector<64x128xf32>
    %cst_12 = arith.constant 9.99999974E-6 : f32
    %17 = vector.broadcast %cst_12 : f32 to vector<1x128xf32>
    %18 = arith.addf %14, %17 : vector<1x128xf32>
    %19 = math.rsqrt %18 : vector<1x128xf32>
    %20 = vector.broadcast %19 : vector<1x128xf32> to vector<64x128xf32>
    %21 = arith.mulf %16, %20 : vector<64x128xf32>
    %22 = vector.broadcast %3 : vector<1x128xf32> to vector<64x128xf32>
    %23 = arith.mulf %21, %22 : vector<64x128xf32>
    %24 = vector.broadcast %4 : vector<1x128xf32> to vector<64x128xf32>
    %25 = arith.addf %23, %24 : vector<64x128xf32>
    %c0_13 = arith.constant 0 : index
    %c0_14 = arith.constant 0 : index
    %26 = vector.load %arg6[%c0_13, %c0_14] : memref<64x128xf32, #tpu.memory_space<vmem>>, vector<64x128xf32>
    %27 = arith.addf %25, %26 : vector<64x128xf32>
    %cst_15 = arith.constant 0.000000e+00 : f32
    %28 = vector.broadcast %cst_15 : f32 to vector<64x128xf32>
    %29 = arith.maximumf %27, %28 : vector<64x128xf32>
    %c0_16 = arith.constant 0 : index
    %c0_17 = arith.constant 0 : index
    %30 = vector.load %arg7[%c0_16, %c0_17] : memref<64x128xf32, #tpu.memory_space<vmem>>, vector<64x128xf32>
    tpu.vector_store %arg7[%c0_16, %c0_17], %29 {strides = array<i32>} : memref<64x128xf32, #tpu.memory_space<vmem>>, vector<64x128xf32>,
    return
  }
  func.func @transform_0(%arg0: i32) -> (i32, i32) {
    %c0_i32 = arith.constant 0 : i32
    %c0_i32_0 = arith.constant 0 : i32
    return %arg0, %c0_i32 : i32, i32
  }
  func.func @transform_1(%arg0: i32) -> (i32, i32) {
    %c0_i32 = arith.constant 0 : i32
    %c0_i32_0 = arith.constant 0 : i32
    %c0_i32_1 = arith.constant 0 : i32
    return %c0_i32, %c0_i32_0 : i32, i32
  }
  func.func @transform_2(%arg0: i32) -> (i32, i32) {
    %c0_i32 = arith.constant 0 : i32
    %c0_i32_0 = arith.constant 0 : i32
    %c0_i32_1 = arith.constant 0 : i32
    return %c0_i32, %c0_i32_0 : i32, i32
  }
  func.func @transform_3(%arg0: i32) -> (i32, i32) {
    %c0_i32 = arith.constant 0 : i32
    %c0_i32_0 = arith.constant 0 : i32
    %c0_i32_1 = arith.constant 0 : i32
    return %c0_i32, %c0_i32_0 : i32, i32
  }
  func.func @transform_4(%arg0: i32) -> (i32, i32) {
    %c0_i32 = arith.constant 0 : i32
    %c0_i32_0 = arith.constant 0 : i32
    %c0_i32_1 = arith.constant 0 : i32
    return %c0_i32, %c0_i32_0 : i32, i32
  }
  func.func @transform_5(%arg0: i32) -> (i32, i32) {
    %c0_i32 = arith.constant 0 : i32
    %c0_i32_0 = arith.constant 0 : i32
    return %arg0, %c0_i32 : i32, i32
  }
  func.func @transform_6(%arg0: i32) -> (i32, i32) {
    %c0_i32 = arith.constant 0 : i32
    %c0_i32_0 = arith.constant 0 : i32
    return %arg0, %c0_i32 : i32, i32
  }
}

module attributes {stable_mosaic.version = 11 : i64} {
  func.func @_bn_apply_kernel(%arg0: i32, %arg1: memref<64x128xf32, #tpu.memory_space<vmem>>, %arg2: memref<1x128xf32, #tpu.memory_space<vmem>>, %arg3: memref<1x128xf32, #tpu.memory_space<vmem>>, %arg4: memref<1x128xf32, #tpu.memory_space<vmem>>, %arg5: memref<1x128xf32, #tpu.memory_space<vmem>>, %arg6: memref<64x128xf32, #tpu.memory_space<vmem>>, %arg7: memref<1x128xf32, #tpu.memory_space<vmem>>, %arg8: memref<1x128xf32, #tpu.memory_space<vmem>>, %arg9: memref<1x128xf32, #tpu.memory_space<vmem>>, %arg10: memref<1x128xf32, #tpu.memory_space<vmem>>, %arg11: memref<64x128xf32, #tpu.memory_space<vmem>>) attributes {dimension_semantics = [#tpu.dimension_semantics<parallel>], iteration_bounds = array<i64: 2>, scalar_prefetch = 0 : i64, scratch_operands = 0 : i64, tpu.core_type = #tpu.core_type<tc>, window_params = [{transform_indices = @transform_0, window_bounds = array<i64: 64, 128>}, {pipeline_mode = #tpu.pipeline_mode<synchronous>, transform_indices = @transform_1, window_bounds = array<i64: 1, 128>}, {pipeline_mode = #tpu.pipeline_mode<synchronous>, transform_indices = @transform_2, window_bounds = array<i64: 1, 128>}, {pipeline_mode = #tpu.pipeline_mode<synchronous>, transform_indices = @transform_3, window_bounds = array<i64: 1, 128>}, {pipeline_mode = #tpu.pipeline_mode<synchronous>, transform_indices = @transform_4, window_bounds = array<i64: 1, 128>}, {transform_indices = @transform_5, window_bounds = array<i64: 64, 128>}, {pipeline_mode = #tpu.pipeline_mode<synchronous>, transform_indices = @transform_6, window_bounds = array<i64: 1, 128>}, {pipeline_mode = #tpu.pipeline_mode<synchronous>, transform_indices = @transform_7, window_bounds = array<i64: 1, 128>}, {pipeline_mode = #tpu.pipeline_mode<synchronous>, transform_indices = @transform_8, window_bounds = array<i64: 1, 128>}, {pipeline_mode = #tpu.pipeline_mode<synchronous>, transform_indices = @transform_9, window_bounds = array<i64: 1, 128>}, {transform_indices = @transform_10, window_bounds = array<i64: 64, 128>}]} {
    %c0 = arith.constant 0 : index
    %c0_0 = arith.constant 0 : index
    %0 = vector.load %arg1[%c0, %c0_0] : memref<64x128xf32, #tpu.memory_space<vmem>>, vector<64x128xf32>
    %c0_1 = arith.constant 0 : index
    %c0_2 = arith.constant 0 : index
    %1 = vector.load %arg2[%c0_1, %c0_2] : memref<1x128xf32, #tpu.memory_space<vmem>>, vector<1x128xf32>
    %c0_3 = arith.constant 0 : index
    %c0_4 = arith.constant 0 : index
    %2 = vector.load %arg3[%c0_3, %c0_4] : memref<1x128xf32, #tpu.memory_space<vmem>>, vector<1x128xf32>
    %c0_5 = arith.constant 0 : index
    %c0_6 = arith.constant 0 : index
    %3 = vector.load %arg4[%c0_5, %c0_6] : memref<1x128xf32, #tpu.memory_space<vmem>>, vector<1x128xf32>
    %c0_7 = arith.constant 0 : index
    %c0_8 = arith.constant 0 : index
    %4 = vector.load %arg5[%c0_7, %c0_8] : memref<1x128xf32, #tpu.memory_space<vmem>>, vector<1x128xf32>
    %cst = arith.constant 7.812500e-03 : f32
    %5 = vector.broadcast %cst : f32 to vector<1x128xf32>
    %6 = arith.mulf %1, %5 : vector<1x128xf32>
    %cst_9 = arith.constant 1.280000e+02 : f32
    %7 = vector.broadcast %cst_9 : f32 to vector<1x128xf32>
    %8 = arith.mulf %7, %6 : vector<1x128xf32>
    %9 = arith.mulf %8, %6 : vector<1x128xf32>
    %10 = arith.subf %2, %9 : vector<1x128xf32>
    %cst_10 = arith.constant 0.00787401571 : f32
    %11 = vector.broadcast %cst_10 : f32 to vector<1x128xf32>
    %12 = arith.mulf %10, %11 : vector<1x128xf32>
    %cst_11 = arith.constant 0.000000e+00 : f32
    %13 = vector.broadcast %cst_11 : f32 to vector<1x128xf32>
    %14 = arith.maximumf %12, %13 : vector<1x128xf32>
    %15 = vector.broadcast %6 : vector<1x128xf32> to vector<64x128xf32>
    %16 = arith.subf %0, %15 : vector<64x128xf32>
    %cst_12 = arith.constant 9.99999974E-6 : f32
    %17 = vector.broadcast %cst_12 : f32 to vector<1x128xf32>
    %18 = arith.addf %14, %17 : vector<1x128xf32>
    %19 = math.rsqrt %18 : vector<1x128xf32>
    %20 = vector.broadcast %19 : vector<1x128xf32> to vector<64x128xf32>
    %21 = arith.mulf %16, %20 : vector<64x128xf32>
    %22 = vector.broadcast %3 : vector<1x128xf32> to vector<64x128xf32>
    %23 = arith.mulf %21, %22 : vector<64x128xf32>
    %24 = vector.broadcast %4 : vector<1x128xf32> to vector<64x128xf32>
    %25 = arith.addf %23, %24 : vector<64x128xf32>
    %c0_13 = arith.constant 0 : index
    %c0_14 = arith.constant 0 : index
    %26 = vector.load %arg6[%c0_13, %c0_14] : memref<64x128xf32, #tpu.memory_space<vmem>>, vector<64x128xf32>
    %c0_15 = arith.constant 0 : index
    %c0_16 = arith.constant 0 : index
    %27 = vector.load %arg7[%c0_15, %c0_16] : memref<1x128xf32, #tpu.memory_space<vmem>>, vector<1x128xf32>
    %c0_17 = arith.constant 0 : index
    %c0_18 = arith.constant 0 : index
    %28 = vector.load %arg8[%c0_17, %c0_18] : memref<1x128xf32, #tpu.memory_space<vmem>>, vector<1x128xf32>
    %c0_19 = arith.constant 0 : index
    %c0_20 = arith.constant 0 : index
    %29 = vector.load %arg9[%c0_19, %c0_20] : memref<1x128xf32, #tpu.memory_space<vmem>>, vector<1x128xf32>
    %c0_21 = arith.constant 0 : index
    %c0_22 = arith.constant 0 : index
    %30 = vector.load %arg10[%c0_21, %c0_22] : memref<1x128xf32, #tpu.memory_space<vmem>>, vector<1x128xf32>
    %cst_23 = arith.constant 7.812500e-03 : f32
    %31 = vector.broadcast %cst_23 : f32 to vector<1x128xf32>
    %32 = arith.mulf %27, %31 : vector<1x128xf32>
    %cst_24 = arith.constant 1.280000e+02 : f32
    %33 = vector.broadcast %cst_24 : f32 to vector<1x128xf32>
    %34 = arith.mulf %33, %32 : vector<1x128xf32>
    %35 = arith.mulf %34, %32 : vector<1x128xf32>
    %36 = arith.subf %28, %35 : vector<1x128xf32>
    %cst_25 = arith.constant 0.00787401571 : f32
    %37 = vector.broadcast %cst_25 : f32 to vector<1x128xf32>
    %38 = arith.mulf %36, %37 : vector<1x128xf32>
    %cst_26 = arith.constant 0.000000e+00 : f32
    %39 = vector.broadcast %cst_26 : f32 to vector<1x128xf32>
    %40 = arith.maximumf %38, %39 : vector<1x128xf32>
    %41 = vector.broadcast %32 : vector<1x128xf32> to vector<64x128xf32>
    %42 = arith.subf %26, %41 : vector<64x128xf32>
    %cst_27 = arith.constant 9.99999974E-6 : f32
    %43 = vector.broadcast %cst_27 : f32 to vector<1x128xf32>
    %44 = arith.addf %40, %43 : vector<1x128xf32>
    %45 = math.rsqrt %44 : vector<1x128xf32>
    %46 = vector.broadcast %45 : vector<1x128xf32> to vector<64x128xf32>
    %47 = arith.mulf %42, %46 : vector<64x128xf32>
    %48 = vector.broadcast %29 : vector<1x128xf32> to vector<64x128xf32>
    %49 = arith.mulf %47, %48 : vector<64x128xf32>
    %50 = vector.broadcast %30 : vector<1x128xf32> to vector<64x128xf32>
    %51 = arith.addf %49, %50 : vector<64x128xf32>
    %52 = arith.addf %25, %51 : vector<64x128xf32>
    %cst_28 = arith.constant 0.000000e+00 : f32
    %53 = vector.broadcast %cst_28 : f32 to vector<64x128xf32>
    %54 = arith.maximumf %52, %53 : vector<64x128xf32>
    %c0_29 = arith.constant 0 : index
    %c0_30 = arith.constant 0 : index
    %55 = vector.load %arg11[%c0_29, %c0_30] : memref<64x128xf32, #tpu.memory_space<vmem>>, vector<64x128xf32>
    tpu.vector_store %arg11[%c0_29, %c0_30], %54 {strides = array<i32>} : memref<64x128xf32, #tpu.memory_space<vmem>>, vector<64x128xf32>,
    return
  }
  func.func @transform_0(%arg0: i32) -> (i32, i32) {
    %c0_i32 = arith.constant 0 : i32
    %c0_i32_0 = arith.constant 0 : i32
    return %arg0, %c0_i32 : i32, i32
  }
  func.func @transform_1(%arg0: i32) -> (i32, i32) {
    %c0_i32 = arith.constant 0 : i32
    %c0_i32_0 = arith.constant 0 : i32
    %c0_i32_1 = arith.constant 0 : i32
    return %c0_i32, %c0_i32_0 : i32, i32
  }
  func.func @transform_2(%arg0: i32) -> (i32, i32) {
    %c0_i32 = arith.constant 0 : i32
    %c0_i32_0 = arith.constant 0 : i32
    %c0_i32_1 = arith.constant 0 : i32
    return %c0_i32, %c0_i32_0 : i32, i32
  }
  func.func @transform_3(%arg0: i32) -> (i32, i32) {
    %c0_i32 = arith.constant 0 : i32
    %c0_i32_0 = arith.constant 0 : i32
    %c0_i32_1 = arith.constant 0 : i32
    return %c0_i32, %c0_i32_0 : i32, i32
  }
  func.func @transform_4(%arg0: i32) -> (i32, i32) {
    %c0_i32 = arith.constant 0 : i32
    %c0_i32_0 = arith.constant 0 : i32
    %c0_i32_1 = arith.constant 0 : i32
    return %c0_i32, %c0_i32_0 : i32, i32
  }
  func.func @transform_5(%arg0: i32) -> (i32, i32) {
    %c0_i32 = arith.constant 0 : i32
    %c0_i32_0 = arith.constant 0 : i32
    return %arg0, %c0_i32 : i32, i32
  }
  func.func @transform_6(%arg0: i32) -> (i32, i32) {
    %c0_i32 = arith.constant 0 : i32
    %c0_i32_0 = arith.constant 0 : i32
    %c0_i32_1 = arith.constant 0 : i32
    return %c0_i32, %c0_i32_0 : i32, i32
  }
  func.func @transform_7(%arg0: i32) -> (i32, i32) {
    %c0_i32 = arith.constant 0 : i32
    %c0_i32_0 = arith.constant 0 : i32
    %c0_i32_1 = arith.constant 0 : i32
    return %c0_i32, %c0_i32_0 : i32, i32
  }
  func.func @transform_8(%arg0: i32) -> (i32, i32) {
    %c0_i32 = arith.constant 0 : i32
    %c0_i32_0 = arith.constant 0 : i32
    %c0_i32_1 = arith.constant 0 : i32
    return %c0_i32, %c0_i32_0 : i32, i32
  }
  func.func @transform_9(%arg0: i32) -> (i32, i32) {
    %c0_i32 = arith.constant 0 : i32
    %c0_i32_0 = arith.constant 0 : i32
    %c0_i32_1 = arith.constant 0 : i32
    return %c0_i32, %c0_i32_0 : i32, i32
  }
  func.func @transform_10(%arg0: i32) -> (i32, i32) {
    %c0_i32 = arith.constant 0 : i32
    %c0_i32_0 = arith.constant 0 : i32
    return %arg0, %c0_i32 : i32, i32
  }
}

module attributes {stable_mosaic.version = 11 : i64} {
  func.func @_conv_tap_kernel(%arg0: i32, %arg1: i32, %arg2: i32, %arg3: memref<1x64x128xbf16, #tpu.memory_space<vmem>>, %arg4: memref<1x128x128xbf16, #tpu.memory_space<vmem>>, %arg5: memref<64x128xf32, #tpu.memory_space<vmem>>, %arg6: memref<64x128xf32, #tpu.memory_space<vmem>>) attributes {dimension_semantics = [#tpu.dimension_semantics<parallel>, #tpu.dimension_semantics<parallel>, #tpu.dimension_semantics<arbitrary>], iteration_bounds = array<i64: 2, 1, 9>, scalar_prefetch = 0 : i64, scratch_operands = 1 : i64, tpu.core_type = #tpu.core_type<tc>, window_params = [{transform_indices = @transform_0, window_bounds = array<i64: 1, 64, 128>}, {transform_indices = @transform_1, window_bounds = array<i64: 1, 128, 128>}, {transform_indices = @transform_2, window_bounds = array<i64: 64, 128>}]} {
    %c0_i32 = arith.constant 0 : i32
    %0 = arith.cmpi eq, %arg2, %c0_i32 : i32
    %1 = arith.extui %0 : i1 to i32
    %c0_i32_0 = arith.constant 0 : i32
    %2 = arith.cmpi ne, %1, %c0_i32_0 : i32
    scf.if %2 {
      %cst_11 = arith.constant 0.000000e+00 : f32
      %14 = vector.broadcast %cst_11 : f32 to vector<64x128xf32>
      %c0_12 = arith.constant 0 : index
      %c0_13 = arith.constant 0 : index
      %15 = vector.load %arg6[%c0_12, %c0_13] : memref<64x128xf32, #tpu.memory_space<vmem>>, vector<64x128xf32>
      tpu.vector_store %arg6[%c0_12, %c0_13], %14 {strides = array<i32>} : memref<64x128xf32, #tpu.memory_space<vmem>>, vector<64x128xf32>,
    } else {
    }
    %c0 = arith.constant 0 : index
    %c0_1 = arith.constant 0 : index
    %3 = vector.load %arg6[%c0, %c0_1] : memref<64x128xf32, #tpu.memory_space<vmem>>, vector<64x128xf32>
    %c0_2 = arith.constant 0 : index
    %c0_3 = arith.constant 0 : index
    %c0_4 = arith.constant 0 : index
    %4 = vector.load %arg3[%c0_2, %c0_3, %c0_4] : memref<1x64x128xbf16, #tpu.memory_space<vmem>>, vector<1x64x128xbf16>
    %5 = vector.shape_cast %4 : vector<1x64x128xbf16> to vector<64x128xbf16>
    %c0_5 = arith.constant 0 : index
    %c0_6 = arith.constant 0 : index
    %c0_7 = arith.constant 0 : index
    %6 = vector.load %arg4[%c0_5, %c0_6, %c0_7] : memref<1x128x128xbf16, #tpu.memory_space<vmem>>, vector<1x128x128xbf16>
    %7 = vector.shape_cast %6 : vector<1x128x128xbf16> to vector<128x128xbf16>
    %cst = arith.constant dense<0.000000e+00> : vector<64x128xf32>
    %8 = tpu.matmul %5, %7, %cst {dimension_numbers = #tpu.dot_dimension_numbers<[1], [0], [0], [1], [0, 0, 1, 1], [], []>} : vector<64x128xbf16>, vector<128x128xbf16>, vector<64x128xf32> -> vector<64x128xf32>
    %9 = arith.addf %3, %8 : vector<64x128xf32>
    %c0_8 = arith.constant 0 : index
    %c0_9 = arith.constant 0 : index
    %10 = vector.load %arg6[%c0_8, %c0_9] : memref<64x128xf32, #tpu.memory_space<vmem>>, vector<64x128xf32>
    tpu.vector_store %arg6[%c0_8, %c0_9], %9 {strides = array<i32>} : memref<64x128xf32, #tpu.memory_space<vmem>>, vector<64x128xf32>,
    %c8_i32 = arith.constant 8 : i32
    %11 = arith.cmpi eq, %arg2, %c8_i32 : i32
    %12 = arith.extui %11 : i1 to i32
    %c0_i32_10 = arith.constant 0 : i32
    %13 = arith.cmpi ne, %12, %c0_i32_10 : i32
    scf.if %13 {
      %c0_11 = arith.constant 0 : index
      %c0_12 = arith.constant 0 : index
      %14 = vector.load %arg6[%c0_11, %c0_12] : memref<64x128xf32, #tpu.memory_space<vmem>>, vector<64x128xf32>
      %c0_13 = arith.constant 0 : index
      %c0_14 = arith.constant 0 : index
      %15 = vector.load %arg5[%c0_13, %c0_14] : memref<64x128xf32, #tpu.memory_space<vmem>>, vector<64x128xf32>
      tpu.vector_store %arg5[%c0_13, %c0_14], %14 {strides = array<i32>} : memref<64x128xf32, #tpu.memory_space<vmem>>, vector<64x128xf32>,
    } else {
    }
    return
  }
  func.func @transform_0(%arg0: i32, %arg1: i32, %arg2: i32) -> (i32, i32, i32) {
    %c0_i32 = arith.constant 0 : i32
    %c0_i32_0 = arith.constant 0 : i32
    return %arg2, %arg0, %c0_i32 : i32, i32, i32
  }
  func.func @transform_1(%arg0: i32, %arg1: i32, %arg2: i32) -> (i32, i32, i32) {
    %c0_i32 = arith.constant 0 : i32
    %c0_i32_0 = arith.constant 0 : i32
    return %arg2, %c0_i32, %arg1 : i32, i32, i32
  }
  func.func @transform_2(%arg0: i32, %arg1: i32, %arg2: i32) -> (i32, i32) {
    %c0_i32 = arith.constant 0 : i32
    return %arg0, %arg1 : i32, i32
  }
}

</mosaic_0001>

<llo_original>
// kernel: block_group_forward.15
$region0: #{block_group_forward.15}
  #allocation0 [shape = 'u32[]', space=smem, size = 0x4, offset = 0x4, fixed_abs, tag = 'smem constant byte address 0x4 - core index']
  #allocation1 [shape = 'u32[144,128]{1,0:T(1,128)}', space=vmem, size = 0x12000, scoped, tag = 'internal scratch']
  %s0 = inlined_call_operand.vmem [shape: f32[128,128], index: 0, kind: input, shape index: {}]
  %s1 = inlined_call_operand.vmem [shape: f32[1,128], index: 1, kind: output, shape index: {0}]
  %s2 = inlined_call_operand.vmem [shape: f32[1,128], index: 2, kind: output, shape index: {1}]
  %3 = xla_tuple %s1, %s2
  %s4 = sld [smem:[#allocation0]]
  $region49: #{block_group_forward.15} parent=0
    _
  %s6 = ssub.s32 1, %s4
  %s7 = scalar_select 0, %s6, %s4
  loop: start=0, step=1, limit=4
  $region2: #{block_group_forward.15} parent=0 // loop_pre_header
    _
  $region3: #{block_group_forward.15} parent=0 // loop_header
    %s9 = sphi 0, %s13
    %p10 = scmp.ge.s32.totalorder %s9, 4
    %s19 = sphi 0, %s21
    %s22 = sphi 0, %s19
    %s23 = sphi 0, %s22
    %s39 = sphi 0, %s23
    %s43 = sphi 0, %s43
    %s45 = sphi 0, %s43
    %s46 = sphi 0, %s45
    %s60 = sphi 0, %s46
    %s64 = sphi 0, %s64
    %s66 = sphi 0, %s64
    %s67 = sphi 0, %s66
    %s81 = sphi 0, %s67
  $region4: #{block_group_forward.15} parent=0 // loop_header_branch
    %12 = sbr.rel (%p10) target = $region8
  $region5: #{block_group_forward.15} parent=0 // loop_body
    %s14 = ssub.s32 %s9, 1
    %s15 = ssub.s32 %s9, 2
    %s16 = sadd.s32 %s9, 1
    %s17 = ssub.s32 %s9, %s16
    %p18 = scmp.eq.s32.totalorder %s17, 0
    %s20 = sadd.s32 %s19, 1
    %s21 = scalar_select %p18, %s19, %s20
    %p24 = pneg %p18
    %p25 = scmp.eq.s32.totalorder %s9, 1
    %p26 = por %p24, %p25
    %p27 = scmp.ne.s32.totalorder %s19, %s22
    %p28 = scmp.eq.s32.totalorder %s9, 0
    %p29 = por %p27, %p28
    %p30 = scmp.ne.s32.totalorder %s19, %s22
    %p31 = scmp.eq.s32.totalorder %s14, 1
    %p32 = por %p30, %p31
    %p33 = scmp.ne.s32.totalorder %s22, %s23
    %p34 = scmp.eq.s32.totalorder %s14, 0
    %p35 = por %p33, %p34
    %p36 = scmp.ne.s32.totalorder %s22, %s23
    %p37 = scmp.eq.s32.totalorder %s15, 1
    %p38 = por %p36, %p37
    %p40 = scmp.ne.s32.totalorder %s23, %s39
    %p41 = scmp.eq.s32.totalorder %s15, 0
    %p42 = por %p40, %p41
    %s44 = sadd.s32 %s43, 1
    %p47 = scmp.eq.s32.totalorder %s9, 1
    %p48 = scmp.ne.s32.totalorder %s43, %s45
    %p49 = scmp.eq.s32.totalorder %s9, 0
    %p50 = por %p48, %p49
    %p51 = scmp.ne.s32.totalorder %s43, %s45
    %p52 = scmp.eq.s32.totalorder %s14, 1
    %p53 = por %p51, %p52
    %p54 = scmp.ne.s32.totalorder %s45, %s46
    %p55 = scmp.eq.s32.totalorder %s14, 0
    %p56 = por %p54, %p55
    %p57 = scmp.ne.s32.totalorder %s45, %s46
    %p58 = scmp.eq.s32.totalorder %s15, 1
    %p59 = por %p57, %p58
    %p61 = scmp.ne.s32.totalorder %s46, %s60
    %p62 = scmp.eq.s32.totalorder %s15, 0
    %p63 = por %p61, %p62
    %s65 = sadd.s32 %s64, 1
    %p68 = scmp.eq.s32.totalorder %s9, 1
    %p69 = scmp.ne.s32.totalorder %s64, %s66
    %p70 = scmp.eq.s32.totalorder %s9, 0
    %p71 = por %p69, %p70
    %p72 = scmp.ne.s32.totalorder %s64, %s66
    %p73 = scmp.eq.s32.totalorder %s14, 1
    %p74 = por %p72, %p73
    %p75 = scmp.ne.s32.totalorder %s66, %s67
    %p76 = scmp.eq.s32.totalorder %s14, 0
    %p77 = por %p75, %p76
    %p78 = scmp.ne.s32.totalorder %s66, %s67
    %p79 = scmp.eq.s32.totalorder %s15, 1
    %p80 = por %p78, %p79
    %p82 = scmp.ne.s32.totalorder %s67, %s81
    %p83 = scmp.eq.s32.totalorder %s15, 0
    %p84 = por %p82, %p83
    %p85 = scmp.le.s32.totalorder 1, %s9
    %p86 = scmp.lt.s32.totalorder %s9, 3
    %p87 = pnand %p85, %p86
    %p88 = pneg %p87
    // Predicated region
    $region9: #{block_group_forward.15} parent=5 // pred_check
      _
    $region10: #{block_group_forward.15} parent=5 // pred_check_branch
      %90 = sbr.rel (%p87) target = $region12
    $region11: #{block_group_forward.15} parent=5 // pred_region
      %s91 = ssub.s32 %s9, 1
    $region12: #{block_group_forward.15} parent=5 // pred_fallthru
      _
    %p92 = scmp.lt.s32.totalorder %s9, 2
    // Predicated region
    $region13: #{block_group_forward.15} parent=5 // pred_check
      %p93 = pneg %p92
    $region14: #{block_group_forward.15} parent=5 // pred_check_branch
      %95 = sbr.rel (%p93) target = $region16
    $region15: #{block_group_forward.15} parent=5 // pred_region
      // Predicated region
      $region17: #{block_group_forward.15} parent=15 // pred_check
        %p96 = pneg %p29
      $region18: #{block_group_forward.15} parent=15 // pred_check_branch
        %98 = sbr.rel (%p96) target = $region20
      $region19: #{block_group_forward.15} parent=15 // pred_region
        %s99 = smul.u32 8, %s9
        %p100 = scmp.lt.s32.totalorder %s99, 15
        %s101 = scalar_select %p100, %s99, 15
        %s102 = smul.addr %s101, 8
        %s103 = scalar_lea.vmem %s0, %s102
        %s104 = smul.u32 8, %s9
      $region20: #{block_group_forward.15} parent=15 // pred_fallthru
        _
    $region16: #{block_group_forward.15} parent=5 // pred_fallthru
      _
    %p105 = scmp.le.s32.totalorder 1, %s9
    %p106 = scmp.lt.s32.totalorder %s9, 3
    %p107 = pnand %p105, %p106
    %p108 = pneg %p107
    // Predicated region
    $region21: #{block_group_forward.15} parent=5 // pred_check
      _
    $region22: #{block_group_forward.15} parent=5 // pred_check_branch
      %110 = sbr.rel (%p107) target = $region24
    $region23: #{block_group_forward.15} parent=5 // pred_region
      %s111 = ssub.s32 %s9, 1
      %s112 = smul.u32 8, %s14
      %p113 = scmp.lt.s32.totalorder %s112, 15
      %s114 = scalar_select %p113, %s112, 15
      %s115 = smul.addr %s114, 8
      %s116 = scalar_lea.vmem %s0, %s115
      %p117 = pneg %p35
      %p118 = pneg %p32
      %p119 = pneg %p56
      %p120 = pneg %p53
      %p121 = pneg %p77
      %p122 = pneg %p74
      %s123 = smul.u32 8, %s14
      %p124 = scmp.lt.s32.totalorder %s123, 15
      %s125 = scalar_select %p124, %s123, 15
      %s126 = smul.addr %s125, 8
      %s127 = scalar_lea.vmem %s0, %s126
      %s128 = smul.u32 8, %s14
      %p129 = scmp.eq.s32.totalorder %s14, 0
      // Predicated region
      $region25: #{block_group_forward.15} parent=23 // pred_check
        %p130 = pneg %p129
      $region26: #{block_group_forward.15} parent=23 // pred_check_branch
        %132 = sbr.rel (%p130) target = $region28
      $region27: #{block_group_forward.15} parent=23 // pred_region
        %133 = vst [vmem:[%s1] sm:$0x1] 0.0
        %134 = vst [vmem:[%s2] sm:$0x1] 0.0
      $region28: #{block_group_forward.15} parent=23 // pred_fallthru
        _
      %v135 = vld [vmem:[%s127] sm:$0xff]
      %v136 = vld [vmem:[%s127 + $0x8] sm:$0xff]
      %v137 = vld [vmem:[%s127 + $0x10] sm:$0xff]
      %v138 = vld [vmem:[%s127 + $0x18] sm:$0xff]
      %v139 = vld [vmem:[%s127 + $0x20] sm:$0xff]
      %v140 = vld [vmem:[%s127 + $0x28] sm:$0xff]
      %v141 = vld [vmem:[%s127 + $0x30] sm:$0xff]
      %v142 = vld [vmem:[%s127 + $0x38] sm:$0xff]
      %v143 = vld [vmem:[%s1] sm:$0x1]
      %v144 = vadd.f32 %v135, %v136
      %v145 = vadd.f32 %v144, %v137
      %v146 = vadd.f32 %v145, %v138
      %v147 = vadd.f32 %v146, %v139
      %v148 = vadd.f32 %v147, %v140
      %v149 = vadd.f32 %v148, %v141
      %v150 = vadd.f32 %v149, %v142
      %v151 = vrot.slane %v150, 4
      %v152 = vadd.f32 %v150, %v151
      %v153 = vrot.slane %v152, 2
      %v154 = vadd.f32 %v152, %v153
      %v155 = vrot.slane %v154, 1
      %v156 = vadd.f32 %v154, %v155
      %v157 = vadd.f32 %v143, %v156
      %158 = vst [vmem:[%s1] sm:$0x1] %v157
      %v159 = vld [vmem:[%s2] sm:$0x1]
      %v160 = vmul.f32 %v135, %v135
      %v161 = vmul.f32 %v136, %v136
      %v162 = vmul.f32 %v137, %v137
      %v163 = vmul.f32 %v138, %v138
      %v164 = vmul.f32 %v139, %v139
      %v165 = vmul.f32 %v140, %v140
      %v166 = vmul.f32 %v141, %v141
      %v167 = vmul.f32 %v142, %v142
      %v168 = vadd.f32 %v160, %v161
      %v169 = vadd.f32 %v168, %v162
      %v170 = vadd.f32 %v169, %v163
      %v171 = vadd.f32 %v170, %v164
      %v172 = vadd.f32 %v171, %v165
      %v173 = vadd.f32 %v172, %v166
      %v174 = vadd.f32 %v173, %v167
      %v175 = vrot.slane %v174, 4
      %v176 = vadd.f32 %v174, %v175
      %v177 = vrot.slane %v176, 2
      %v178 = vadd.f32 %v176, %v177
      %v179 = vrot.slane %v178, 1
      %v180 = vadd.f32 %v178, %v179
      %v181 = vadd.f32 %v159, %v180
      %182 = vst [vmem:[%s2] sm:$0x1] %v181
      // Predicated region
      $region29: #{block_group_forward.15} parent=23 // pred_check
        %p183 = pneg %p53
      $region30: #{block_group_forward.15} parent=23 // pred_check_branch
        %185 = sbr.rel (%p183) target = $region32
      $region31: #{block_group_forward.15} parent=23 // pred_region
        _
      $region32: #{block_group_forward.15} parent=23 // pred_fallthru
        _
      // Predicated region
      $region33: #{block_group_forward.15} parent=23 // pred_check
        %p186 = pneg %p74
      $region34: #{block_group_forward.15} parent=23 // pred_check_branch
        %188 = sbr.rel (%p186) target = $region36
      $region35: #{block_group_forward.15} parent=23 // pred_region
        _
      $region36: #{block_group_forward.15} parent=23 // pred_fallthru
        _
      // Predicated region
      $region37: #{block_group_forward.15} parent=23 // pred_check
        %p189 = pneg %p53
      $region38: #{block_group_forward.15} parent=23 // pred_check_branch
        %191 = sbr.rel (%p189) target = $region40
      $region39: #{block_group_forward.15} parent=23 // pred_region
        _
      $region40: #{block_group_forward.15} parent=23 // pred_fallthru
        _
      // Predicated region
      $region41: #{block_group_forward.15} parent=23 // pred_check
        %p192 = pneg %p74
      $region42: #{block_group_forward.15} parent=23 // pred_check_branch
        %194 = sbr.rel (%p192) target = $region44
      $region43: #{block_group_forward.15} parent=23 // pred_region
        _
      $region44: #{block_group_forward.15} parent=23 // pred_fallthru
        _
    $region24: #{block_group_forward.15} parent=5 // pred_fallthru
      _
    %p195 = scmp.le.s32.totalorder 2, %s9
    // Predicated region
    $region45: #{block_group_forward.15} parent=5 // pred_check
      %p196 = pneg %p195
    $region46: #{block_group_forward.15} parent=5 // pred_check_branch
      %198 = sbr.rel (%p196) target = $region48
    $region47: #{block_group_forward.15} parent=5 // pred_region
      %s199 = ssub.s32 %s9, 2
    $region48: #{block_group_forward.15} parent=5 // pred_fallthru
      _
  $region6: #{block_group_forward.15} parent=0 // loop_footer
    %s13 = sadd.s32 1, %s9
  $region7: #{block_group_forward.15} parent=0 // loop_footer_branch
    %8 = sbr.rel target = $region3
  $region8: #{block_group_forward.15} parent=0 // loop_exit
    _

// kernel: block_group_forward.16
$region0: #{block_group_forward.16}
  #allocation0 [shape = 'u32[]', space=smem, size = 0x4, offset = 0x4, fixed_abs, tag = 'smem constant byte address 0x4 - core index']
  #allocation1 [shape = 'u32[144,128]{1,0:T(1,128)}', space=vmem, size = 0x12000, scoped, tag = 'internal scratch']
  %s0 = inlined_call_operand.vmem [shape: f32[128,128], index: 0, kind: input, shape index: {}]
  %s1 = inlined_call_operand.vmem [shape: f32[1,128], index: 1, kind: input, shape index: {}]
  %s2 = inlined_call_operand.vmem [shape: f32[1,128], index: 2, kind: input, shape index: {}]
  %s3 = inlined_call_operand.vmem [shape: f32[1,128], index: 3, kind: input, shape index: {}]
  %s4 = inlined_call_operand.vmem [shape: f32[1,128], index: 4, kind: input, shape index: {}]
  %s5 = inlined_call_operand.vmem [shape: f32[128,128], index: 5, kind: output, shape index: {}]
  %s6 = sld [smem:[#allocation0]]
  $region53: #{block_group_forward.16} parent=0
    _
  %s8 = ssub.s32 1, %s6
  %s9 = scalar_select 0, %s8, %s6
  loop: start=0, step=1, limit=4
  $region2: #{block_group_forward.16} parent=0 // loop_pre_header
    _
  $region3: #{block_group_forward.16} parent=0 // loop_header
    %s11 = sphi 0, %s15
    %p12 = scmp.ge.s32.totalorder %s11, 4
    %s21 = sphi 0, %s23
    %s24 = sphi 0, %s21
    %s25 = sphi 0, %s24
    %s41 = sphi 0, %s25
    %s45 = sphi 0, %s45
    %s47 = sphi 0, %s45
    %s48 = sphi 0, %s47
    %s62 = sphi 0, %s48
    %s66 = sphi 0, %s66
    %s68 = sphi 0, %s66
    %s69 = sphi 0, %s68
    %s83 = sphi 0, %s69
    %s87 = sphi 0, %s87
    %s89 = sphi 0, %s87
    %s90 = sphi 0, %s89
    %s104 = sphi 0, %s90
    %s108 = sphi 0, %s108
    %s110 = sphi 0, %s108
    %s111 = sphi 0, %s110
    %s125 = sphi 0, %s111
    %s131 = sphi 0, %s133
    %s134 = sphi 0, %s131
    %s135 = sphi 0, %s134
    %s151 = sphi 0, %s135
  $region4: #{block_group_forward.16} parent=0 // loop_header_branch
    %14 = sbr.rel (%p12) target = $region8
  $region5: #{block_group_forward.16} parent=0 // loop_body
    %s16 = ssub.s32 %s11, 1
    %s17 = ssub.s32 %s11, 2
    %s18 = sadd.s32 %s11, 1
    %s19 = ssub.s32 %s11, %s18
    %p20 = scmp.eq.s32.totalorder %s19, 0
    %s22 = sadd.s32 %s21, 1
    %s23 = scalar_select %p20, %s21, %s22
    %p26 = pneg %p20
    %p27 = scmp.eq.s32.totalorder %s11, 1
    %p28 = por %p26, %p27
    %p29 = scmp.ne.s32.totalorder %s21, %s24
    %p30 = scmp.eq.s32.totalorder %s11, 0
    %p31 = por %p29, %p30
    %p32 = scmp.ne.s32.totalorder %s21, %s24
    %p33 = scmp.eq.s32.totalorder %s16, 1
    %p34 = por %p32, %p33
    %p35 = scmp.ne.s32.totalorder %s24, %s25
    %p36 = scmp.eq.s32.totalorder %s16, 0
    %p37 = por %p35, %p36
    %p38 = scmp.ne.s32.totalorder %s24, %s25
    %p39 = scmp.eq.s32.totalorder %s17, 1
    %p40 = por %p38, %p39
    %p42 = scmp.ne.s32.totalorder %s25, %s41
    %p43 = scmp.eq.s32.totalorder %s17, 0
    %p44 = por %p42, %p43
    %s46 = sadd.s32 %s45, 1
    %p49 = scmp.eq.s32.totalorder %s11, 1
    %p50 = scmp.ne.s32.totalorder %s45, %s47
    %p51 = scmp.eq.s32.totalorder %s11, 0
    %p52 = por %p50, %p51
    %p53 = scmp.ne.s32.totalorder %s45, %s47
    %p54 = scmp.eq.s32.totalorder %s16, 1
    %p55 = por %p53, %p54
    %p56 = scmp.ne.s32.totalorder %s47, %s48
    %p57 = scmp.eq.s32.totalorder %s16, 0
    %p58 = por %p56, %p57
    %p59 = scmp.ne.s32.totalorder %s47, %s48
    %p60 = scmp.eq.s32.totalorder %s17, 1
    %p61 = por %p59, %p60
    %p63 = scmp.ne.s32.totalorder %s48, %s62
    %p64 = scmp.eq.s32.totalorder %s17, 0
    %p65 = por %p63, %p64
    %s67 = sadd.s32 %s66, 1
    %p70 = scmp.eq.s32.totalorder %s11, 1
    %p71 = scmp.ne.s32.totalorder %s66, %s68
    %p72 = scmp.eq.s32.totalorder %s11, 0
    %p73 = por %p71, %p72
    %p74 = scmp.ne.s32.totalorder %s66, %s68
    %p75 = scmp.eq.s32.totalorder %s16, 1
    %p76 = por %p74, %p75
    %p77 = scmp.ne.s32.totalorder %s68, %s69
    %p78 = scmp.eq.s32.totalorder %s16, 0
    %p79 = por %p77, %p78
    %p80 = scmp.ne.s32.totalorder %s68, %s69
    %p81 = scmp.eq.s32.totalorder %s17, 1
    %p82 = por %p80, %p81
    %p84 = scmp.ne.s32.totalorder %s69, %s83
    %p85 = scmp.eq.s32.totalorder %s17, 0
    %p86 = por %p84, %p85
    %s88 = sadd.s32 %s87, 1
    %p91 = scmp.eq.s32.totalorder %s11, 1
    %p92 = scmp.ne.s32.totalorder %s87, %s89
    %p93 = scmp.eq.s32.totalorder %s11, 0
    %p94 = por %p92, %p93
    %p95 = scmp.ne.s32.totalorder %s87, %s89
    %p96 = scmp.eq.s32.totalorder %s16, 1
    %p97 = por %p95, %p96
    %p98 = scmp.ne.s32.totalorder %s89, %s90
    %p99 = scmp.eq.s32.totalorder %s16, 0
    %p100 = por %p98, %p99
    %p101 = scmp.ne.s32.totalorder %s89, %s90
    %p102 = scmp.eq.s32.totalorder %s17, 1
    %p103 = por %p101, %p102
    %p105 = scmp.ne.s32.totalorder %s90, %s104
    %p106 = scmp.eq.s32.totalorder %s17, 0
    %p107 = por %p105, %p106
    %s109 = sadd.s32 %s108, 1
    %p112 = scmp.eq.s32.totalorder %s11, 1
    %p113 = scmp.ne.s32.totalorder %s108, %s110
    %p114 = scmp.eq.s32.totalorder %s11, 0
    %p115 = por %p113, %p114
    %p116 = scmp.ne.s32.totalorder %s108, %s110
    %p117 = scmp.eq.s32.totalorder %s16, 1
    %p118 = por %p116, %p117
    %p119 = scmp.ne.s32.totalorder %s110, %s111
    %p120 = scmp.eq.s32.totalorder %s16, 0
    %p121 = por %p119, %p120
    %p122 = scmp.ne.s32.totalorder %s110, %s111
    %p123 = scmp.eq.s32.totalorder %s17, 1
    %p124 = por %p122, %p123
    %p126 = scmp.ne.s32.totalorder %s111, %s125
    %p127 = scmp.eq.s32.totalorder %s17, 0
    %p128 = por %p126, %p127
    %s129 = ssub.s32 %s11, %s18
    %p130 = scmp.eq.s32.totalorder %s129, 0
    %s132 = sadd.s32 %s131, 1
    %s133 = scalar_select %p130, %s131, %s132
    %p136 = pneg %p130
    %p137 = scmp.eq.s32.totalorder %s11, 1
    %p138 = por %p136, %p137
    %p139 = scmp.ne.s32.totalorder %s131, %s134
    %p140 = scmp.eq.s32.totalorder %s11, 0
    %p141 = por %p139, %p140
    %p142 = scmp.ne.s32.totalorder %s131, %s134
    %p143 = scmp.eq.s32.totalorder %s16, 1
    %p144 = por %p142, %p143
    %p145 = scmp.ne.s32.totalorder %s134, %s135
    %p146 = scmp.eq.s32.totalorder %s16, 0
    %p147 = por %p145, %p146
    %p148 = scmp.ne.s32.totalorder %s134, %s135
    %p149 = scmp.eq.s32.totalorder %s17, 1
    %p150 = por %p148, %p149
    %p152 = scmp.ne.s32.totalorder %s135, %s151
    %p153 = scmp.eq.s32.totalorder %s17, 0
    %p154 = por %p152, %p153
    %p155 = scmp.le.s32.totalorder 1, %s11
    %p156 = scmp.lt.s32.totalorder %s11, 3
    %p157 = pnand %p155, %p156
    %p158 = pneg %p157
    // Predicated region
    $region9: #{block_group_forward.16} parent=5 // pred_check
      _
    $region10: #{block_group_forward.16} parent=5 // pred_check_branch
      %160 = sbr.rel (%p157) target = $region12
    $region11: #{block_group_forward.16} parent=5 // pred_region
      %s161 = ssub.s32 %s11, 1
      // Predicated region
      $region13: #{block_group_forward.16} parent=11 // pred_check
        %p162 = pneg %p58
      $region14: #{block_group_forward.16} parent=11 // pred_check_branch
        %164 = sbr.rel (%p162) target = $region16
      $region15: #{block_group_forward.16} parent=11 // pred_region
        _
      $region16: #{block_group_forward.16} parent=11 // pred_fallthru
        _
      // Predicated region
      $region17: #{block_group_forward.16} parent=11 // pred_check
        %p165 = pneg %p79
      $region18: #{block_group_forward.16} parent=11 // pred_check_branch
        %167 = sbr.rel (%p165) target = $region20
      $region19: #{block_group_forward.16} parent=11 // pred_region
        _
      $region20: #{block_group_forward.16} parent=11 // pred_fallthru
        _
      // Predicated region
      $region21: #{block_group_forward.16} parent=11 // pred_check
        %p168 = pneg %p100
      $region22: #{block_group_forward.16} parent=11 // pred_check_branch
        %170 = sbr.rel (%p168) target = $region24
      $region23: #{block_group_forward.16} parent=11 // pred_region
        _
      $region24: #{block_group_forward.16} parent=11 // pred_fallthru
        _
      // Predicated region
      $region25: #{block_group_forward.16} parent=11 // pred_check
        %p171 = pneg %p121
      $region26: #{block_group_forward.16} parent=11 // pred_check_branch
        %173 = sbr.rel (%p171) target = $region28
      $region27: #{block_group_forward.16} parent=11 // pred_region
        _
      $region28: #{block_group_forward.16} parent=11 // pred_fallthru
        _
    $region12: #{block_group_forward.16} parent=5 // pred_fallthru
      _
    %p174 = scmp.lt.s32.totalorder %s11, 2
    // Predicated region
    $region29: #{block_group_forward.16} parent=5 // pred_check
      %p175 = pneg %p174
    $region30: #{block_group_forward.16} parent=5 // pred_check_branch
      %177 = sbr.rel (%p175) target = $region32
    $region31: #{block_group_forward.16} parent=5 // pred_region
      // Predicated region
      $region33: #{block_group_forward.16} parent=31 // pred_check
        %p178 = pneg %p31
      $region34: #{block_group_forward.16} parent=31 // pred_check_branch
        %180 = sbr.rel (%p178) target = $region36
      $region35: #{block_group_forward.16} parent=31 // pred_region
        %s181 = smul.u32 8, %s11
        %p182 = scmp.lt.s32.totalorder %s181, 15
        %s183 = scalar_select %p182, %s181, 15
        %s184 = smul.addr %s183, 8
        %s185 = scalar_lea.vmem %s0, %s184
        %s186 = smul.u32 8, %s11
      $region36: #{block_group_forward.16} parent=31 // pred_fallthru
        _
    $region32: #{block_group_forward.16} parent=5 // pred_fallthru
      _
    %p187 = scmp.le.s32.totalorder 1, %s11
    %p188 = scmp.lt.s32.totalorder %s11, 3
    %p189 = pnand %p187, %p188
    %p190 = pneg %p189
    // Predicated region
    $region37: #{block_group_forward.16} parent=5 // pred_check
      _
    $region38: #{block_group_forward.16} parent=5 // pred_check_branch
      %192 = sbr.rel (%p189) target = $region40
    $region39: #{block_group_forward.16} parent=5 // pred_region
      %s193 = ssub.s32 %s11, 1
      %s194 = smul.u32 8, %s16
      %p195 = scmp.lt.s32.totalorder %s194, 15
      %s196 = scalar_select %p195, %s194, 15
      %s197 = smul.addr %s196, 8
      %s198 = scalar_lea.vmem %s0, %s197
      %p199 = pneg %p37
      %p200 = pneg %p34
      %p201 = pneg %p58
      %p202 = pneg %p55
      %p203 = pneg %p79
      %p204 = pneg %p76
      %p205 = pneg %p100
      %p206 = pneg %p97
      %p207 = pneg %p121
      %p208 = pneg %p118
      %p209 = pneg %p147
      %p210 = pneg %p144
      %s211 = smul.u32 8, %s16
      %p212 = scmp.lt.s32.totalorder %s211, 15
      %s213 = scalar_select %p212, %s211, 15
      %s214 = smul.addr %s213, 8
      %s215 = scalar_lea.vmem %s5, %s214
      %s216 = smul.u32 8, %s16
      %p217 = scmp.lt.s32.totalorder %s216, 15
      %s218 = scalar_select %p217, %s216, 15
      %s219 = smul.addr %s218, 8
      %s220 = scalar_lea.vmem %s0, %s219
      %s221 = smul.u32 8, %s16
      %s222 = smul.u32 8, %s16
      %p223 = scmp.lt.s32.totalorder %s222, 15
      %s224 = scalar_select %p223, %s222, 15
      %s225 = smul.addr %s224, 8
      %s226 = scalar_lea.vmem %s5, %s225
      %s227 = smul.u32 8, %s16
      %v228 = vld [vmem:[%s220] sm:$0xff]
      %v229 = vld [vmem:[%s220 + $0x8] sm:$0xff]
      %v230 = vld [vmem:[%s220 + $0x10] sm:$0xff]
      %v231 = vld [vmem:[%s220 + $0x18] sm:$0xff]
      %v232 = vld [vmem:[%s220 + $0x20] sm:$0xff]
      %v233 = vld [vmem:[%s220 + $0x28] sm:$0xff]
      %v234 = vld [vmem:[%s220 + $0x30] sm:$0xff]
      %v235 = vld [vmem:[%s220 + $0x38] sm:$0xff]
      %v236 = vld [vmem:[%s1] sm:$0x1]
      %v237 = vld [vmem:[%s2] sm:$0x1]
      %v238 = vld [vmem:[%s3] sm:$0x1]
      %v239 = vld [vmem:[%s4] sm:$0x1]
      %v240 = vmul.f32 %v236, 0.0078125
      %v241 = vmul.f32 %v240, 128.0
      %v242 = vmul.f32 %v241, %v240
      %v243 = vsub.f32 %v237, %v242
      %v244 = vmul.f32 %v243, 0.007874016
      %v245 = vmax.f32 %v244, 0.0
      %v247 = vlaneseq
      %v248 = vshrl.u32 %v247, 7
      %v249 = vsub.s32 0, %v248
      %v250 = vrot.slane %v240, %v249
      %v252 = vsub.f32 %v228, %v250
      %v253 = vsub.f32 %v229, %v250
      %v254 = vsub.f32 %v230, %v250
      %v255 = vsub.f32 %v231, %v250
      %v256 = vsub.f32 %v232, %v250
      %v257 = vsub.f32 %v233, %v250
      %v258 = vsub.f32 %v234, %v250
      %v259 = vsub.f32 %v235, %v250
      %v260 = vadd.f32 %v245, 1e-05
      %v261 = vrsqrt.pop %v260
      %v263 = vlaneseq
      %v264 = vshrl.u32 %v263, 7
      %v265 = vsub.s32 0, %v264
      %v266 = vrot.slane %v261, %v265
      %v268 = vmul.f32 %v252, %v266
      %v269 = vmul.f32 %v253, %v266
      %v270 = vmul.f32 %v254, %v266
      %v271 = vmul.f32 %v255, %v266
      %v272 = vmul.f32 %v256, %v266
      %v273 = vmul.f32 %v257, %v266
      %v274 = vmul.f32 %v258, %v266
      %v275 = vmul.f32 %v259, %v266
      %v277 = vlaneseq
      %v278 = vshrl.u32 %v277, 7
      %v279 = vsub.s32 0, %v278
      %v280 = vrot.slane %v238, %v279
      %v282 = vmul.f32 %v268, %v280
      %v283 = vmul.f32 %v269, %v280
      %v284 = vmul.f32 %v270, %v280
      %v285 = vmul.f32 %v271, %v280
      %v286 = vmul.f32 %v272, %v280
      %v287 = vmul.f32 %v273, %v280
      %v288 = vmul.f32 %v274, %v280
      %v289 = vmul.f32 %v275, %v280
      %v291 = vlaneseq
      %v292 = vshrl.u32 %v291, 7
      %v293 = vsub.s32 0, %v292
      %v294 = vrot.slane %v239, %v293
      %v296 = vadd.f32 %v282, %v294
      %v297 = vadd.f32 %v283, %v294
      %v298 = vadd.f32 %v284, %v294
      %v299 = vadd.f32 %v285, %v294
      %v300 = vadd.f32 %v286, %v294
      %v301 = vadd.f32 %v287, %v294
      %v302 = vadd.f32 %v288, %v294
      %v303 = vadd.f32 %v289, %v294
      %v304 = vmax.f32 %v296, 0.0
      %v305 = vmax.f32 %v297, 0.0
      %v306 = vmax.f32 %v298, 0.0
      %v307 = vmax.f32 %v299, 0.0
      %v308 = vmax.f32 %v300, 0.0
      %v309 = vmax.f32 %v301, 0.0
      %v310 = vmax.f32 %v302, 0.0
      %v311 = vmax.f32 %v303, 0.0
      %312 = vst [vmem:[%s226] sm:$0xff] %v304
      %313 = vst [vmem:[%s226 + $0x8] sm:$0xff] %v305
      %314 = vst [vmem:[%s226 + $0x10] sm:$0xff] %v306
      %315 = vst [vmem:[%s226 + $0x18] sm:$0xff] %v307
      %316 = vst [vmem:[%s226 + $0x20] sm:$0xff] %v308
      %317 = vst [vmem:[%s226 + $0x28] sm:$0xff] %v309
      %318 = vst [vmem:[%s226 + $0x30] sm:$0xff] %v310
      %319 = vst [vmem:[%s226 + $0x38] sm:$0xff] %v311
      %s320 = smul.u32 8, %s16
      %p321 = scmp.lt.s32.totalorder %s320, 15
      %s322 = scalar_select %p321, %s320, 15
      %s323 = smul.addr %s322, 8
      %s324 = scalar_lea.vmem %s5, %s323
      // Predicated region
      $region41: #{block_group_forward.16} parent=39 // pred_check
        %p325 = pneg %p144
      $region42: #{block_group_forward.16} parent=39 // pred_check_branch
        %327 = sbr.rel (%p325) target = $region44
      $region43: #{block_group_forward.16} parent=39 // pred_region
        %s328 = smul.u32 8, %s16
      $region44: #{block_group_forward.16} parent=39 // pred_fallthru
        _
    $region40: #{block_group_forward.16} parent=5 // pred_fallthru
      _
    %p329 = scmp.le.s32.totalorder 2, %s11
    // Predicated region
    $region45: #{block_group_forward.16} parent=5 // pred_check
      %p330 = pneg %p329
    $region46: #{block_group_forward.16} parent=5 // pred_check_branch
      %332 = sbr.rel (%p330) target = $region48
    $region47: #{block_group_forward.16} parent=5 // pred_region
      %s333 = ssub.s32 %s11, 2
      // Predicated region
      $region49: #{block_group_forward.16} parent=47 // pred_check
        %p334 = pneg %p150
      $region50: #{block_group_forward.16} parent=47 // pred_check_branch
        %336 = sbr.rel (%p334) target = $region52
      $region51: #{block_group_forward.16} parent=47 // pred_region
        %s337 = smul.u32 8, %s17
        %p338 = scmp.lt.s32.totalorder %s337, 15
        %s339 = scalar_select %p338, %s337, 15
        %s340 = smul.addr %s339, 8
        %s341 = scalar_lea.vmem %s5, %s340
      $region52: #{block_group_forward.16} parent=47 // pred_fallthru
        _
    $region48: #{block_group_forward.16} parent=5 // pred_fallthru
      _
  $region6: #{block_group_forward.16} parent=0 // loop_footer
    %s15 = sadd.s32 1, %s11
  $region7: #{block_group_forward.16} parent=0 // loop_footer_branch
    %10 = sbr.rel target = $region3
  $region8: #{block_group_forward.16} parent=0 // loop_exit
    _

// kernel: block_group_forward.14
$region0: #{block_group_forward.14}
  #allocation0 [shape = 'u32[]', space=smem, size = 0x4, offset = 0x4, fixed_abs, tag = 'smem constant byte address 0x4 - core index']
  #allocation1 [shape = 'u32[144,128]{1,0:T(1,128)}', space=vmem, size = 0x12000, scoped, tag = 'internal scratch']
  #allocation2 [shape = 'f32[64,128]{1,0:T(8,128)}', space=vmem, size = 0x8000, scoped, tag = 'scratch operand']
  %s0 = inlined_call_operand.vmem [shape: bf16[9,128,64], index: 0, kind: input, shape index: {}]
  %s1 = inlined_call_operand.vmem [shape: bf16[9,64,128], index: 1, kind: input, shape index: {}]
  %s2 = inlined_call_operand.vmem [shape: f32[128,128], index: 2, kind: output, shape index: {}]
  %s3 = sld [smem:[#allocation0]]
  $region49: #{block_group_forward.14} parent=0
    _
  %s5 = ssub.s32 1, %s3
  %s6 = scalar_select 0, %s5, %s3
  loop: start=0, step=1, limit=20
  $region2: #{block_group_forward.14} parent=0 // loop_pre_header
    _
  $region3: #{block_group_forward.14} parent=0 // loop_header
    %s8 = sphi 0, %s12
    %p9 = scmp.ge.s32.totalorder %s8, 20
    %s15 = sphi 0, %s34
    %s16 = sphi 0, %s30
    %s17 = sphi 0, %s26
    %s18 = sphi 0, %s15
    %s19 = sphi 0, %s16
    %s20 = sphi 0, %s17
    %s21 = sphi 0, %s18
    %s22 = sphi 0, %s19
    %s23 = sphi 0, %s20
    %s39 = sphi 0, %s41
    %s42 = sphi 0, %s39
    %s43 = sphi 0, %s42
    %s59 = sphi 0, %s43
    %s67 = sphi 0, %s69
    %s70 = sphi 0, %s67
    %s71 = sphi 0, %s70
    %s87 = sphi 0, %s71
    %s95 = sphi 0, %s97
    %s98 = sphi 0, %s95
    %s99 = sphi 0, %s98
    %s115 = sphi 0, %s99
  $region4: #{block_group_forward.14} parent=0 // loop_header_branch
    %11 = sbr.rel (%p9) target = $region8
  $region5: #{block_group_forward.14} parent=0 // loop_body
    %s13 = ssub.s32 %s8, 1
    %s14 = ssub.s32 %s8, 2
    %s24 = sadd.s32 1, %s17
    %p25 = scmp.ge.s32.totalorder %s24, 9
    %s26 = scalar_select %p25, 0, %s24
    %s27 = sadd.s32 1, %s16
    %s28 = scalar_select %p25, %s27, %s16
    %p29 = scmp.ge.s32.totalorder %s28, 1
    %s30 = scalar_select %p29, 0, %s28
    %s31 = sadd.s32 1, %s15
    %s32 = scalar_select %p29, %s31, %s15
    %p33 = scmp.ge.s32.totalorder %s32, 2
    %s34 = scalar_select %p33, 0, %s32
    %s35 = ssub.s32 %s17, %s26
    %s36 = ssub.s32 %s15, %s34
    %s37 = sor.u32 %s35, %s36
    %p38 = scmp.eq.s32.totalorder %s37, 0
    %s40 = sadd.s32 %s39, 1
    %s41 = scalar_select %p38, %s39, %s40
    %p44 = pneg %p38
    %p45 = scmp.eq.s32.totalorder %s8, 17
    %p46 = por %p44, %p45
    %p47 = scmp.ne.s32.totalorder %s39, %s42
    %p48 = scmp.eq.s32.totalorder %s8, 0
    %p49 = por %p47, %p48
    %p50 = scmp.ne.s32.totalorder %s39, %s42
    %p51 = scmp.eq.s32.totalorder %s13, 17
    %p52 = por %p50, %p51
    %p53 = scmp.ne.s32.totalorder %s42, %s43
    %p54 = scmp.eq.s32.totalorder %s13, 0
    %p55 = por %p53, %p54
    %p56 = scmp.ne.s32.totalorder %s42, %s43
    %p57 = scmp.eq.s32.totalorder %s14, 17
    %p58 = por %p56, %p57
    %p60 = scmp.ne.s32.totalorder %s43, %s59
    %p61 = scmp.eq.s32.totalorder %s14, 0
    %p62 = por %p60, %p61
    %s63 = ssub.s32 %s17, %s26
    %s64 = ssub.s32 %s16, %s30
    %s65 = sor.u32 %s63, %s64
    %p66 = scmp.eq.s32.totalorder %s65, 0
    %s68 = sadd.s32 %s67, 1
    %s69 = scalar_select %p66, %s67, %s68
    %p72 = pneg %p66
    %p73 = scmp.eq.s32.totalorder %s8, 17
    %p74 = por %p72, %p73
    %p75 = scmp.ne.s32.totalorder %s67, %s70
    %p76 = scmp.eq.s32.totalorder %s8, 0
    %p77 = por %p75, %p76
    %p78 = scmp.ne.s32.totalorder %s67, %s70
    %p79 = scmp.eq.s32.totalorder %s13, 17
    %p80 = por %p78, %p79
    %p81 = scmp.ne.s32.totalorder %s70, %s71
    %p82 = scmp.eq.s32.totalorder %s13, 0
    %p83 = por %p81, %p82
    %p84 = scmp.ne.s32.totalorder %s70, %s71
    %p85 = scmp.eq.s32.totalorder %s14, 17
    %p86 = por %p84, %p85
    %p88 = scmp.ne.s32.totalorder %s71, %s87
    %p89 = scmp.eq.s32.totalorder %s14, 0
    %p90 = por %p88, %p89
    %s91 = ssub.s32 %s15, %s34
    %s92 = ssub.s32 %s16, %s30
    %s93 = sor.u32 %s91, %s92
    %p94 = scmp.eq.s32.totalorder %s93, 0
    %s96 = sadd.s32 %s95, 1
    %s97 = scalar_select %p94, %s95, %s96
    %p100 = pneg %p94
    %p101 = scmp.eq.s32.totalorder %s8, 17
    %p102 = por %p100, %p101
    %p103 = scmp.ne.s32.totalorder %s95, %s98
    %p104 = scmp.eq.s32.totalorder %s8, 0
    %p105 = por %p103, %p104
    %p106 = scmp.ne.s32.totalorder %s95, %s98
    %p107 = scmp.eq.s32.totalorder %s13, 17
    %p108 = por %p106, %p107
    %p109 = scmp.ne.s32.totalorder %s98, %s99
    %p110 = scmp.eq.s32.totalorder %s13, 0
    %p111 = por %p109, %p110
    %p112 = scmp.ne.s32.totalorder %s98, %s99
    %p113 = scmp.eq.s32.totalorder %s14, 17
    %p114 = por %p112, %p113
    %p116 = scmp.ne.s32.totalorder %s99, %s115
    %p117 = scmp.eq.s32.totalorder %s14, 0
    %p118 = por %p116, %p117
    %p119 = scmp.le.s32.totalorder 1, %s8
    %p120 = scmp.lt.s32.totalorder %s8, 19
    %p121 = pnand %p119, %p120
    %p122 = pneg %p121
    // Predicated region
    $region9: #{block_group_forward.14} parent=5 // pred_check
      _
    $region10: #{block_group_forward.14} parent=5 // pred_check_branch
      %124 = sbr.rel (%p121) target = $region12
    $region11: #{block_group_forward.14} parent=5 // pred_region
      %s125 = ssub.s32 %s8, 1
    $region12: #{block_group_forward.14} parent=5 // pred_fallthru
      _
    %p126 = scmp.lt.s32.totalorder %s8, 18
    // Predicated region
    $region13: #{block_group_forward.14} parent=5 // pred_check
      %p127 = pneg %p126
    $region14: #{block_group_forward.14} parent=5 // pred_check_branch
      %129 = sbr.rel (%p127) target = $region16
    $region15: #{block_group_forward.14} parent=5 // pred_region
      // Predicated region
      $region17: #{block_group_forward.14} parent=15 // pred_check
        %p130 = pneg %p49
      $region18: #{block_group_forward.14} parent=15 // pred_check_branch
        %132 = sbr.rel (%p130) target = $region20
      $region19: #{block_group_forward.14} parent=15 // pred_region
        %s133 = smul.u32 8, %s15
        %p134 = scmp.lt.s32.totalorder %s17, 8
        %s135 = scalar_select %p134, %s17, 8
        %p136 = scmp.lt.s32.totalorder %s133, 15
        %s137 = scalar_select %p136, %s133, 15
        %s138 = smul.addr %s135, 16
        %s139 = sadd.s32 %s137, %s138
        %s140 = smul.addr %s139, 4
        %s141 = scalar_lea.vmem %s0, %s140
        %s142 = smul.u32 8, %s15
      $region20: #{block_group_forward.14} parent=15 // pred_fallthru
        _
      // Predicated region
      $region21: #{block_group_forward.14} parent=15 // pred_check
        %p143 = pneg %p77
      $region22: #{block_group_forward.14} parent=15 // pred_check_branch
        %145 = sbr.rel (%p143) target = $region24
      $region23: #{block_group_forward.14} parent=15 // pred_region
        %p146 = scmp.lt.s32.totalorder %s17, 8
        %s147 = scalar_select %p146, %s17, 8
        %p148 = scmp.lt.s32.totalorder %s16, 0
        %s149 = scalar_select %p148, %s16, 0
        %s150 = smul.addr %s147, 8
        %s151 = sadd.s32 %s149, %s150
        %s152 = smul.addr %s151, 4
        %s153 = scalar_lea.vmem %s1, %s152
      $region24: #{block_group_forward.14} parent=15 // pred_fallthru
        _
    $region16: #{block_group_forward.14} parent=5 // pred_fallthru
      _
    %p154 = scmp.le.s32.totalorder 1, %s8
    %p155 = scmp.lt.s32.totalorder %s8, 19
    %p156 = pnand %p154, %p155
    %p157 = pneg %p156
    // Predicated region
    $region25: #{block_group_forward.14} parent=5 // pred_check
      _
    $region26: #{block_group_forward.14} parent=5 // pred_check_branch
      %159 = sbr.rel (%p156) target = $region28
    $region27: #{block_group_forward.14} parent=5 // pred_region
      %s160 = ssub.s32 %s8, 1
      %s161 = smul.u32 8, %s18
      %p162 = scmp.lt.s32.totalorder %s20, 8
      %s163 = scalar_select %p162, %s20, 8
      %p164 = scmp.lt.s32.totalorder %s161, 15
      %s165 = scalar_select %p164, %s161, 15
      %s166 = smul.addr %s163, 16
      %s167 = sadd.s32 %s165, %s166
      %s168 = smul.addr %s167, 4
      %s169 = scalar_lea.vmem %s0, %s168
      %p170 = pneg %p55
      %p171 = pneg %p52
      %p172 = scmp.lt.s32.totalorder %s20, 8
      %s173 = scalar_select %p172, %s20, 8
      %p174 = scmp.lt.s32.totalorder %s19, 0
      %s175 = scalar_select %p174, %s19, 0
      %s176 = smul.addr %s173, 8
      %s177 = sadd.s32 %s175, %s176
      %s178 = smul.addr %s177, 4
      %s179 = scalar_lea.vmem %s1, %s178
      %p180 = pneg %p83
      %p181 = pneg %p80
      %p182 = pneg %p111
      %p183 = pneg %p108
      %s184 = smul.u32 8, %s18
      %p185 = scmp.lt.s32.totalorder %s184, 15
      %s186 = scalar_select %p185, %s184, 15
      %p187 = scmp.lt.s32.totalorder %s19, 0
      %s188 = scalar_select %p187, %s19, 0
      %s189 = sadd.s32 %s188, %s186
      %s190 = smul.addr %s189, 8
      %s191 = scalar_lea.vmem %s2, %s190
      %s192 = smul.u32 8, %s18
      %p193 = scmp.lt.s32.totalorder %s20, 8
      %s194 = scalar_select %p193, %s20, 8
      %p195 = scmp.lt.s32.totalorder %s192, 15
      %s196 = scalar_select %p195, %s192, 15
      %s197 = smul.addr %s194, 16
      %s198 = sadd.s32 %s196, %s197
      %s199 = smul.addr %s198, 4
      %s200 = scalar_lea.vmem %s0, %s199
      %s201 = smul.u32 8, %s18
      %p202 = scmp.lt.s32.totalorder %s20, 8
      %s203 = scalar_select %p202, %s20, 8
      %p204 = scmp.lt.s32.totalorder %s19, 0
      %s205 = scalar_select %p204, %s19, 0
      %s206 = smul.addr %s203, 8
      %s207 = sadd.s32 %s205, %s206
      %s208 = smul.addr %s207, 4
      %s209 = scalar_lea.vmem %s1, %s208
      %s210 = smul.u32 8, %s18
      %p211 = scmp.lt.s32.totalorder %s210, 15
      %s212 = scalar_select %p211, %s210, 15
      %p213 = scmp.lt.s32.totalorder %s19, 0
      %s214 = scalar_select %p213, %s19, 0
      %s215 = sadd.s32 %s214, %s212
      %s216 = smul.addr %s215, 8
      %s217 = scalar_lea.vmem %s2, %s216
      %s218 = smul.u32 8, %s18
      %p220 = scmp.eq.s32.totalorder %s20, 0
      // Predicated region
      $region29: #{block_group_forward.14} parent=27 // pred_check
        %p221 = pneg %p220
      $region30: #{block_group_forward.14} parent=27 // pred_check_branch
        %223 = sbr.rel (%p221) target = $region32
      $region31: #{block_group_forward.14} parent=27 // pred_region
        %224 = vst [vmem:[#allocation2] sm:$0xff] 0.0
        %225 = vst [vmem:[#allocation2 + $0x8] sm:$0xff] 0.0
        %226 = vst [vmem:[#allocation2 + $0x10] sm:$0xff] 0.0
        %227 = vst [vmem:[#allocation2 + $0x18] sm:$0xff] 0.0
        %228 = vst [vmem:[#allocation2 + $0x20] sm:$0xff] 0.0
        %229 = vst [vmem:[#allocation2 + $0x28] sm:$0xff] 0.0
        %230 = vst [vmem:[#allocation2 + $0x30] sm:$0xff] 0.0
        %231 = vst [vmem:[#allocation2 + $0x38] sm:$0xff] 0.0
      $region32: #{block_group_forward.14} parent=27 // pred_fallthru
        _
      %v232 = vld [vmem:[#allocation2] sm:$0xff]
      %v233 = vld [vmem:[#allocation2 + $0x8] sm:$0xff]
      %v234 = vld [vmem:[#allocation2 + $0x10] sm:$0xff]
      %v235 = vld [vmem:[#allocation2 + $0x18] sm:$0xff]
      %v236 = vld [vmem:[#allocation2 + $0x20] sm:$0xff]
      %v237 = vld [vmem:[#allocation2 + $0x28] sm:$0xff]
      %v238 = vld [vmem:[#allocation2 + $0x30] sm:$0xff]
      %v239 = vld [vmem:[#allocation2 + $0x38] sm:$0xff]
      %v240 = vld [vmem:[%s200] sm:$0xf]
      %v241 = vld [vmem:[%s200 + $0x4] sm:$0xf]
      %v242 = vld [vmem:[%s200 + $0x8] sm:$0xf]
      %v243 = vld [vmem:[%s200 + $0xc] sm:$0xf]
      %v244 = vld [vmem:[%s200 + $0x10] sm:$0xf]
      %v245 = vld [vmem:[%s200 + $0x14] sm:$0xf]
      %v246 = vld [vmem:[%s200 + $0x18] sm:$0xf]
      %v247 = vld [vmem:[%s200 + $0x1c] sm:$0xf]
      %v248 = vld [vmem:[%s209] sm:$0xf]
      %v249 = vld [vmem:[%s209 + $0x4] sm:$0xf]
      %v250 = vld [vmem:[%s209 + $0x8] sm:$0xf]
      %v251 = vld [vmem:[%s209 + $0xc] sm:$0xf]
      %v252 = vld [vmem:[%s209 + $0x10] sm:$0xf]
      %v253 = vld [vmem:[%s209 + $0x14] sm:$0xf]
      %v254 = vld [vmem:[%s209 + $0x18] sm:$0xf]
      %v255 = vld [vmem:[%s209 + $0x1c] sm:$0xf]
      %v264 = vunpack.c.l.b16 %v240
      %v265 = vunpack.c.l.b16 %v241
      %v266 = vunpack.c.l.b16 %v242
      %v267 = vunpack.c.l.b16 %v243
      %v268 = vunpack.c.l.b16 %v244
      %v269 = vunpack.c.l.b16 %v245
      %v270 = vunpack.c.l.b16 %v246
      %v271 = vunpack.c.l.b16 %v247
      %v272 = vpack.c.b16 %v265, %v264
      %v273 = vpack.c.b16 %v267, %v266
      %v274 = vpack.c.b16 %v269, %v268
      %v275 = vpack.c.b16 %v271, %v270
      %v284 = vunpack.c.l.b16 %v248
      %v285 = vunpack.c.l.b16 %v249
      %v286 = vunpack.c.l.b16 %v250
      %v287 = vunpack.c.l.b16 %v251
      %v288 = vunpack.c.l.b16 %v252
      %v289 = vunpack.c.l.b16 %v253
      %v290 = vunpack.c.l.b16 %v254
      %v291 = vunpack.c.l.b16 %v255
      %v292 = vpack.c.b16 %v285, %v284
      %v293 = vpack.c.b16 %v287, %v286
      %v294 = vpack.c.b16 %v289, %v288
      %v295 = vpack.c.b16 %v291, %v290
      %vm300 = vcmask 523264
      %v302 = vsel %vm300, %v272, 0
      %v305 = vsel %vm300, %v273, 0
      %v308 = vsel %vm300, %v274, 0
      %v311 = vsel %vm300, %v275, 0
      %313 = vmatprep.subr.bf16.mxu0 0
      %314 = vmatpush1.bf16.msra.mxu0 0
      %315 = vmatprep.subr.bf16.mxu0 0
      %316 = vmatpush1.bf16.msra.mxu0 0
      %317 = vmatprep.subr.bf16.mxu0 0
      %318 = vmatpush1.bf16.msra.mxu0 0
      %319 = vmatprep.subr.bf16.mxu0 0
      %320 = vmatpush1.bf16.msra.mxu0 0
      %321 = vmatprep.subr.bf16.mxu0 0
      %322 = vmatpush1.bf16.msra.mxu0 %v295
      %323 = vmatprep.subr.bf16.mxu0 0
      %324 = vmatpush1.bf16.msra.mxu0 %v294
      %325 = vmatprep.subr.bf16.mxu0 0
      %326 = vmatpush1.bf16.msra.mxu0 %v293
      %327 = vmatprep.subr.bf16.mxu0 0
      %328 = vmatpush1.bf16.msra.mxu0 %v292
      %329 = vmatprep.subr.bf16.mxu0 0
      %330 = vmatpush2.bf16.msra.mxu0 0
      %331 = vmatprep.subr.bf16.mxu0 0
      %332 = vmatpush2.bf16.msra.mxu0 0
      %333 = vmatprep.subr.bf16.mxu0 0
      %334 = vmatpush2.bf16.msra.mxu0 0
      %335 = vmatprep.subr.bf16.mxu0 0
      %336 = vmatpush2.bf16.msra.mxu0 0
      %337 = vmatprep.subr.bf16.mxu0 0
      %338 = vmatpush2.bf16.msra.mxu0 0
      %339 = vmatprep.subr.bf16.mxu0 0
      %340 = vmatpush2.bf16.msra.mxu0 0
      %341 = vmatprep.subr.bf16.mxu0 0
      %342 = vmatpush2.bf16.msra.mxu0 0
      %343 = vmatprep.subr.bf16.mxu0 0
      %344 = vmatpush2.bf16.msra.mxu0 0
      %345 = vmatprep.mubr.bf16.mxu0 0
      %346 = vmatmul.mubr.bf16.gmra.mxu0 %v302
      %v347 = vpop.f32.mrf.mxu0
      %v348 = vadd.f32 0.0, %v347
      %v349 = vpop.f32.mrf.mxu0
      %v350 = vpop.f32.mrf.mxu0
      %v351 = vadd.f32 0.0, %v350
      %v352 = vpop.f32.mrf.mxu0
      %353 = vmatprep.mubr.bf16.mxu0 0
      %354 = vmatmul.mubr.bf16.gmra.mxu0 %v305
      %v355 = vpop.f32.mrf.mxu0
      %v356 = vadd.f32 0.0, %v355
      %v357 = vpop.f32.mrf.mxu0
      %v358 = vpop.f32.mrf.mxu0
      %v359 = vadd.f32 0.0, %v358
      %v360 = vpop.f32.mrf.mxu0
      %361 = vmatprep.mubr.bf16.mxu0 0
      %362 = vmatmul.mubr.bf16.gmra.mxu0 %v308
      %v363 = vpop.f32.mrf.mxu0
      %v364 = vadd.f32 0.0, %v363
      %v365 = vpop.f32.mrf.mxu0
      %v366 = vpop.f32.mrf.mxu0
      %v367 = vadd.f32 0.0, %v366
      %v368 = vpop.f32.mrf.mxu0
      %369 = vmatprep.mubr.bf16.mxu0 0
      %370 = vmatmul.mubr.bf16.gmra.mxu0 %v311
      %v371 = vpop.f32.mrf.mxu0
      %v372 = vadd.f32 0.0, %v371
      %v373 = vpop.f32.mrf.mxu0
      %v374 = vpop.f32.mrf.mxu0
      %v375 = vadd.f32 0.0, %v374
      %v376 = vpop.f32.mrf.mxu0
      %377 = vdwg.mxu0
      %v378 = vadd.f32 %v232, %v348
      %v379 = vadd.f32 %v233, %v351
      %v380 = vadd.f32 %v234, %v356
      %v381 = vadd.f32 %v235, %v359
      %v382 = vadd.f32 %v236, %v364
      %v383 = vadd.f32 %v237, %v367
      %v384 = vadd.f32 %v238, %v372
      %v385 = vadd.f32 %v239, %v375
      %386 = vst [vmem:[#allocation2] sm:$0xff] %v378
      %387 = vst [vmem:[#allocation2 + $0x8] sm:$0xff] %v379
      %388 = vst [vmem:[#allocation2 + $0x10] sm:$0xff] %v380
      %389 = vst [vmem:[#allocation2 + $0x18] sm:$0xff] %v381
      %390 = vst [vmem:[#allocation2 + $0x20] sm:$0xff] %v382
      %391 = vst [vmem:[#allocation2 + $0x28] sm:$0xff] %v383
      %392 = vst [vmem:[#allocation2 + $0x30] sm:$0xff] %v384
      %393 = vst [vmem:[#allocation2 + $0x38] sm:$0xff] %v385
      %p394 = scmp.eq.s32.totalorder %s20, 8
      // Predicated region
      $region33: #{block_group_forward.14} parent=27 // pred_check
        %p395 = pneg %p394
      $region34: #{block_group_forward.14} parent=27 // pred_check_branch
        %397 = sbr.rel (%p395) target = $region36
      $region35: #{block_group_forward.14} parent=27 // pred_region
        %v398 = vld [vmem:[#allocation2] sm:$0xff]
        %v399 = vld [vmem:[#allocation2 + $0x8] sm:$0xff]
        %v400 = vld [vmem:[#allocation2 + $0x10] sm:$0xff]
        %v401 = vld [vmem:[#allocation2 + $0x18] sm:$0xff]
        %v402 = vld [vmem:[#allocation2 + $0x20] sm:$0xff]
        %v403 = vld [vmem:[#allocation2 + $0x28] sm:$0xff]
        %v404 = vld [vmem:[#allocation2 + $0x30] sm:$0xff]
        %v405 = vld [vmem:[#allocation2 + $0x38] sm:$0xff]
        %406 = vst [vmem:[%s217] sm:$0xff] %v398
        %407 = vst [vmem:[%s217 + $0x8] sm:$0xff] %v399
        %408 = vst [vmem:[%s217 + $0x10] sm:$0xff] %v400
        %409 = vst [vmem:[%s217 + $0x18] sm:$0xff] %v401
        %410 = vst [vmem:[%s217 + $0x20] sm:$0xff] %v402
        %411 = vst [vmem:[%s217 + $0x28] sm:$0xff] %v403
        %412 = vst [vmem:[%s217 + $0x30] sm:$0xff] %v404
        %413 = vst [vmem:[%s217 + $0x38] sm:$0xff] %v405
      $region36: #{block_group_forward.14} parent=27 // pred_fallthru
        _
      %s414 = smul.u32 8, %s18
      %p415 = scmp.lt.s32.totalorder %s414, 15
      %s416 = scalar_select %p415, %s414, 15
      %p417 = scmp.lt.s32.totalorder %s19, 0
      %s418 = scalar_select %p417, %s19, 0
      %s419 = sadd.s32 %s418, %s416
      %s420 = smul.addr %s419, 8
      %s421 = scalar_lea.vmem %s2, %s420
      // Predicated region
      $region37: #{block_group_forward.14} parent=27 // pred_check
        %p422 = pneg %p108
      $region38: #{block_group_forward.14} parent=27 // pred_check_branch
        %424 = sbr.rel (%p422) target = $region40
      $region39: #{block_group_forward.14} parent=27 // pred_region
        %s425 = smul.u32 8, %s18
      $region40: #{block_group_forward.14} parent=27 // pred_fallthru
        _
    $region28: #{block_group_forward.14} parent=5 // pred_fallthru
      _
    %p426 = scmp.le.s32.totalorder 2, %s8
    // Predicated region
    $region41: #{block_group_forward.14} parent=5 // pred_check
      %p427 = pneg %p426
    $region42: #{block_group_forward.14} parent=5 // pred_check_branch
      %429 = sbr.rel (%p427) target = $region44
    $region43: #{block_group_forward.14} parent=5 // pred_region
      %s430 = ssub.s32 %s8, 2
      // Predicated region
      $region45: #{block_group_forward.14} parent=43 // pred_check
        %p431 = pneg %p114
      $region46: #{block_group_forward.14} parent=43 // pred_check_branch
        %433 = sbr.rel (%p431) target = $region48
      $region47: #{block_group_forward.14} parent=43 // pred_region
        %s434 = smul.u32 8, %s21
        %p435 = scmp.lt.s32.totalorder %s434, 15
        %s436 = scalar_select %p435, %s434, 15
        %p437 = scmp.lt.s32.totalorder %s22, 0
        %s438 = scalar_select %p437, %s22, 0
        %s439 = sadd.s32 %s438, %s436
        %s440 = smul.addr %s439, 8
        %s441 = scalar_lea.vmem %s2, %s440
      $region48: #{block_group_forward.14} parent=43 // pred_fallthru
        _
    $region44: #{block_group_forward.14} parent=5 // pred_fallthru
      _
  $region6: #{block_group_forward.14} parent=0 // loop_footer
    %s12 = sadd.s32 1, %s8
  $region7: #{block_group_forward.14} parent=0 // loop_footer_branch
    %7 = sbr.rel target = $region3
  $region8: #{block_group_forward.14} parent=0 // loop_exit
    _

// kernel: block_group_forward.19
$region0: #{block_group_forward.19}
  #allocation0 [shape = 'u32[]', space=smem, size = 0x4, offset = 0x4, fixed_abs, tag = 'smem constant byte address 0x4 - core index']
  #allocation1 [shape = 'u32[144,128]{1,0:T(1,128)}', space=vmem, size = 0x12000, scoped, tag = 'internal scratch']
  #allocation2 [shape = 'f32[64,128]{1,0:T(8,128)}', space=vmem, size = 0x8000, scoped, tag = 'scratch operand']
  %s0 = inlined_call_operand.vmem [shape: bf16[1,128,64], index: 0, kind: input, shape index: {}]
  %s1 = inlined_call_operand.vmem [shape: bf16[1,64,128], index: 1, kind: input, shape index: {}]
  %s2 = inlined_call_operand.vmem [shape: f32[128,128], index: 2, kind: output, shape index: {}]
  %s3 = sld [smem:[#allocation0]]
  $region49: #{block_group_forward.19} parent=0
    _
  %s5 = ssub.s32 1, %s3
  %s6 = scalar_select 0, %s5, %s3
  loop: start=0, step=1, limit=4
  $region2: #{block_group_forward.19} parent=0 // loop_pre_header
    _
  $region3: #{block_group_forward.19} parent=0 // loop_header
    %s8 = sphi 0, %s12
    %p9 = scmp.ge.s32.totalorder %s8, 4
    %s15 = sphi 0, %s34
    %s16 = sphi 0, %s30
    %s17 = sphi 0, %s26
    %s18 = sphi 0, %s15
    %s19 = sphi 0, %s16
    %s20 = sphi 0, %s17
    %s21 = sphi 0, %s18
    %s22 = sphi 0, %s19
    %s23 = sphi 0, %s20
    %s39 = sphi 0, %s41
    %s42 = sphi 0, %s39
    %s43 = sphi 0, %s42
    %s59 = sphi 0, %s43
    %s67 = sphi 0, %s69
    %s70 = sphi 0, %s67
    %s71 = sphi 0, %s70
    %s87 = sphi 0, %s71
    %s95 = sphi 0, %s97
    %s98 = sphi 0, %s95
    %s99 = sphi 0, %s98
    %s115 = sphi 0, %s99
  $region4: #{block_group_forward.19} parent=0 // loop_header_branch
    %11 = sbr.rel (%p9) target = $region8
  $region5: #{block_group_forward.19} parent=0 // loop_body
    %s13 = ssub.s32 %s8, 1
    %s14 = ssub.s32 %s8, 2
    %s24 = sadd.s32 1, %s17
    %p25 = scmp.ge.s32.totalorder %s24, 1
    %s26 = scalar_select %p25, 0, %s24
    %s27 = sadd.s32 1, %s16
    %s28 = scalar_select %p25, %s27, %s16
    %p29 = scmp.ge.s32.totalorder %s28, 1
    %s30 = scalar_select %p29, 0, %s28
    %s31 = sadd.s32 1, %s15
    %s32 = scalar_select %p29, %s31, %s15
    %p33 = scmp.ge.s32.totalorder %s32, 2
    %s34 = scalar_select %p33, 0, %s32
    %s35 = ssub.s32 %s17, %s26
    %s36 = ssub.s32 %s15, %s34
    %s37 = sor.u32 %s35, %s36
    %p38 = scmp.eq.s32.totalorder %s37, 0
    %s40 = sadd.s32 %s39, 1
    %s41 = scalar_select %p38, %s39, %s40
    %p44 = pneg %p38
    %p45 = scmp.eq.s32.totalorder %s8, 1
    %p46 = por %p44, %p45
    %p47 = scmp.ne.s32.totalorder %s39, %s42
    %p48 = scmp.eq.s32.totalorder %s8, 0
    %p49 = por %p47, %p48
    %p50 = scmp.ne.s32.totalorder %s39, %s42
    %p51 = scmp.eq.s32.totalorder %s13, 1
    %p52 = por %p50, %p51
    %p53 = scmp.ne.s32.totalorder %s42, %s43
    %p54 = scmp.eq.s32.totalorder %s13, 0
    %p55 = por %p53, %p54
    %p56 = scmp.ne.s32.totalorder %s42, %s43
    %p57 = scmp.eq.s32.totalorder %s14, 1
    %p58 = por %p56, %p57
    %p60 = scmp.ne.s32.totalorder %s43, %s59
    %p61 = scmp.eq.s32.totalorder %s14, 0
    %p62 = por %p60, %p61
    %s63 = ssub.s32 %s17, %s26
    %s64 = ssub.s32 %s16, %s30
    %s65 = sor.u32 %s63, %s64
    %p66 = scmp.eq.s32.totalorder %s65, 0
    %s68 = sadd.s32 %s67, 1
    %s69 = scalar_select %p66, %s67, %s68
    %p72 = pneg %p66
    %p73 = scmp.eq.s32.totalorder %s8, 1
    %p74 = por %p72, %p73
    %p75 = scmp.ne.s32.totalorder %s67, %s70
    %p76 = scmp.eq.s32.totalorder %s8, 0
    %p77 = por %p75, %p76
    %p78 = scmp.ne.s32.totalorder %s67, %s70
    %p79 = scmp.eq.s32.totalorder %s13, 1
    %p80 = por %p78, %p79
    %p81 = scmp.ne.s32.totalorder %s70, %s71
    %p82 = scmp.eq.s32.totalorder %s13, 0
    %p83 = por %p81, %p82
    %p84 = scmp.ne.s32.totalorder %s70, %s71
    %p85 = scmp.eq.s32.totalorder %s14, 1
    %p86 = por %p84, %p85
    %p88 = scmp.ne.s32.totalorder %s71, %s87
    %p89 = scmp.eq.s32.totalorder %s14, 0
    %p90 = por %p88, %p89
    %s91 = ssub.s32 %s15, %s34
    %s92 = ssub.s32 %s16, %s30
    %s93 = sor.u32 %s91, %s92
    %p94 = scmp.eq.s32.totalorder %s93, 0
    %s96 = sadd.s32 %s95, 1
    %s97 = scalar_select %p94, %s95, %s96
    %p100 = pneg %p94
    %p101 = scmp.eq.s32.totalorder %s8, 1
    %p102 = por %p100, %p101
    %p103 = scmp.ne.s32.totalorder %s95, %s98
    %p104 = scmp.eq.s32.totalorder %s8, 0
    %p105 = por %p103, %p104
    %p106 = scmp.ne.s32.totalorder %s95, %s98
    %p107 = scmp.eq.s32.totalorder %s13, 1
    %p108 = por %p106, %p107
    %p109 = scmp.ne.s32.totalorder %s98, %s99
    %p110 = scmp.eq.s32.totalorder %s13, 0
    %p111 = por %p109, %p110
    %p112 = scmp.ne.s32.totalorder %s98, %s99
    %p113 = scmp.eq.s32.totalorder %s14, 1
    %p114 = por %p112, %p113
    %p116 = scmp.ne.s32.totalorder %s99, %s115
    %p117 = scmp.eq.s32.totalorder %s14, 0
    %p118 = por %p116, %p117
    %p119 = scmp.le.s32.totalorder 1, %s8
    %p120 = scmp.lt.s32.totalorder %s8, 3
    %p121 = pnand %p119, %p120
    %p122 = pneg %p121
    // Predicated region
    $region9: #{block_group_forward.19} parent=5 // pred_check
      _
    $region10: #{block_group_forward.19} parent=5 // pred_check_branch
      %124 = sbr.rel (%p121) target = $region12
    $region11: #{block_group_forward.19} parent=5 // pred_region
      %s125 = ssub.s32 %s8, 1
      // Predicated region
      $region13: #{block_group_forward.19} parent=11 // pred_check
        %p126 = pneg %p83
      $region14: #{block_group_forward.19} parent=11 // pred_check_branch
        %128 = sbr.rel (%p126) target = $region16
      $region15: #{block_group_forward.19} parent=11 // pred_region
        %p129 = scmp.lt.s32.totalorder %s20, 0
        %s130 = scalar_select %p129, %s20, 0
        %p131 = scmp.lt.s32.totalorder %s19, 0
        %s132 = scalar_select %p131, %s19, 0
        %s133 = smul.addr %s130, 8
        %s134 = sadd.s32 %s132, %s133
        %s135 = smul.addr %s134, 4
        %s136 = scalar_lea.vmem %s1, %s135
      $region16: #{block_group_forward.19} parent=11 // pred_fallthru
        _
    $region12: #{block_group_forward.19} parent=5 // pred_fallthru
      _
    %p137 = scmp.lt.s32.totalorder %s8, 2
    // Predicated region
    $region17: #{block_group_forward.19} parent=5 // pred_check
      %p138 = pneg %p137
    $region18: #{block_group_forward.19} parent=5 // pred_check_branch
      %140 = sbr.rel (%p138) target = $region20
    $region19: #{block_group_forward.19} parent=5 // pred_region
      // Predicated region
      $region21: #{block_group_forward.19} parent=19 // pred_check
        %p141 = pneg %p49
      $region22: #{block_group_forward.19} parent=19 // pred_check_branch
        %143 = sbr.rel (%p141) target = $region24
      $region23: #{block_group_forward.19} parent=19 // pred_region
        %s144 = smul.u32 8, %s15
        %p145 = scmp.lt.s32.totalorder %s17, 0
        %s146 = scalar_select %p145, %s17, 0
        %p147 = scmp.lt.s32.totalorder %s144, 15
        %s148 = scalar_select %p147, %s144, 15
        %s149 = smul.addr %s146, 16
        %s150 = sadd.s32 %s148, %s149
        %s151 = smul.addr %s150, 4
        %s152 = scalar_lea.vmem %s0, %s151
        %s153 = smul.u32 8, %s15
      $region24: #{block_group_forward.19} parent=19 // pred_fallthru
        _
    $region20: #{block_group_forward.19} parent=5 // pred_fallthru
      _
    %p154 = scmp.le.s32.totalorder 1, %s8
    %p155 = scmp.lt.s32.totalorder %s8, 3
    %p156 = pnand %p154, %p155
    %p157 = pneg %p156
    // Predicated region
    $region25: #{block_group_forward.19} parent=5 // pred_check
      _
    $region26: #{block_group_forward.19} parent=5 // pred_check_branch
      %159 = sbr.rel (%p156) target = $region28
    $region27: #{block_group_forward.19} parent=5 // pred_region
      %s160 = ssub.s32 %s8, 1
      %s161 = smul.u32 8, %s18
      %p162 = scmp.lt.s32.totalorder %s20, 0
      %s163 = scalar_select %p162, %s20, 0
      %p164 = scmp.lt.s32.totalorder %s161, 15
      %s165 = scalar_select %p164, %s161, 15
      %s166 = smul.addr %s163, 16
      %s167 = sadd.s32 %s165, %s166
      %s168 = smul.addr %s167, 4
      %s169 = scalar_lea.vmem %s0, %s168
      %p170 = pneg %p55
      %p171 = pneg %p52
      %p172 = scmp.lt.s32.totalorder %s20, 0
      %s173 = scalar_select %p172, %s20, 0
      %p174 = scmp.lt.s32.totalorder %s19, 0
      %s175 = scalar_select %p174, %s19, 0
      %s176 = smul.addr %s173, 8
      %s177 = sadd.s32 %s175, %s176
      %s178 = smul.addr %s177, 4
      %s179 = scalar_lea.vmem %s1, %s178
      %p180 = pneg %p83
      %p181 = pneg %p80
      %p182 = pneg %p111
      %p183 = pneg %p108
      %s184 = smul.u32 8, %s18
      %p185 = scmp.lt.s32.totalorder %s184, 15
      %s186 = scalar_select %p185, %s184, 15
      %p187 = scmp.lt.s32.totalorder %s19, 0
      %s188 = scalar_select %p187, %s19, 0
      %s189 = sadd.s32 %s188, %s186
      %s190 = smul.addr %s189, 8
      %s191 = scalar_lea.vmem %s2, %s190
      %s192 = smul.u32 8, %s18
      %p193 = scmp.lt.s32.totalorder %s20, 0
      %s194 = scalar_select %p193, %s20, 0
      %p195 = scmp.lt.s32.totalorder %s192, 15
      %s196 = scalar_select %p195, %s192, 15
      %s197 = smul.addr %s194, 16
      %s198 = sadd.s32 %s196, %s197
      %s199 = smul.addr %s198, 4
      %s200 = scalar_lea.vmem %s0, %s199
      %s201 = smul.u32 8, %s18
      %p202 = scmp.lt.s32.totalorder %s20, 0
      %s203 = scalar_select %p202, %s20, 0
      %p204 = scmp.lt.s32.totalorder %s19, 0
      %s205 = scalar_select %p204, %s19, 0
      %s206 = smul.addr %s203, 8
      %s207 = sadd.s32 %s205, %s206
      %s208 = smul.addr %s207, 4
      %s209 = scalar_lea.vmem %s1, %s208
      %s210 = smul.u32 8, %s18
      %p211 = scmp.lt.s32.totalorder %s210, 15
      %s212 = scalar_select %p211, %s210, 15
      %p213 = scmp.lt.s32.totalorder %s19, 0
      %s214 = scalar_select %p213, %s19, 0
      %s215 = sadd.s32 %s214, %s212
      %s216 = smul.addr %s215, 8
      %s217 = scalar_lea.vmem %s2, %s216
      %s218 = smul.u32 8, %s18
      %p220 = scmp.eq.s32.totalorder %s20, 0
      // Predicated region
      $region29: #{block_group_forward.19} parent=27 // pred_check
        %p221 = pneg %p220
      $region30: #{block_group_forward.19} parent=27 // pred_check_branch
        %223 = sbr.rel (%p221) target = $region32
      $region31: #{block_group_forward.19} parent=27 // pred_region
        %224 = vst [vmem:[#allocation2] sm:$0xff] 0.0
        %225 = vst [vmem:[#allocation2 + $0x8] sm:$0xff] 0.0
        %226 = vst [vmem:[#allocation2 + $0x10] sm:$0xff] 0.0
        %227 = vst [vmem:[#allocation2 + $0x18] sm:$0xff] 0.0
        %228 = vst [vmem:[#allocation2 + $0x20] sm:$0xff] 0.0
        %229 = vst [vmem:[#allocation2 + $0x28] sm:$0xff] 0.0
        %230 = vst [vmem:[#allocation2 + $0x30] sm:$0xff] 0.0
        %231 = vst [vmem:[#allocation2 + $0x38] sm:$0xff] 0.0
      $region32: #{block_group_forward.19} parent=27 // pred_fallthru
        _
      %v232 = vld [vmem:[#allocation2] sm:$0xff]
      %v233 = vld [vmem:[#allocation2 + $0x8] sm:$0xff]
      %v234 = vld [vmem:[#allocation2 + $0x10] sm:$0xff]
      %v235 = vld [vmem:[#allocation2 + $0x18] sm:$0xff]
      %v236 = vld [vmem:[#allocation2 + $0x20] sm:$0xff]
      %v237 = vld [vmem:[#allocation2 + $0x28] sm:$0xff]
      %v238 = vld [vmem:[#allocation2 + $0x30] sm:$0xff]
      %v239 = vld [vmem:[#allocation2 + $0x38] sm:$0xff]
      %v240 = vld [vmem:[%s200] sm:$0xf]
      %v241 = vld [vmem:[%s200 + $0x4] sm:$0xf]
      %v242 = vld [vmem:[%s200 + $0x8] sm:$0xf]
      %v243 = vld [vmem:[%s200 + $0xc] sm:$0xf]
      %v244 = vld [vmem:[%s200 + $0x10] sm:$0xf]
      %v245 = vld [vmem:[%s200 + $0x14] sm:$0xf]
      %v246 = vld [vmem:[%s200 + $0x18] sm:$0xf]
      %v247 = vld [vmem:[%s200 + $0x1c] sm:$0xf]
      %v248 = vld [vmem:[%s209] sm:$0xf]
      %v249 = vld [vmem:[%s209 + $0x4] sm:$0xf]
      %v250 = vld [vmem:[%s209 + $0x8] sm:$0xf]
      %v251 = vld [vmem:[%s209 + $0xc] sm:$0xf]
      %v252 = vld [vmem:[%s209 + $0x10] sm:$0xf]
      %v253 = vld [vmem:[%s209 + $0x14] sm:$0xf]
      %v254 = vld [vmem:[%s209 + $0x18] sm:$0xf]
      %v255 = vld [vmem:[%s209 + $0x1c] sm:$0xf]
      %v264 = vunpack.c.l.b16 %v240
      %v265 = vunpack.c.l.b16 %v241
      %v266 = vunpack.c.l.b16 %v242
      %v267 = vunpack.c.l.b16 %v243
      %v268 = vunpack.c.l.b16 %v244
      %v269 = vunpack.c.l.b16 %v245
      %v270 = vunpack.c.l.b16 %v246
      %v271 = vunpack.c.l.b16 %v247
      %v272 = vpack.c.b16 %v265, %v264
      %v273 = vpack.c.b16 %v267, %v266
      %v274 = vpack.c.b16 %v269, %v268
      %v275 = vpack.c.b16 %v271, %v270
      %v284 = vunpack.c.l.b16 %v248
      %v285 = vunpack.c.l.b16 %v249
      %v286 = vunpack.c.l.b16 %v250
      %v287 = vunpack.c.l.b16 %v251
      %v288 = vunpack.c.l.b16 %v252
      %v289 = vunpack.c.l.b16 %v253
      %v290 = vunpack.c.l.b16 %v254
      %v291 = vunpack.c.l.b16 %v255
      %v292 = vpack.c.b16 %v285, %v284
      %v293 = vpack.c.b16 %v287, %v286
      %v294 = vpack.c.b16 %v289, %v288
      %v295 = vpack.c.b16 %v291, %v290
      %vm300 = vcmask 523264
      %v302 = vsel %vm300, %v272, 0
      %v305 = vsel %vm300, %v273, 0
      %v308 = vsel %vm300, %v274, 0
      %v311 = vsel %vm300, %v275, 0
      %313 = vmatprep.subr.bf16.mxu0 0
      %314 = vmatpush1.bf16.msra.mxu0 0
      %315 = vmatprep.subr.bf16.mxu0 0
      %316 = vmatpush1.bf16.msra.mxu0 0
      %317 = vmatprep.subr.bf16.mxu0 0
      %318 = vmatpush1.bf16.msra.mxu0 0
      %319 = vmatprep.subr.bf16.mxu0 0
      %320 = vmatpush1.bf16.msra.mxu0 0
      %321 = vmatprep.subr.bf16.mxu0 0
      %322 = vmatpush1.bf16.msra.mxu0 %v295
      %323 = vmatprep.subr.bf16.mxu0 0
      %324 = vmatpush1.bf16.msra.mxu0 %v294
      %325 = vmatprep.subr.bf16.mxu0 0
      %326 = vmatpush1.bf16.msra.mxu0 %v293
      %327 = vmatprep.subr.bf16.mxu0 0
      %328 = vmatpush1.bf16.msra.mxu0 %v292
      %329 = vmatprep.subr.bf16.mxu0 0
      %330 = vmatpush2.bf16.msra.mxu0 0
      %331 = vmatprep.subr.bf16.mxu0 0
      %332 = vmatpush2.bf16.msra.mxu0 0
      %333 = vmatprep.subr.bf16.mxu0 0
      %334 = vmatpush2.bf16.msra.mxu0 0
      %335 = vmatprep.subr.bf16.mxu0 0
      %336 = vmatpush2.bf16.msra.mxu0 0
      %337 = vmatprep.subr.bf16.mxu0 0
      %338 = vmatpush2.bf16.msra.mxu0 0
      %339 = vmatprep.subr.bf16.mxu0 0
      %340 = vmatpush2.bf16.msra.mxu0 0
      %341 = vmatprep.subr.bf16.mxu0 0
      %342 = vmatpush2.bf16.msra.mxu0 0
      %343 = vmatprep.subr.bf16.mxu0 0
      %344 = vmatpush2.bf16.msra.mxu0 0
      %345 = vmatprep.mubr.bf16.mxu0 0
      %346 = vmatmul.mubr.bf16.gmra.mxu0 %v302
      %v347 = vpop.f32.mrf.mxu0
      %v348 = vadd.f32 0.0, %v347
      %v349 = vpop.f32.mrf.mxu0
      %v350 = vpop.f32.mrf.mxu0
      %v351 = vadd.f32 0.0, %v350
      %v352 = vpop.f32.mrf.mxu0
      %353 = vmatprep.mubr.bf16.mxu0 0
      %354 = vmatmul.mubr.bf16.gmra.mxu0 %v305
      %v355 = vpop.f32.mrf.mxu0
      %v356 = vadd.f32 0.0, %v355
      %v357 = vpop.f32.mrf.mxu0
      %v358 = vpop.f32.mrf.mxu0
      %v359 = vadd.f32 0.0, %v358
      %v360 = vpop.f32.mrf.mxu0
      %361 = vmatprep.mubr.bf16.mxu0 0
      %362 = vmatmul.mubr.bf16.gmra.mxu0 %v308
      %v363 = vpop.f32.mrf.mxu0
      %v364 = vadd.f32 0.0, %v363
      %v365 = vpop.f32.mrf.mxu0
      %v366 = vpop.f32.mrf.mxu0
      %v367 = vadd.f32 0.0, %v366
      %v368 = vpop.f32.mrf.mxu0
      %369 = vmatprep.mubr.bf16.mxu0 0
      %370 = vmatmul.mubr.bf16.gmra.mxu0 %v311
      %v371 = vpop.f32.mrf.mxu0
      %v372 = vadd.f32 0.0, %v371
      %v373 = vpop.f32.mrf.mxu0
      %v374 = vpop.f32.mrf.mxu0
      %v375 = vadd.f32 0.0, %v374
      %v376 = vpop.f32.mrf.mxu0
      %377 = vdwg.mxu0
      %v378 = vadd.f32 %v232, %v348
      %v379 = vadd.f32 %v233, %v351
      %v380 = vadd.f32 %v234, %v356
      %v381 = vadd.f32 %v235, %v359
      %v382 = vadd.f32 %v236, %v364
      %v383 = vadd.f32 %v237, %v367
      %v384 = vadd.f32 %v238, %v372
      %v385 = vadd.f32 %v239, %v375
      %386 = vst [vmem:[#allocation2] sm:$0xff] %v378
      %387 = vst [vmem:[#allocation2 + $0x8] sm:$0xff] %v379
      %388 = vst [vmem:[#allocation2 + $0x10] sm:$0xff] %v380
      %389 = vst [vmem:[#allocation2 + $0x18] sm:$0xff] %v381
      %390 = vst [vmem:[#allocation2 + $0x20] sm:$0xff] %v382
      %391 = vst [vmem:[#allocation2 + $0x28] sm:$0xff] %v383
      %392 = vst [vmem:[#allocation2 + $0x30] sm:$0xff] %v384
      %393 = vst [vmem:[#allocation2 + $0x38] sm:$0xff] %v385
      // Predicated region
      $region33: #{block_group_forward.19} parent=27 // pred_check
        %p394 = pneg %p220
      $region34: #{block_group_forward.19} parent=27 // pred_check_branch
        %396 = sbr.rel (%p394) target = $region36
      $region35: #{block_group_forward.19} parent=27 // pred_region
        %v397 = vld [vmem:[#allocation2] sm:$0xff]
        %v398 = vld [vmem:[#allocation2 + $0x8] sm:$0xff]
        %v399 = vld [vmem:[#allocation2 + $0x10] sm:$0xff]
        %v400 = vld [vmem:[#allocation2 + $0x18] sm:$0xff]
        %v401 = vld [vmem:[#allocation2 + $0x20] sm:$0xff]
        %v402 = vld [vmem:[#allocation2 + $0x28] sm:$0xff]
        %v403 = vld [vmem:[#allocation2 + $0x30] sm:$0xff]
        %v404 = vld [vmem:[#allocation2 + $0x38] sm:$0xff]
        %405 = vst [vmem:[%s217] sm:$0xff] %v397
        %406 = vst [vmem:[%s217 + $0x8] sm:$0xff] %v398
        %407 = vst [vmem:[%s217 + $0x10] sm:$0xff] %v399
        %408 = vst [vmem:[%s217 + $0x18] sm:$0xff] %v400
        %409 = vst [vmem:[%s217 + $0x20] sm:$0xff] %v401
        %410 = vst [vmem:[%s217 + $0x28] sm:$0xff] %v402
        %411 = vst [vmem:[%s217 + $0x30] sm:$0xff] %v403
        %412 = vst [vmem:[%s217 + $0x38] sm:$0xff] %v404
      $region36: #{block_group_forward.19} parent=27 // pred_fallthru
        _
      %s413 = smul.u32 8, %s18
      %p414 = scmp.lt.s32.totalorder %s413, 15
      %s415 = scalar_select %p414, %s413, 15
      %p416 = scmp.lt.s32.totalorder %s19, 0
      %s417 = scalar_select %p416, %s19, 0
      %s418 = sadd.s32 %s417, %s415
      %s419 = smul.addr %s418, 8
      %s420 = scalar_lea.vmem %s2, %s419
      // Predicated region
      $region37: #{block_group_forward.19} parent=27 // pred_check
        %p421 = pneg %p108
      $region38: #{block_group_forward.19} parent=27 // pred_check_branch
        %423 = sbr.rel (%p421) target = $region40
      $region39: #{block_group_forward.19} parent=27 // pred_region
        %s424 = smul.u32 8, %s18
      $region40: #{block_group_forward.19} parent=27 // pred_fallthru
        _
    $region28: #{block_group_forward.19} parent=5 // pred_fallthru
      _
    %p425 = scmp.le.s32.totalorder 2, %s8
    // Predicated region
    $region41: #{block_group_forward.19} parent=5 // pred_check
      %p426 = pneg %p425
    $region42: #{block_group_forward.19} parent=5 // pred_check_branch
      %428 = sbr.rel (%p426) target = $region44
    $region43: #{block_group_forward.19} parent=5 // pred_region
      %s429 = ssub.s32 %s8, 2
      // Predicated region
      $region45: #{block_group_forward.19} parent=43 // pred_check
        %p430 = pneg %p114
      $region46: #{block_group_forward.19} parent=43 // pred_check_branch
        %432 = sbr.rel (%p430) target = $region48
      $region47: #{block_group_forward.19} parent=43 // pred_region
        %s433 = smul.u32 8, %s21
        %p434 = scmp.lt.s32.totalorder %s433, 15
        %s435 = scalar_select %p434, %s433, 15
        %p436 = scmp.lt.s32.totalorder %s22, 0
        %s437 = scalar_select %p436, %s22, 0
        %s438 = sadd.s32 %s437, %s435
        %s439 = smul.addr %s438, 8
        %s440 = scalar_lea.vmem %s2, %s439
      $region48: #{block_group_forward.19} parent=43 // pred_fallthru
        _
    $region44: #{block_group_forward.19} parent=5 // pred_fallthru
      _
  $region6: #{block_group_forward.19} parent=0 // loop_footer
    %s12 = sadd.s32 1, %s8
  $region7: #{block_group_forward.19} parent=0 // loop_footer_branch
    %7 = sbr.rel target = $region3
  $region8: #{block_group_forward.19} parent=0 // loop_exit
    _

// kernel: block_group_forward.27
$region0: #{block_group_forward.27}
  #allocation0 [shape = 'u32[]', space=smem, size = 0x4, offset = 0x4, fixed_abs, tag = 'smem constant byte address 0x4 - core index']
  #allocation1 [shape = 'u32[144,128]{1,0:T(1,128)}', space=vmem, size = 0x12000, scoped, tag = 'internal scratch']
  %s0 = inlined_call_operand.vmem [shape: f32[128,128], index: 0, kind: input, shape index: {}]
  %s1 = inlined_call_operand.vmem [shape: f32[1,128], index: 1, kind: input, shape index: {}]
  %s2 = inlined_call_operand.vmem [shape: f32[1,128], index: 2, kind: input, shape index: {}]
  %s3 = inlined_call_operand.vmem [shape: f32[1,128], index: 3, kind: input, shape index: {}]
  %s4 = inlined_call_operand.vmem [shape: f32[1,128], index: 4, kind: input, shape index: {}]
  %s5 = inlined_call_operand.vmem [shape: f32[128,128], index: 5, kind: input, shape index: {}]
  %s6 = inlined_call_operand.hbm [shape: f32[128,128], index: 6, kind: output, shape index: {}]
  %s7 = sld [smem:[#allocation0]]
  $region57: #{block_group_forward.27} parent=0
    _
  %s9 = ssub.s32 1, %s7
  %s10 = scalar_select 0, %s9, %s7
  $region1: #{block_group_forward.27} parent=0
    #allocation2 [shape = 'u8[65536]{0}', space=vmem, size = 0x10000, scoped, tag = 'output window, operand 0']
    #allocation3 [shape = 's32[2]{0}', space=sflag, size = 0x8, scoped, tag = 'scoped memory for block_group_forward.27']
    %11 = vsyncpa [#allocation3], 0
    %s12 = scalar_lea.sflag [#allocation3], 1
    %13 = vsyncpa %s12, 0
    loop: start=0, step=1, limit=4
    $region2: #{block_group_forward.27} parent=1 // loop_pre_header
      _
    $region3: #{block_group_forward.27} parent=1 // loop_header
      %s15 = sphi 0, %s19
      %p16 = scmp.ge.s32.totalorder %s15, 4
      %s25 = sphi 0, %s27
      %s28 = sphi 0, %s25
      %s29 = sphi 0, %s28
      %s45 = sphi 0, %s29
      %s49 = sphi 0, %s49
      %s51 = sphi 0, %s49
      %s52 = sphi 0, %s51
      %s66 = sphi 0, %s52
      %s70 = sphi 0, %s70
      %s72 = sphi 0, %s70
      %s73 = sphi 0, %s72
      %s87 = sphi 0, %s73
      %s91 = sphi 0, %s91
      %s93 = sphi 0, %s91
      %s94 = sphi 0, %s93
      %s108 = sphi 0, %s94
      %s112 = sphi 0, %s112
      %s114 = sphi 0, %s112
      %s115 = sphi 0, %s114
      %s129 = sphi 0, %s115
      %s135 = sphi 0, %s137
      %s138 = sphi 0, %s135
      %s139 = sphi 0, %s138
      %s155 = sphi 0, %s139
      %s161 = sphi 0, %s163
      %s164 = sphi 0, %s161
      %s165 = sphi 0, %s164
      %s181 = sphi 0, %s165
    $region4: #{block_group_forward.27} parent=1 // loop_header_branch
      %18 = sbr.rel (%p16) target = $region8
    $region5: #{block_group_forward.27} parent=1 // loop_body
      %s20 = ssub.s32 %s15, 1
      %s21 = ssub.s32 %s15, 2
      %s22 = sadd.s32 %s15, 1
      %s23 = ssub.s32 %s15, %s22
      %p24 = scmp.eq.s32.totalorder %s23, 0
      %s26 = sadd.s32 %s25, 1
      %s27 = scalar_select %p24, %s25, %s26
      %p30 = pneg %p24
      %p31 = scmp.eq.s32.totalorder %s15, 1
      %p32 = por %p30, %p31
      %p33 = scmp.ne.s32.totalorder %s25, %s28
      %p34 = scmp.eq.s32.totalorder %s15, 0
      %p35 = por %p33, %p34
      %p36 = scmp.ne.s32.totalorder %s25, %s28
      %p37 = scmp.eq.s32.totalorder %s20, 1
      %p38 = por %p36, %p37
      %p39 = scmp.ne.s32.totalorder %s28, %s29
      %p40 = scmp.eq.s32.totalorder %s20, 0
      %p41 = por %p39, %p40
      %p42 = scmp.ne.s32.totalorder %s28, %s29
      %p43 = scmp.eq.s32.totalorder %s21, 1
      %p44 = por %p42, %p43
      %p46 = scmp.ne.s32.totalorder %s29, %s45
      %p47 = scmp.eq.s32.totalorder %s21, 0
      %p48 = por %p46, %p47
      %s50 = sadd.s32 %s49, 1
      %p53 = scmp.eq.s32.totalorder %s15, 1
      %p54 = scmp.ne.s32.totalorder %s49, %s51
      %p55 = scmp.eq.s32.totalorder %s15, 0
      %p56 = por %p54, %p55
      %p57 = scmp.ne.s32.totalorder %s49, %s51
      %p58 = scmp.eq.s32.totalorder %s20, 1
      %p59 = por %p57, %p58
      %p60 = scmp.ne.s32.totalorder %s51, %s52
      %p61 = scmp.eq.s32.totalorder %s20, 0
      %p62 = por %p60, %p61
      %p63 = scmp.ne.s32.totalorder %s51, %s52
      %p64 = scmp.eq.s32.totalorder %s21, 1
      %p65 = por %p63, %p64
      %p67 = scmp.ne.s32.totalorder %s52, %s66
      %p68 = scmp.eq.s32.totalorder %s21, 0
      %p69 = por %p67, %p68
      %s71 = sadd.s32 %s70, 1
      %p74 = scmp.eq.s32.totalorder %s15, 1
      %p75 = scmp.ne.s32.totalorder %s70, %s72
      %p76 = scmp.eq.s32.totalorder %s15, 0
      %p77 = por %p75, %p76
      %p78 = scmp.ne.s32.totalorder %s70, %s72
      %p79 = scmp.eq.s32.totalorder %s20, 1
      %p80 = por %p78, %p79
      %p81 = scmp.ne.s32.totalorder %s72, %s73
      %p82 = scmp.eq.s32.totalorder %s20, 0
      %p83 = por %p81, %p82
      %p84 = scmp.ne.s32.totalorder %s72, %s73
      %p85 = scmp.eq.s32.totalorder %s21, 1
      %p86 = por %p84, %p85
      %p88 = scmp.ne.s32.totalorder %s73, %s87
      %p89 = scmp.eq.s32.totalorder %s21, 0
      %p90 = por %p88, %p89
      %s92 = sadd.s32 %s91, 1
      %p95 = scmp.eq.s32.totalorder %s15, 1
      %p96 = scmp.ne.s32.totalorder %s91, %s93
      %p97 = scmp.eq.s32.totalorder %s15, 0
      %p98 = por %p96, %p97
      %p99 = scmp.ne.s32.totalorder %s91, %s93
      %p100 = scmp.eq.s32.totalorder %s20, 1
      %p101 = por %p99, %p100
      %p102 = scmp.ne.s32.totalorder %s93, %s94
      %p103 = scmp.eq.s32.totalorder %s20, 0
      %p104 = por %p102, %p103
      %p105 = scmp.ne.s32.totalorder %s93, %s94
      %p106 = scmp.eq.s32.totalorder %s21, 1
      %p107 = por %p105, %p106
      %p109 = scmp.ne.s32.totalorder %s94, %s108
      %p110 = scmp.eq.s32.totalorder %s21, 0
      %p111 = por %p109, %p110
      %s113 = sadd.s32 %s112, 1
      %p116 = scmp.eq.s32.totalorder %s15, 1
      %p117 = scmp.ne.s32.totalorder %s112, %s114
      %p118 = scmp.eq.s32.totalorder %s15, 0
      %p119 = por %p117, %p118
      %p120 = scmp.ne.s32.totalorder %s112, %s114
      %p121 = scmp.eq.s32.totalorder %s20, 1
      %p122 = por %p120, %p121
      %p123 = scmp.ne.s32.totalorder %s114, %s115
      %p124 = scmp.eq.s32.totalorder %s20, 0
      %p125 = por %p123, %p124
      %p126 = scmp.ne.s32.totalorder %s114, %s115
      %p127 = scmp.eq.s32.totalorder %s21, 1
      %p128 = por %p126, %p127
      %p130 = scmp.ne.s32.totalorder %s115, %s129
      %p131 = scmp.eq.s32.totalorder %s21, 0
      %p132 = por %p130, %p131
      %s133 = ssub.s32 %s15, %s22
      %p134 = scmp.eq.s32.totalorder %s133, 0
      %s136 = sadd.s32 %s135, 1
      %s137 = scalar_select %p134, %s135, %s136
      %p140 = pneg %p134
      %p141 = scmp.eq.s32.totalorder %s15, 1
      %p142 = por %p140, %p141
      %p143 = scmp.ne.s32.totalorder %s135, %s138
      %p144 = scmp.eq.s32.totalorder %s15, 0
      %p145 = por %p143, %p144
      %p146 = scmp.ne.s32.totalorder %s135, %s138
      %p147 = scmp.eq.s32.totalorder %s20, 1
      %p148 = por %p146, %p147
      %p149 = scmp.ne.s32.totalorder %s138, %s139
      %p150 = scmp.eq.s32.totalorder %s20, 0
      %p151 = por %p149, %p150
      %p152 = scmp.ne.s32.totalorder %s138, %s139
      %p153 = scmp.eq.s32.totalorder %s21, 1
      %p154 = por %p152, %p153
      %p156 = scmp.ne.s32.totalorder %s139, %s155
      %p157 = scmp.eq.s32.totalorder %s21, 0
      %p158 = por %p156, %p157
      %s159 = ssub.s32 %s15, %s22
      %p160 = scmp.eq.s32.totalorder %s159, 0
      %s162 = sadd.s32 %s161, 1
      %s163 = scalar_select %p160, %s161, %s162
      %p166 = pneg %p160
      %p167 = scmp.eq.s32.totalorder %s15, 1
      %p168 = por %p166, %p167
      %p169 = scmp.ne.s32.totalorder %s161, %s164
      %p170 = scmp.eq.s32.totalorder %s15, 0
      %p171 = por %p169, %p170
      %p172 = scmp.ne.s32.totalorder %s161, %s164
      %p173 = scmp.eq.s32.totalorder %s20, 1
      %p174 = por %p172, %p173
      %p175 = scmp.ne.s32.totalorder %s164, %s165
      %p176 = scmp.eq.s32.totalorder %s20, 0
      %p177 = por %p175, %p176
      %p178 = scmp.ne.s32.totalorder %s164, %s165
      %p179 = scmp.eq.s32.totalorder %s21, 1
      %p180 = por %p178, %p179
      %p182 = scmp.ne.s32.totalorder %s165, %s181
      %p183 = scmp.eq.s32.totalorder %s21, 0
      %p184 = por %p182, %p183
      %p185 = scmp.le.s32.totalorder 1, %s15
      %p186 = scmp.lt.s32.totalorder %s15, 3
      %p187 = pnand %p185, %p186
      %p188 = pneg %p187
      // Predicated region
      $region9: #{block_group_forward.27} parent=5 // pred_check
        _
      $region10: #{block_group_forward.27} parent=5 // pred_check_branch
        %190 = sbr.rel (%p187) target = $region12
      $region11: #{block_group_forward.27} parent=5 // pred_region
        %s191 = ssub.s32 %s15, 1
        // Predicated region
        $region13: #{block_group_forward.27} parent=11 // pred_check
          %p192 = pneg %p62
        $region14: #{block_group_forward.27} parent=11 // pred_check_branch
          %194 = sbr.rel (%p192) target = $region16
        $region15: #{block_group_forward.27} parent=11 // pred_region
          _
        $region16: #{block_group_forward.27} parent=11 // pred_fallthru
          _
        // Predicated region
        $region17: #{block_group_forward.27} parent=11 // pred_check
          %p195 = pneg %p83
        $region18: #{block_group_forward.27} parent=11 // pred_check_branch
          %197 = sbr.rel (%p195) target = $region20
        $region19: #{block_group_forward.27} parent=11 // pred_region
          _
        $region20: #{block_group_forward.27} parent=11 // pred_fallthru
          _
        // Predicated region
        $region21: #{block_group_forward.27} parent=11 // pred_check
          %p198 = pneg %p104
        $region22: #{block_group_forward.27} parent=11 // pred_check_branch
          %200 = sbr.rel (%p198) target = $region24
        $region23: #{block_group_forward.27} parent=11 // pred_region
          _
        $region24: #{block_group_forward.27} parent=11 // pred_fallthru
          _
        // Predicated region
        $region25: #{block_group_forward.27} parent=11 // pred_check
          %p201 = pneg %p125
        $region26: #{block_group_forward.27} parent=11 // pred_check_branch
          %203 = sbr.rel (%p201) target = $region28
        $region27: #{block_group_forward.27} parent=11 // pred_region
          _
        $region28: #{block_group_forward.27} parent=11 // pred_fallthru
          _
      $region12: #{block_group_forward.27} parent=5 // pred_fallthru
        _
      %p204 = scmp.lt.s32.totalorder %s15, 2
      // Predicated region
      $region29: #{block_group_forward.27} parent=5 // pred_check
        %p205 = pneg %p204
      $region30: #{block_group_forward.27} parent=5 // pred_check_branch
        %207 = sbr.rel (%p205) target = $region32
      $region31: #{block_group_forward.27} parent=5 // pred_region
        // Predicated region
        $region33: #{block_group_forward.27} parent=31 // pred_check
          %p208 = pneg %p35
        $region34: #{block_group_forward.27} parent=31 // pred_check_branch
          %210 = sbr.rel (%p208) target = $region36
        $region35: #{block_group_forward.27} parent=31 // pred_region
          %s211 = smul.u32 8, %s15
          %p212 = scmp.lt.s32.totalorder %s211, 15
          %s213 = scalar_select %p212, %s211, 15
          %s214 = smul.addr %s213, 8
          %s215 = scalar_lea.vmem %s0, %s214
          %s216 = smul.u32 8, %s15
        $region36: #{block_group_forward.27} parent=31 // pred_fallthru
          _
        // Predicated region
        $region37: #{block_group_forward.27} parent=31 // pred_check
          %p217 = pneg %p145
        $region38: #{block_group_forward.27} parent=31 // pred_check_branch
          %219 = sbr.rel (%p217) target = $region40
        $region39: #{block_group_forward.27} parent=31 // pred_region
          %s220 = smul.u32 8, %s15
          %p221 = scmp.lt.s32.totalorder %s220, 15
          %s222 = scalar_select %p221, %s220, 15
          %s223 = smul.addr %s222, 8
          %s224 = scalar_lea.vmem %s5, %s223
          %s225 = smul.u32 8, %s15
        $region40: #{block_group_forward.27} parent=31 // pred_fallthru
          _
      $region32: #{block_group_forward.27} parent=5 // pred_fallthru
        _
      %p226 = scmp.le.s32.totalorder 1, %s15
      %p227 = scmp.lt.s32.totalorder %s15, 3
      %p228 = pnand %p226, %p227
      %p229 = pneg %p228
      // Predicated region
      $region41: #{block_group_forward.27} parent=5 // pred_check
        _
      $region42: #{block_group_forward.27} parent=5 // pred_check_branch
        %231 = sbr.rel (%p228) target = $region44
      $region43: #{block_group_forward.27} parent=5 // pred_region
        %s232 = ssub.s32 %s15, 1
        %s233 = smul.u32 8, %s20
        %p234 = scmp.lt.s32.totalorder %s233, 15
        %s235 = scalar_select %p234, %s233, 15
        %s236 = smul.addr %s235, 8
        %s237 = scalar_lea.vmem %s0, %s236
        %p238 = pneg %p41
        %p239 = pneg %p38
        %p240 = pneg %p62
        %p241 = pneg %p59
        %p242 = pneg %p83
        %p243 = pneg %p80
        %p244 = pneg %p104
        %p245 = pneg %p101
        %p246 = pneg %p125
        %p247 = pneg %p122
        %s248 = smul.u32 8, %s20
        %p249 = scmp.lt.s32.totalorder %s248, 15
        %s250 = scalar_select %p249, %s248, 15
        %s251 = smul.addr %s250, 8
        %s252 = scalar_lea.vmem %s5, %s251
        %p253 = pneg %p151
        %p254 = pneg %p148
        %p255 = pneg %p177
        %p256 = pneg %p174
        %s257 = sand.u32 %s164, 1
        %s258 = scalar_lea.sflag [#allocation3], %s257
        %s259 = sand.u32 %s164, 1
        %s260 = smul.addr %s259, 64
        %s261 = scalar_lea.vmem [#allocation2], %s260
        %s262 = smul.u32 8, %s20
        %p263 = scmp.lt.s32.totalorder %s262, 15
        %s264 = scalar_select %p263, %s262, 15
        %s265 = smul.addr %s264, 8
        %s266 = scalar_lea.vmem %s0, %s265
        %s267 = smul.u32 8, %s20
        %s268 = smul.u32 8, %s20
        %p269 = scmp.lt.s32.totalorder %s268, 15
        %s270 = scalar_select %p269, %s268, 15
        %s271 = smul.addr %s270, 8
        %s272 = scalar_lea.vmem %s5, %s271
        %s273 = smul.u32 8, %s20
        %s274 = smul.u32 8, %s20
        %v275 = vld [vmem:[%s266] sm:$0xff]
        %v276 = vld [vmem:[%s266 + $0x8] sm:$0xff]
        %v277 = vld [vmem:[%s266 + $0x10] sm:$0xff]
        %v278 = vld [vmem:[%s266 + $0x18] sm:$0xff]
        %v279 = vld [vmem:[%s266 + $0x20] sm:$0xff]
        %v280 = vld [vmem:[%s266 + $0x28] sm:$0xff]
        %v281 = vld [vmem:[%s266 + $0x30] sm:$0xff]
        %v282 = vld [vmem:[%s266 + $0x38] sm:$0xff]
        %v283 = vld [vmem:[%s1] sm:$0x1]
        %v284 = vld [vmem:[%s2] sm:$0x1]
        %v285 = vld [vmem:[%s3] sm:$0x1]
        %v286 = vld [vmem:[%s4] sm:$0x1]
        %v287 = vmul.f32 %v283, 0.0078125
        %v288 = vmul.f32 %v287, 128.0
        %v289 = vmul.f32 %v288, %v287
        %v290 = vsub.f32 %v284, %v289
        %v291 = vmul.f32 %v290, 0.007874016
        %v292 = vmax.f32 %v291, 0.0
        %v294 = vlaneseq
        %v295 = vshrl.u32 %v294, 7
        %v296 = vsub.s32 0, %v295
        %v297 = vrot.slane %v287, %v296
        %v299 = vsub.f32 %v275, %v297
        %v300 = vsub.f32 %v276, %v297
        %v301 = vsub.f32 %v277, %v297
        %v302 = vsub.f32 %v278, %v297
        %v303 = vsub.f32 %v279, %v297
        %v304 = vsub.f32 %v280, %v297
        %v305 = vsub.f32 %v281, %v297
        %v306 = vsub.f32 %v282, %v297
        %v307 = vadd.f32 %v292, 1e-05
        %v308 = vrsqrt.pop %v307
        %v310 = vlaneseq
        %v311 = vshrl.u32 %v310, 7
        %v312 = vsub.s32 0, %v311
        %v313 = vrot.slane %v308, %v312
        %v315 = vmul.f32 %v299, %v313
        %v316 = vmul.f32 %v300, %v313
        %v317 = vmul.f32 %v301, %v313
        %v318 = vmul.f32 %v302, %v313
        %v319 = vmul.f32 %v303, %v313
        %v320 = vmul.f32 %v304, %v313
        %v321 = vmul.f32 %v305, %v313
        %v322 = vmul.f32 %v306, %v313
        %v324 = vlaneseq
        %v325 = vshrl.u32 %v324, 7
        %v326 = vsub.s32 0, %v325
        %v327 = vrot.slane %v285, %v326
        %v329 = vmul.f32 %v315, %v327
        %v330 = vmul.f32 %v316, %v327
        %v331 = vmul.f32 %v317, %v327
        %v332 = vmul.f32 %v318, %v327
        %v333 = vmul.f32 %v319, %v327
        %v334 = vmul.f32 %v320, %v327
        %v335 = vmul.f32 %v321, %v327
        %v336 = vmul.f32 %v322, %v327
        %v338 = vlaneseq
        %v339 = vshrl.u32 %v338, 7
        %v340 = vsub.s32 0, %v339
        %v341 = vrot.slane %v286, %v340
        %v343 = vadd.f32 %v329, %v341
        %v344 = vadd.f32 %v330, %v341
        %v345 = vadd.f32 %v331, %v341
        %v346 = vadd.f32 %v332, %v341
        %v347 = vadd.f32 %v333, %v341
        %v348 = vadd.f32 %v334, %v341
        %v349 = vadd.f32 %v335, %v341
        %v350 = vadd.f32 %v336, %v341
        %v351 = vld [vmem:[%s272] sm:$0xff]
        %v352 = vld [vmem:[%s272 + $0x8] sm:$0xff]
        %v353 = vld [vmem:[%s272 + $0x10] sm:$0xff]
        %v354 = vld [vmem:[%s272 + $0x18] sm:$0xff]
        %v355 = vld [vmem:[%s272 + $0x20] sm:$0xff]
        %v356 = vld [vmem:[%s272 + $0x28] sm:$0xff]
        %v357 = vld [vmem:[%s272 + $0x30] sm:$0xff]
        %v358 = vld [vmem:[%s272 + $0x38] sm:$0xff]
        %v359 = vadd.f32 %v343, %v351
        %v360 = vadd.f32 %v344, %v352
        %v361 = vadd.f32 %v345, %v353
        %v362 = vadd.f32 %v346, %v354
        %v363 = vadd.f32 %v347, %v355
        %v364 = vadd.f32 %v348, %v356
        %v365 = vadd.f32 %v349, %v357
        %v366 = vadd.f32 %v350, %v358
        %v367 = vmax.f32 %v359, 0.0
        %v368 = vmax.f32 %v360, 0.0
        %v369 = vmax.f32 %v361, 0.0
        %v370 = vmax.f32 %v362, 0.0
        %v371 = vmax.f32 %v363, 0.0
        %v372 = vmax.f32 %v364, 0.0
        %v373 = vmax.f32 %v365, 0.0
        %v374 = vmax.f32 %v366, 0.0
        %375 = vst [vmem:[%s261] sm:$0xff] %v367
        %376 = vst [vmem:[%s261 + $0x8] sm:$0xff] %v368
        %377 = vst [vmem:[%s261 + $0x10] sm:$0xff] %v369
        %378 = vst [vmem:[%s261 + $0x18] sm:$0xff] %v370
        %379 = vst [vmem:[%s261 + $0x20] sm:$0xff] %v371
        %380 = vst [vmem:[%s261 + $0x28] sm:$0xff] %v372
        %381 = vst [vmem:[%s261 + $0x30] sm:$0xff] %v373
        %382 = vst [vmem:[%s261 + $0x38] sm:$0xff] %v374
        %s383 = sand.u32 %s164, 1
        %s384 = scalar_lea.sflag [#allocation3], %s383
        %s385 = sand.u32 %s164, 1
        %s386 = smul.addr %s385, 64
        %s387 = scalar_lea.vmem [#allocation2], %s386
        // Predicated region
        $region45: #{block_group_forward.27} parent=43 // pred_check
          %p388 = pneg %p174
        $region46: #{block_group_forward.27} parent=43 // pred_check_branch
          %390 = sbr.rel (%p388) target = $region48
        $region47: #{block_group_forward.27} parent=43 // pred_region
          %s391 = smul.u32 8, %s20
          %s393 = ssub.s32 1024, 1024
          %394 = vsyncadd %s384, %s393
          %s395 = smul.addr %s391, 128
          %s396 = scalar_lea.hbm %s6, %s395
          %s397 = sshll.u32 %s387, 4
          %s398 = int_to_ptr.vmem [resolvable:$true] %s397
          %403 = dma.vmem_to_hbm [thread:$0]  %s398, 1024, %s396, %s384, 128, 128, 8
        $region48: #{block_group_forward.27} parent=43 // pred_fallthru
          _
      $region44: #{block_group_forward.27} parent=5 // pred_fallthru
        _
      %p404 = scmp.le.s32.totalorder 2, %s15
      // Predicated region
      $region49: #{block_group_forward.27} parent=5 // pred_check
        %p405 = pneg %p404
      $region50: #{block_group_forward.27} parent=5 // pred_check_branch
        %407 = sbr.rel (%p405) target = $region52
      $region51: #{block_group_forward.27} parent=5 // pred_region
        %s408 = ssub.s32 %s15, 2
        // Predicated region
        $region53: #{block_group_forward.27} parent=51 // pred_check
          %p409 = pneg %p180
        $region54: #{block_group_forward.27} parent=51 // pred_check_branch
          %411 = sbr.rel (%p409) target = $region56
        $region55: #{block_group_forward.27} parent=51 // pred_region
          %s412 = sand.u32 %s165, 1
          %s413 = scalar_lea.sflag [#allocation3], %s412
          %s414 = sand.u32 %s165, 1
          %s415 = smul.addr %s414, 64
          %s416 = scalar_lea.vmem [#allocation2], %s415
          %417 = dma.done %s413, 1024
        $region56: #{block_group_forward.27} parent=51 // pred_fallthru
          _
      $region52: #{block_group_forward.27} parent=5 // pred_fallthru
        _
    $region6: #{block_group_forward.27} parent=1 // loop_footer
      %s19 = sadd.s32 1, %s15
    $region7: #{block_group_forward.27} parent=1 // loop_footer_branch
      %14 = sbr.rel target = $region3
    $region8: #{block_group_forward.27} parent=1 // loop_exit
      _
    %418 = vsyncpa [#allocation3], 1
    %s419 = scalar_lea.sflag [#allocation3], 1
    %420 = vsyncpa %s419, 1

// kernel: block_group_forward.17
$region0: #{block_group_forward.17}
  #allocation0 [shape = 'u32[]', space=smem, size = 0x4, offset = 0x4, fixed_abs, tag = 'smem constant byte address 0x4 - core index']
  #allocation1 [shape = 'u32[144,128]{1,0:T(1,128)}', space=vmem, size = 0x12000, scoped, tag = 'internal scratch']
  #allocation2 [shape = 'f32[64,128]{1,0:T(8,128)}', space=vmem, size = 0x8000, scoped, tag = 'scratch operand']
  %s0 = inlined_call_operand.vmem [shape: bf16[9,128,128], index: 0, kind: input, shape index: {}]
  %s1 = inlined_call_operand.vmem [shape: bf16[9,128,128], index: 1, kind: input, shape index: {}]
  %s2 = inlined_call_operand.vmem [shape: f32[128,128], index: 2, kind: output, shape index: {}]
  %s3 = sld [smem:[#allocation0]]
  $region49: #{block_group_forward.17} parent=0
    _
  %s5 = ssub.s32 1, %s3
  %s6 = scalar_select 0, %s5, %s3
  loop: start=0, step=1, limit=20
  $region2: #{block_group_forward.17} parent=0 // loop_pre_header
    _
  $region3: #{block_group_forward.17} parent=0 // loop_header
    %s8 = sphi 0, %s12
    %p9 = scmp.ge.s32.totalorder %s8, 20
    %s15 = sphi 0, %s34
    %s16 = sphi 0, %s30
    %s17 = sphi 0, %s26
    %s18 = sphi 0, %s15
    %s19 = sphi 0, %s16
    %s20 = sphi 0, %s17
    %s21 = sphi 0, %s18
    %s22 = sphi 0, %s19
    %s23 = sphi 0, %s20
    %s39 = sphi 0, %s41
    %s42 = sphi 0, %s39
    %s43 = sphi 0, %s42
    %s59 = sphi 0, %s43
    %s67 = sphi 0, %s69
    %s70 = sphi 0, %s67
    %s71 = sphi 0, %s70
    %s87 = sphi 0, %s71
    %s95 = sphi 0, %s97
    %s98 = sphi 0, %s95
    %s99 = sphi 0, %s98
    %s115 = sphi 0, %s99
  $region4: #{block_group_forward.17} parent=0 // loop_header_branch
    %11 = sbr.rel (%p9) target = $region8
  $region5: #{block_group_forward.17} parent=0 // loop_body
    %s13 = ssub.s32 %s8, 1
    %s14 = ssub.s32 %s8, 2
    %s24 = sadd.s32 1, %s17
    %p25 = scmp.ge.s32.totalorder %s24, 9
    %s26 = scalar_select %p25, 0, %s24
    %s27 = sadd.s32 1, %s16
    %s28 = scalar_select %p25, %s27, %s16
    %p29 = scmp.ge.s32.totalorder %s28, 1
    %s30 = scalar_select %p29, 0, %s28
    %s31 = sadd.s32 1, %s15
    %s32 = scalar_select %p29, %s31, %s15
    %p33 = scmp.ge.s32.totalorder %s32, 2
    %s34 = scalar_select %p33, 0, %s32
    %s35 = ssub.s32 %s17, %s26
    %s36 = ssub.s32 %s15, %s34
    %s37 = sor.u32 %s35, %s36
    %p38 = scmp.eq.s32.totalorder %s37, 0
    %s40 = sadd.s32 %s39, 1
    %s41 = scalar_select %p38, %s39, %s40
    %p44 = pneg %p38
    %p45 = scmp.eq.s32.totalorder %s8, 17
    %p46 = por %p44, %p45
    %p47 = scmp.ne.s32.totalorder %s39, %s42
    %p48 = scmp.eq.s32.totalorder %s8, 0
    %p49 = por %p47, %p48
    %p50 = scmp.ne.s32.totalorder %s39, %s42
    %p51 = scmp.eq.s32.totalorder %s13, 17
    %p52 = por %p50, %p51
    %p53 = scmp.ne.s32.totalorder %s42, %s43
    %p54 = scmp.eq.s32.totalorder %s13, 0
    %p55 = por %p53, %p54
    %p56 = scmp.ne.s32.totalorder %s42, %s43
    %p57 = scmp.eq.s32.totalorder %s14, 17
    %p58 = por %p56, %p57
    %p60 = scmp.ne.s32.totalorder %s43, %s59
    %p61 = scmp.eq.s32.totalorder %s14, 0
    %p62 = por %p60, %p61
    %s63 = ssub.s32 %s17, %s26
    %s64 = ssub.s32 %s16, %s30
    %s65 = sor.u32 %s63, %s64
    %p66 = scmp.eq.s32.totalorder %s65, 0
    %s68 = sadd.s32 %s67, 1
    %s69 = scalar_select %p66, %s67, %s68
    %p72 = pneg %p66
    %p73 = scmp.eq.s32.totalorder %s8, 17
    %p74 = por %p72, %p73
    %p75 = scmp.ne.s32.totalorder %s67, %s70
    %p76 = scmp.eq.s32.totalorder %s8, 0
    %p77 = por %p75, %p76
    %p78 = scmp.ne.s32.totalorder %s67, %s70
    %p79 = scmp.eq.s32.totalorder %s13, 17
    %p80 = por %p78, %p79
    %p81 = scmp.ne.s32.totalorder %s70, %s71
    %p82 = scmp.eq.s32.totalorder %s13, 0
    %p83 = por %p81, %p82
    %p84 = scmp.ne.s32.totalorder %s70, %s71
    %p85 = scmp.eq.s32.totalorder %s14, 17
    %p86 = por %p84, %p85
    %p88 = scmp.ne.s32.totalorder %s71, %s87
    %p89 = scmp.eq.s32.totalorder %s14, 0
    %p90 = por %p88, %p89
    %s91 = ssub.s32 %s15, %s34
    %s92 = ssub.s32 %s16, %s30
    %s93 = sor.u32 %s91, %s92
    %p94 = scmp.eq.s32.totalorder %s93, 0
    %s96 = sadd.s32 %s95, 1
    %s97 = scalar_select %p94, %s95, %s96
    %p100 = pneg %p94
    %p101 = scmp.eq.s32.totalorder %s8, 17
    %p102 = por %p100, %p101
    %p103 = scmp.ne.s32.totalorder %s95, %s98
    %p104 = scmp.eq.s32.totalorder %s8, 0
    %p105 = por %p103, %p104
    %p106 = scmp.ne.s32.totalorder %s95, %s98
    %p107 = scmp.eq.s32.totalorder %s13, 17
    %p108 = por %p106, %p107
    %p109 = scmp.ne.s32.totalorder %s98, %s99
    %p110 = scmp.eq.s32.totalorder %s13, 0
    %p111 = por %p109, %p110
    %p112 = scmp.ne.s32.totalorder %s98, %s99
    %p113 = scmp.eq.s32.totalorder %s14, 17
    %p114 = por %p112, %p113
    %p116 = scmp.ne.s32.totalorder %s99, %s115
    %p117 = scmp.eq.s32.totalorder %s14, 0
    %p118 = por %p116, %p117
    %p119 = scmp.le.s32.totalorder 1, %s8
    %p120 = scmp.lt.s32.totalorder %s8, 19
    %p121 = pnand %p119, %p120
    %p122 = pneg %p121
    // Predicated region
    $region9: #{block_group_forward.17} parent=5 // pred_check
      _
    $region10: #{block_group_forward.17} parent=5 // pred_check_branch
      %124 = sbr.rel (%p121) target = $region12
    $region11: #{block_group_forward.17} parent=5 // pred_region
      %s125 = ssub.s32 %s8, 1
    $region12: #{block_group_forward.17} parent=5 // pred_fallthru
      _
    %p126 = scmp.lt.s32.totalorder %s8, 18
    // Predicated region
    $region13: #{block_group_forward.17} parent=5 // pred_check
      %p127 = pneg %p126
    $region14: #{block_group_forward.17} parent=5 // pred_check_branch
      %129 = sbr.rel (%p127) target = $region16
    $region15: #{block_group_forward.17} parent=5 // pred_region
      // Predicated region
      $region17: #{block_group_forward.17} parent=15 // pred_check
        %p130 = pneg %p49
      $region18: #{block_group_forward.17} parent=15 // pred_check_branch
        %132 = sbr.rel (%p130) target = $region20
      $region19: #{block_group_forward.17} parent=15 // pred_region
        %s133 = smul.u32 8, %s15
        %p134 = scmp.lt.s32.totalorder %s17, 8
        %s135 = scalar_select %p134, %s17, 8
        %p136 = scmp.lt.s32.totalorder %s133, 15
        %s137 = scalar_select %p136, %s133, 15
        %s138 = smul.addr %s135, 16
        %s139 = sadd.s32 %s137, %s138
        %s140 = smul.addr %s139, 4
        %s141 = scalar_lea.vmem %s0, %s140
        %s142 = smul.u32 8, %s15
      $region20: #{block_group_forward.17} parent=15 // pred_fallthru
        _
      // Predicated region
      $region21: #{block_group_forward.17} parent=15 // pred_check
        %p143 = pneg %p77
      $region22: #{block_group_forward.17} parent=15 // pred_check_branch
        %145 = sbr.rel (%p143) target = $region24
      $region23: #{block_group_forward.17} parent=15 // pred_region
        %p146 = scmp.lt.s32.totalorder %s17, 8
        %s147 = scalar_select %p146, %s17, 8
        %p148 = scmp.lt.s32.totalorder %s16, 0
        %s149 = scalar_select %p148, %s16, 0
        %s150 = smul.addr %s147, 16
        %s151 = sadd.s32 %s149, %s150
        %s152 = smul.addr %s151, 4
        %s153 = scalar_lea.vmem %s1, %s152
      $region24: #{block_group_forward.17} parent=15 // pred_fallthru
        _
    $region16: #{block_group_forward.17} parent=5 // pred_fallthru
      _
    %p154 = scmp.le.s32.totalorder 1, %s8
    %p155 = scmp.lt.s32.totalorder %s8, 19
    %p156 = pnand %p154, %p155
    %p157 = pneg %p156
    // Predicated region
    $region25: #{block_group_forward.17} parent=5 // pred_check
      _
    $region26: #{block_group_forward.17} parent=5 // pred_check_branch
      %159 = sbr.rel (%p156) target = $region28
    $region27: #{block_group_forward.17} parent=5 // pred_region
      %s160 = ssub.s32 %s8, 1
      %s161 = smul.u32 8, %s18
      %p162 = scmp.lt.s32.totalorder %s20, 8
      %s163 = scalar_select %p162, %s20, 8
      %p164 = scmp.lt.s32.totalorder %s161, 15
      %s165 = scalar_select %p164, %s161, 15
      %s166 = smul.addr %s163, 16
      %s167 = sadd.s32 %s165, %s166
      %s168 = smul.addr %s167, 4
      %s169 = scalar_lea.vmem %s0, %s168
      %p170 = pneg %p55
      %p171 = pneg %p52
      %p172 = scmp.lt.s32.totalorder %s20, 8
      %s173 = scalar_select %p172, %s20, 8
      %p174 = scmp.lt.s32.totalorder %s19, 0
      %s175 = scalar_select %p174, %s19, 0
      %s176 = smul.addr %s173, 16
      %s177 = sadd.s32 %s175, %s176
      %s178 = smul.addr %s177, 4
      %s179 = scalar_lea.vmem %s1, %s178
      %p180 = pneg %p83
      %p181 = pneg %p80
      %p182 = pneg %p111
      %p183 = pneg %p108
      %s184 = smul.u32 8, %s18
      %p185 = scmp.lt.s32.totalorder %s184, 15
      %s186 = scalar_select %p185, %s184, 15
      %p187 = scmp.lt.s32.totalorder %s19, 0
      %s188 = scalar_select %p187, %s19, 0
      %s189 = sadd.s32 %s188, %s186
      %s190 = smul.addr %s189, 8
      %s191 = scalar_lea.vmem %s2, %s190
      %s192 = smul.u32 8, %s18
      %p193 = scmp.lt.s32.totalorder %s20, 8
      %s194 = scalar_select %p193, %s20, 8
      %p195 = scmp.lt.s32.totalorder %s192, 15
      %s196 = scalar_select %p195, %s192, 15
      %s197 = smul.addr %s194, 16
      %s198 = sadd.s32 %s196, %s197
      %s199 = smul.addr %s198, 4
      %s200 = scalar_lea.vmem %s0, %s199
      %s201 = smul.u32 8, %s18
      %p202 = scmp.lt.s32.totalorder %s20, 8
      %s203 = scalar_select %p202, %s20, 8
      %p204 = scmp.lt.s32.totalorder %s19, 0
      %s205 = scalar_select %p204, %s19, 0
      %s206 = smul.addr %s203, 16
      %s207 = sadd.s32 %s205, %s206
      %s208 = smul.addr %s207, 4
      %s209 = scalar_lea.vmem %s1, %s208
      %s210 = smul.u32 8, %s18
      %p211 = scmp.lt.s32.totalorder %s210, 15
      %s212 = scalar_select %p211, %s210, 15
      %p213 = scmp.lt.s32.totalorder %s19, 0
      %s214 = scalar_select %p213, %s19, 0
      %s215 = sadd.s32 %s214, %s212
      %s216 = smul.addr %s215, 8
      %s217 = scalar_lea.vmem %s2, %s216
      %s218 = smul.u32 8, %s18
      %p220 = scmp.eq.s32.totalorder %s20, 0
      // Predicated region
      $region29: #{block_group_forward.17} parent=27 // pred_check
        %p221 = pneg %p220
      $region30: #{block_group_forward.17} parent=27 // pred_check_branch
        %223 = sbr.rel (%p221) target = $region32
      $region31: #{block_group_forward.17} parent=27 // pred_region
        %224 = vst [vmem:[#allocation2] sm:$0xff] 0.0
        %225 = vst [vmem:[#allocation2 + $0x8] sm:$0xff] 0.0
        %226 = vst [vmem:[#allocation2 + $0x10] sm:$0xff] 0.0
        %227 = vst [vmem:[#allocation2 + $0x18] sm:$0xff] 0.0
        %228 = vst [vmem:[#allocation2 + $0x20] sm:$0xff] 0.0
        %229 = vst [vmem:[#allocation2 + $0x28] sm:$0xff] 0.0
        %230 = vst [vmem:[#allocation2 + $0x30] sm:$0xff] 0.0
        %231 = vst [vmem:[#allocation2 + $0x38] sm:$0xff] 0.0
      $region32: #{block_group_forward.17} parent=27 // pred_fallthru
        _
      %v232 = vld [vmem:[#allocation2] sm:$0xff]
      %v233 = vld [vmem:[#allocation2 + $0x8] sm:$0xff]
      %v234 = vld [vmem:[#allocation2 + $0x10] sm:$0xff]
      %v235 = vld [vmem:[#allocation2 + $0x18] sm:$0xff]
      %v236 = vld [vmem:[#allocation2 + $0x20] sm:$0xff]
      %v237 = vld [vmem:[#allocation2 + $0x28] sm:$0xff]
      %v238 = vld [vmem:[#allocation2 + $0x30] sm:$0xff]
      %v239 = vld [vmem:[#allocation2 + $0x38] sm:$0xff]
      %v240 = vld [vmem:[%s200] sm:$0xf]
      %v241 = vld [vmem:[%s200 + $0x4] sm:$0xf]
      %v242 = vld [vmem:[%s200 + $0x8] sm:$0xf]
      %v243 = vld [vmem:[%s200 + $0xc] sm:$0xf]
      %v244 = vld [vmem:[%s200 + $0x10] sm:$0xf]
      %v245 = vld [vmem:[%s200 + $0x14] sm:$0xf]
      %v246 = vld [vmem:[%s200 + $0x18] sm:$0xf]
      %v247 = vld [vmem:[%s200 + $0x1c] sm:$0xf]
      %v248 = vld [vmem:[%s209] sm:$0xf]
      %v249 = vld [vmem:[%s209 + $0x4] sm:$0xf]
      %v250 = vld [vmem:[%s209 + $0x8] sm:$0xf]
      %v251 = vld [vmem:[%s209 + $0xc] sm:$0xf]
      %v252 = vld [vmem:[%s209 + $0x10] sm:$0xf]
      %v253 = vld [vmem:[%s209 + $0x14] sm:$0xf]
      %v254 = vld [vmem:[%s209 + $0x18] sm:$0xf]
      %v255 = vld [vmem:[%s209 + $0x1c] sm:$0xf]
      %v256 = vld [vmem:[%s209 + $0x20] sm:$0xf]
      %v257 = vld [vmem:[%s209 + $0x24] sm:$0xf]
      %v258 = vld [vmem:[%s209 + $0x28] sm:$0xf]
      %v259 = vld [vmem:[%s209 + $0x2c] sm:$0xf]
      %v260 = vld [vmem:[%s209 + $0x30] sm:$0xf]
      %v261 = vld [vmem:[%s209 + $0x34] sm:$0xf]
      %v262 = vld [vmem:[%s209 + $0x38] sm:$0xf]
      %v263 = vld [vmem:[%s209 + $0x3c] sm:$0xf]
      %v272 = vunpack.c.l.b16 %v240
      %v273 = vunpack.c.l.b16 %v241
      %v274 = vunpack.c.l.b16 %v242
      %v275 = vunpack.c.l.b16 %v243
      %v276 = vunpack.c.l.b16 %v244
      %v277 = vunpack.c.l.b16 %v245
      %v278 = vunpack.c.l.b16 %v246
      %v279 = vunpack.c.l.b16 %v247
      %v280 = vpack.c.b16 %v273, %v272
      %v281 = vpack.c.b16 %v275, %v274
      %v282 = vpack.c.b16 %v277, %v276
      %v283 = vpack.c.b16 %v279, %v278
      %v304 = vunpack.c.l.b16 %v248
      %v305 = vunpack.c.l.b16 %v249
      %v306 = vunpack.c.l.b16 %v250
      %v307 = vunpack.c.l.b16 %v251
      %v308 = vunpack.c.l.b16 %v252
      %v309 = vunpack.c.l.b16 %v253
      %v310 = vunpack.c.l.b16 %v254
      %v311 = vunpack.c.l.b16 %v255
      %v312 = vunpack.c.l.b16 %v256
      %v313 = vunpack.c.l.b16 %v257
      %v314 = vunpack.c.l.b16 %v258
      %v315 = vunpack.c.l.b16 %v259
      %v316 = vunpack.c.l.b16 %v260
      %v317 = vunpack.c.l.b16 %v261
      %v318 = vunpack.c.l.b16 %v262
      %v319 = vunpack.c.l.b16 %v263
      %v320 = vpack.c.b16 %v305, %v304
      %v321 = vpack.c.b16 %v307, %v306
      %v322 = vpack.c.b16 %v309, %v308
      %v323 = vpack.c.b16 %v311, %v310
      %v324 = vpack.c.b16 %v313, %v312
      %v325 = vpack.c.b16 %v315, %v314
      %v326 = vpack.c.b16 %v317, %v316
      %v327 = vpack.c.b16 %v319, %v318
      %336 = vmatprep.subr.bf16.mxu0 0
      %337 = vmatpush1.bf16.msra.mxu0 %v327
      %338 = vmatprep.subr.bf16.mxu0 0
      %339 = vmatpush1.bf16.msra.mxu0 %v326
      %340 = vmatprep.subr.bf16.mxu0 0
      %341 = vmatpush1.bf16.msra.mxu0 %v325
      %342 = vmatprep.subr.bf16.mxu0 0
      %343 = vmatpush1.bf16.msra.mxu0 %v324
      %344 = vmatprep.subr.bf16.mxu0 0
      %345 = vmatpush1.bf16.msra.mxu0 %v323
      %346 = vmatprep.subr.bf16.mxu0 0
      %347 = vmatpush1.bf16.msra.mxu0 %v322
      %348 = vmatprep.subr.bf16.mxu0 0
      %349 = vmatpush1.bf16.msra.mxu0 %v321
      %350 = vmatprep.subr.bf16.mxu0 0
      %351 = vmatpush1.bf16.msra.mxu0 %v320
      %352 = vmatprep.subr.bf16.mxu0 0
      %353 = vmatpush2.bf16.msra.mxu0 0
      %354 = vmatprep.subr.bf16.mxu0 0
      %355 = vmatpush2.bf16.msra.mxu0 0
      %356 = vmatprep.subr.bf16.mxu0 0
      %357 = vmatpush2.bf16.msra.mxu0 0
      %358 = vmatprep.subr.bf16.mxu0 0
      %359 = vmatpush2.bf16.msra.mxu0 0
      %360 = vmatprep.subr.bf16.mxu0 0
      %361 = vmatpush2.bf16.msra.mxu0 0
      %362 = vmatprep.subr.bf16.mxu0 0
      %363 = vmatpush2.bf16.msra.mxu0 0
      %364 = vmatprep.subr.bf16.mxu0 0
      %365 = vmatpush2.bf16.msra.mxu0 0
      %366 = vmatprep.subr.bf16.mxu0 0
      %367 = vmatpush2.bf16.msra.mxu0 0
      %368 = vmatprep.mubr.bf16.mxu0 0
      %369 = vmatmul.mubr.bf16.gmra.mxu0 %v280
      %v370 = vpop.f32.mrf.mxu0
      %v371 = vadd.f32 0.0, %v370
      %v372 = vpop.f32.mrf.mxu0
      %v373 = vpop.f32.mrf.mxu0
      %v374 = vadd.f32 0.0, %v373
      %v375 = vpop.f32.mrf.mxu0
      %376 = vmatprep.mubr.bf16.mxu0 0
      %377 = vmatmul.mubr.bf16.gmra.mxu0 %v281
      %v378 = vpop.f32.mrf.mxu0
      %v379 = vadd.f32 0.0, %v378
      %v380 = vpop.f32.mrf.mxu0
      %v381 = vpop.f32.mrf.mxu0
      %v382 = vadd.f32 0.0, %v381
      %v383 = vpop.f32.mrf.mxu0
      %384 = vmatprep.mubr.bf16.mxu0 0
      %385 = vmatmul.mubr.bf16.gmra.mxu0 %v282
      %v386 = vpop.f32.mrf.mxu0
      %v387 = vadd.f32 0.0, %v386
      %v388 = vpop.f32.mrf.mxu0
      %v389 = vpop.f32.mrf.mxu0
      %v390 = vadd.f32 0.0, %v389
      %v391 = vpop.f32.mrf.mxu0
      %392 = vmatprep.mubr.bf16.mxu0 0
      %393 = vmatmul.mubr.bf16.gmra.mxu0 %v283
      %v394 = vpop.f32.mrf.mxu0
      %v395 = vadd.f32 0.0, %v394
      %v396 = vpop.f32.mrf.mxu0
      %v397 = vpop.f32.mrf.mxu0
      %v398 = vadd.f32 0.0, %v397
      %v399 = vpop.f32.mrf.mxu0
      %400 = vdwg.mxu0
      %v401 = vadd.f32 %v232, %v371
      %v402 = vadd.f32 %v233, %v374
      %v403 = vadd.f32 %v234, %v379
      %v404 = vadd.f32 %v235, %v382
      %v405 = vadd.f32 %v236, %v387
      %v406 = vadd.f32 %v237, %v390
      %v407 = vadd.f32 %v238, %v395
      %v408 = vadd.f32 %v239, %v398
      %409 = vst [vmem:[#allocation2] sm:$0xff] %v401
      %410 = vst [vmem:[#allocation2 + $0x8] sm:$0xff] %v402
      %411 = vst [vmem:[#allocation2 + $0x10] sm:$0xff] %v403
      %412 = vst [vmem:[#allocation2 + $0x18] sm:$0xff] %v404
      %413 = vst [vmem:[#allocation2 + $0x20] sm:$0xff] %v405
      %414 = vst [vmem:[#allocation2 + $0x28] sm:$0xff] %v406
      %415 = vst [vmem:[#allocation2 + $0x30] sm:$0xff] %v407
      %416 = vst [vmem:[#allocation2 + $0x38] sm:$0xff] %v408
      %p417 = scmp.eq.s32.totalorder %s20, 8
      // Predicated region
      $region33: #{block_group_forward.17} parent=27 // pred_check
        %p418 = pneg %p417
      $region34: #{block_group_forward.17} parent=27 // pred_check_branch
        %420 = sbr.rel (%p418) target = $region36
      $region35: #{block_group_forward.17} parent=27 // pred_region
        %v421 = vld [vmem:[#allocation2] sm:$0xff]
        %v422 = vld [vmem:[#allocation2 + $0x8] sm:$0xff]
        %v423 = vld [vmem:[#allocation2 + $0x10] sm:$0xff]
        %v424 = vld [vmem:[#allocation2 + $0x18] sm:$0xff]
        %v425 = vld [vmem:[#allocation2 + $0x20] sm:$0xff]
        %v426 = vld [vmem:[#allocation2 + $0x28] sm:$0xff]
        %v427 = vld [vmem:[#allocation2 + $0x30] sm:$0xff]
        %v428 = vld [vmem:[#allocation2 + $0x38] sm:$0xff]
        %429 = vst [vmem:[%s217] sm:$0xff] %v421
        %430 = vst [vmem:[%s217 + $0x8] sm:$0xff] %v422
        %431 = vst [vmem:[%s217 + $0x10] sm:$0xff] %v423
        %432 = vst [vmem:[%s217 + $0x18] sm:$0xff] %v424
        %433 = vst [vmem:[%s217 + $0x20] sm:$0xff] %v425
        %434 = vst [vmem:[%s217 + $0x28] sm:$0xff] %v426
        %435 = vst [vmem:[%s217 + $0x30] sm:$0xff] %v427
        %436 = vst [vmem:[%s217 + $0x38] sm:$0xff] %v428
      $region36: #{block_group_forward.17} parent=27 // pred_fallthru
        _
      %s437 = smul.u32 8, %s18
      %p438 = scmp.lt.s32.totalorder %s437, 15
      %s439 = scalar_select %p438, %s437, 15
      %p440 = scmp.lt.s32.totalorder %s19, 0
      %s441 = scalar_select %p440, %s19, 0
      %s442 = sadd.s32 %s441, %s439
      %s443 = smul.addr %s442, 8
      %s444 = scalar_lea.vmem %s2, %s443
      // Predicated region
      $region37: #{block_group_forward.17} parent=27 // pred_check
        %p445 = pneg %p108
      $region38: #{block_group_forward.17} parent=27 // pred_check_branch
        %447 = sbr.rel (%p445) target = $region40
      $region39: #{block_group_forward.17} parent=27 // pred_region
        %s448 = smul.u32 8, %s18
      $region40: #{block_group_forward.17} parent=27 // pred_fallthru
        _
    $region28: #{block_group_forward.17} parent=5 // pred_fallthru
      _
    %p449 = scmp.le.s32.totalorder 2, %s8
    // Predicated region
    $region41: #{block_group_forward.17} parent=5 // pred_check
      %p450 = pneg %p449
    $region42: #{block_group_forward.17} parent=5 // pred_check_branch
      %452 = sbr.rel (%p450) target = $region44
    $region43: #{block_group_forward.17} parent=5 // pred_region
      %s453 = ssub.s32 %s8, 2
      // Predicated region
      $region45: #{block_group_forward.17} parent=43 // pred_check
        %p454 = pneg %p114
      $region46: #{block_group_forward.17} parent=43 // pred_check_branch
        %456 = sbr.rel (%p454) target = $region48
      $region47: #{block_group_forward.17} parent=43 // pred_region
        %s457 = smul.u32 8, %s21
        %p458 = scmp.lt.s32.totalorder %s457, 15
        %s459 = scalar_select %p458, %s457, 15
        %p460 = scmp.lt.s32.totalorder %s22, 0
        %s461 = scalar_select %p460, %s22, 0
        %s462 = sadd.s32 %s461, %s459
        %s463 = smul.addr %s462, 8
        %s464 = scalar_lea.vmem %s2, %s463
      $region48: #{block_group_forward.17} parent=43 // pred_fallthru
        _
    $region44: #{block_group_forward.17} parent=5 // pred_fallthru
      _
  $region6: #{block_group_forward.17} parent=0 // loop_footer
    %s12 = sadd.s32 1, %s8
  $region7: #{block_group_forward.17} parent=0 // loop_footer_branch
    %7 = sbr.rel target = $region3
  $region8: #{block_group_forward.17} parent=0 // loop_exit
    _

// kernel: block_group_forward.21
$region0: #{block_group_forward.21}
  #allocation0 [shape = 'u32[]', space=smem, size = 0x4, offset = 0x4, fixed_abs, tag = 'smem constant byte address 0x4 - core index']
  #allocation1 [shape = 'u32[144,128]{1,0:T(1,128)}', space=vmem, size = 0x12000, scoped, tag = 'internal scratch']
  %s0 = inlined_call_operand.vmem [shape: f32[128,128], index: 0, kind: input, shape index: {}]
  %s1 = inlined_call_operand.vmem [shape: f32[1,128], index: 1, kind: input, shape index: {}]
  %s2 = inlined_call_operand.vmem [shape: f32[1,128], index: 2, kind: input, shape index: {}]
  %s3 = inlined_call_operand.vmem [shape: f32[1,128], index: 3, kind: input, shape index: {}]
  %s4 = inlined_call_operand.vmem [shape: f32[1,128], index: 4, kind: input, shape index: {}]
  %s5 = inlined_call_operand.vmem [shape: f32[128,128], index: 5, kind: input, shape index: {}]
  %s6 = inlined_call_operand.vmem [shape: f32[1,128], index: 6, kind: input, shape index: {}]
  %s7 = inlined_call_operand.vmem [shape: f32[1,128], index: 7, kind: input, shape index: {}]
  %s8 = inlined_call_operand.vmem [shape: f32[1,128], index: 8, kind: input, shape index: {}]
  %s9 = inlined_call_operand.vmem [shape: f32[1,128], index: 9, kind: input, shape index: {}]
  %s10 = inlined_call_operand.vmem [shape: f32[128,128], index: 10, kind: output, shape index: {}]
  %s11 = sld [smem:[#allocation0]]
  $region73: #{block_group_forward.21} parent=0
    _
  %s13 = ssub.s32 1, %s11
  %s14 = scalar_select 0, %s13, %s11
  loop: start=0, step=1, limit=4
  $region2: #{block_group_forward.21} parent=0 // loop_pre_header
    _
  $region3: #{block_group_forward.21} parent=0 // loop_header
    %s16 = sphi 0, %s20
    %p17 = scmp.ge.s32.totalorder %s16, 4
    %s26 = sphi 0, %s28
    %s29 = sphi 0, %s26
    %s30 = sphi 0, %s29
    %s46 = sphi 0, %s30
    %s50 = sphi 0, %s50
    %s52 = sphi 0, %s50
    %s53 = sphi 0, %s52
    %s67 = sphi 0, %s53
    %s71 = sphi 0, %s71
    %s73 = sphi 0, %s71
    %s74 = sphi 0, %s73
    %s88 = sphi 0, %s74
    %s92 = sphi 0, %s92
    %s94 = sphi 0, %s92
    %s95 = sphi 0, %s94
    %s109 = sphi 0, %s95
    %s113 = sphi 0, %s113
    %s115 = sphi 0, %s113
    %s116 = sphi 0, %s115
    %s130 = sphi 0, %s116
    %s136 = sphi 0, %s138
    %s139 = sphi 0, %s136
    %s140 = sphi 0, %s139
    %s156 = sphi 0, %s140
    %s160 = sphi 0, %s160
    %s162 = sphi 0, %s160
    %s163 = sphi 0, %s162
    %s177 = sphi 0, %s163
    %s181 = sphi 0, %s181
    %s183 = sphi 0, %s181
    %s184 = sphi 0, %s183
    %s198 = sphi 0, %s184
    %s202 = sphi 0, %s202
    %s204 = sphi 0, %s202
    %s205 = sphi 0, %s204
    %s219 = sphi 0, %s205
    %s223 = sphi 0, %s223
    %s225 = sphi 0, %s223
    %s226 = sphi 0, %s225
    %s240 = sphi 0, %s226
    %s246 = sphi 0, %s248
    %s249 = sphi 0, %s246
    %s250 = sphi 0, %s249
    %s266 = sphi 0, %s250
  $region4: #{block_group_forward.21} parent=0 // loop_header_branch
    %19 = sbr.rel (%p17) target = $region8
  $region5: #{block_group_forward.21} parent=0 // loop_body
    %s21 = ssub.s32 %s16, 1
    %s22 = ssub.s32 %s16, 2
    %s23 = sadd.s32 %s16, 1
    %s24 = ssub.s32 %s16, %s23
    %p25 = scmp.eq.s32.totalorder %s24, 0
    %s27 = sadd.s32 %s26, 1
    %s28 = scalar_select %p25, %s26, %s27
    %p31 = pneg %p25
    %p32 = scmp.eq.s32.totalorder %s16, 1
    %p33 = por %p31, %p32
    %p34 = scmp.ne.s32.totalorder %s26, %s29
    %p35 = scmp.eq.s32.totalorder %s16, 0
    %p36 = por %p34, %p35
    %p37 = scmp.ne.s32.totalorder %s26, %s29
    %p38 = scmp.eq.s32.totalorder %s21, 1
    %p39 = por %p37, %p38
    %p40 = scmp.ne.s32.totalorder %s29, %s30
    %p41 = scmp.eq.s32.totalorder %s21, 0
    %p42 = por %p40, %p41
    %p43 = scmp.ne.s32.totalorder %s29, %s30
    %p44 = scmp.eq.s32.totalorder %s22, 1
    %p45 = por %p43, %p44
    %p47 = scmp.ne.s32.totalorder %s30, %s46
    %p48 = scmp.eq.s32.totalorder %s22, 0
    %p49 = por %p47, %p48
    %s51 = sadd.s32 %s50, 1
    %p54 = scmp.eq.s32.totalorder %s16, 1
    %p55 = scmp.ne.s32.totalorder %s50, %s52
    %p56 = scmp.eq.s32.totalorder %s16, 0
    %p57 = por %p55, %p56
    %p58 = scmp.ne.s32.totalorder %s50, %s52
    %p59 = scmp.eq.s32.totalorder %s21, 1
    %p60 = por %p58, %p59
    %p61 = scmp.ne.s32.totalorder %s52, %s53
    %p62 = scmp.eq.s32.totalorder %s21, 0
    %p63 = por %p61, %p62
    %p64 = scmp.ne.s32.totalorder %s52, %s53
    %p65 = scmp.eq.s32.totalorder %s22, 1
    %p66 = por %p64, %p65
    %p68 = scmp.ne.s32.totalorder %s53, %s67
    %p69 = scmp.eq.s32.totalorder %s22, 0
    %p70 = por %p68, %p69
    %s72 = sadd.s32 %s71, 1
    %p75 = scmp.eq.s32.totalorder %s16, 1
    %p76 = scmp.ne.s32.totalorder %s71, %s73
    %p77 = scmp.eq.s32.totalorder %s16, 0
    %p78 = por %p76, %p77
    %p79 = scmp.ne.s32.totalorder %s71, %s73
    %p80 = scmp.eq.s32.totalorder %s21, 1
    %p81 = por %p79, %p80
    %p82 = scmp.ne.s32.totalorder %s73, %s74
    %p83 = scmp.eq.s32.totalorder %s21, 0
    %p84 = por %p82, %p83
    %p85 = scmp.ne.s32.totalorder %s73, %s74
    %p86 = scmp.eq.s32.totalorder %s22, 1
    %p87 = por %p85, %p86
    %p89 = scmp.ne.s32.totalorder %s74, %s88
    %p90 = scmp.eq.s32.totalorder %s22, 0
    %p91 = por %p89, %p90
    %s93 = sadd.s32 %s92, 1
    %p96 = scmp.eq.s32.totalorder %s16, 1
    %p97 = scmp.ne.s32.totalorder %s92, %s94
    %p98 = scmp.eq.s32.totalorder %s16, 0
    %p99 = por %p97, %p98
    %p100 = scmp.ne.s32.totalorder %s92, %s94
    %p101 = scmp.eq.s32.totalorder %s21, 1
    %p102 = por %p100, %p101
    %p103 = scmp.ne.s32.totalorder %s94, %s95
    %p104 = scmp.eq.s32.totalorder %s21, 0
    %p105 = por %p103, %p104
    %p106 = scmp.ne.s32.totalorder %s94, %s95
    %p107 = scmp.eq.s32.totalorder %s22, 1
    %p108 = por %p106, %p107
    %p110 = scmp.ne.s32.totalorder %s95, %s109
    %p111 = scmp.eq.s32.totalorder %s22, 0
    %p112 = por %p110, %p111
    %s114 = sadd.s32 %s113, 1
    %p117 = scmp.eq.s32.totalorder %s16, 1
    %p118 = scmp.ne.s32.totalorder %s113, %s115
    %p119 = scmp.eq.s32.totalorder %s16, 0
    %p120 = por %p118, %p119
    %p121 = scmp.ne.s32.totalorder %s113, %s115
    %p122 = scmp.eq.s32.totalorder %s21, 1
    %p123 = por %p121, %p122
    %p124 = scmp.ne.s32.totalorder %s115, %s116
    %p125 = scmp.eq.s32.totalorder %s21, 0
    %p126 = por %p124, %p125
    %p127 = scmp.ne.s32.totalorder %s115, %s116
    %p128 = scmp.eq.s32.totalorder %s22, 1
    %p129 = por %p127, %p128
    %p131 = scmp.ne.s32.totalorder %s116, %s130
    %p132 = scmp.eq.s32.totalorder %s22, 0
    %p133 = por %p131, %p132
    %s134 = ssub.s32 %s16, %s23
    %p135 = scmp.eq.s32.totalorder %s134, 0
    %s137 = sadd.s32 %s136, 1
    %s138 = scalar_select %p135, %s136, %s137
    %p141 = pneg %p135
    %p142 = scmp.eq.s32.totalorder %s16, 1
    %p143 = por %p141, %p142
    %p144 = scmp.ne.s32.totalorder %s136, %s139
    %p145 = scmp.eq.s32.totalorder %s16, 0
    %p146 = por %p144, %p145
    %p147 = scmp.ne.s32.totalorder %s136, %s139
    %p148 = scmp.eq.s32.totalorder %s21, 1
    %p149 = por %p147, %p148
    %p150 = scmp.ne.s32.totalorder %s139, %s140
    %p151 = scmp.eq.s32.totalorder %s21, 0
    %p152 = por %p150, %p151
    %p153 = scmp.ne.s32.totalorder %s139, %s140
    %p154 = scmp.eq.s32.totalorder %s22, 1
    %p155 = por %p153, %p154
    %p157 = scmp.ne.s32.totalorder %s140, %s156
    %p158 = scmp.eq.s32.totalorder %s22, 0
    %p159 = por %p157, %p158
    %s161 = sadd.s32 %s160, 1
    %p164 = scmp.eq.s32.totalorder %s16, 1
    %p165 = scmp.ne.s32.totalorder %s160, %s162
    %p166 = scmp.eq.s32.totalorder %s16, 0
    %p167 = por %p165, %p166
    %p168 = scmp.ne.s32.totalorder %s160, %s162
    %p169 = scmp.eq.s32.totalorder %s21, 1
    %p170 = por %p168, %p169
    %p171 = scmp.ne.s32.totalorder %s162, %s163
    %p172 = scmp.eq.s32.totalorder %s21, 0
    %p173 = por %p171, %p172
    %p174 = scmp.ne.s32.totalorder %s162, %s163
    %p175 = scmp.eq.s32.totalorder %s22, 1
    %p176 = por %p174, %p175
    %p178 = scmp.ne.s32.totalorder %s163, %s177
    %p179 = scmp.eq.s32.totalorder %s22, 0
    %p180 = por %p178, %p179
    %s182 = sadd.s32 %s181, 1
    %p185 = scmp.eq.s32.totalorder %s16, 1
    %p186 = scmp.ne.s32.totalorder %s181, %s183
    %p187 = scmp.eq.s32.totalorder %s16, 0
    %p188 = por %p186, %p187
    %p189 = scmp.ne.s32.totalorder %s181, %s183
    %p190 = scmp.eq.s32.totalorder %s21, 1
    %p191 = por %p189, %p190
    %p192 = scmp.ne.s32.totalorder %s183, %s184
    %p193 = scmp.eq.s32.totalorder %s21, 0
    %p194 = por %p192, %p193
    %p195 = scmp.ne.s32.totalorder %s183, %s184
    %p196 = scmp.eq.s32.totalorder %s22, 1
    %p197 = por %p195, %p196
    %p199 = scmp.ne.s32.totalorder %s184, %s198
    %p200 = scmp.eq.s32.totalorder %s22, 0
    %p201 = por %p199, %p200
    %s203 = sadd.s32 %s202, 1
    %p206 = scmp.eq.s32.totalorder %s16, 1
    %p207 = scmp.ne.s32.totalorder %s202, %s204
    %p208 = scmp.eq.s32.totalorder %s16, 0
    %p209 = por %p207, %p208
    %p210 = scmp.ne.s32.totalorder %s202, %s204
    %p211 = scmp.eq.s32.totalorder %s21, 1
    %p212 = por %p210, %p211
    %p213 = scmp.ne.s32.totalorder %s204, %s205
    %p214 = scmp.eq.s32.totalorder %s21, 0
    %p215 = por %p213, %p214
    %p216 = scmp.ne.s32.totalorder %s204, %s205
    %p217 = scmp.eq.s32.totalorder %s22, 1
    %p218 = por %p216, %p217
    %p220 = scmp.ne.s32.totalorder %s205, %s219
    %p221 = scmp.eq.s32.totalorder %s22, 0
    %p222 = por %p220, %p221
    %s224 = sadd.s32 %s223, 1
    %p227 = scmp.eq.s32.totalorder %s16, 1
    %p228 = scmp.ne.s32.totalorder %s223, %s225
    %p229 = scmp.eq.s32.totalorder %s16, 0
    %p230 = por %p228, %p229
    %p231 = scmp.ne.s32.totalorder %s223, %s225
    %p232 = scmp.eq.s32.totalorder %s21, 1
    %p233 = por %p231, %p232
    %p234 = scmp.ne.s32.totalorder %s225, %s226
    %p235 = scmp.eq.s32.totalorder %s21, 0
    %p236 = por %p234, %p235
    %p237 = scmp.ne.s32.totalorder %s225, %s226
    %p238 = scmp.eq.s32.totalorder %s22, 1
    %p239 = por %p237, %p238
    %p241 = scmp.ne.s32.totalorder %s226, %s240
    %p242 = scmp.eq.s32.totalorder %s22, 0
    %p243 = por %p241, %p242
    %s244 = ssub.s32 %s16, %s23
    %p245 = scmp.eq.s32.totalorder %s244, 0
    %s247 = sadd.s32 %s246, 1
    %s248 = scalar_select %p245, %s246, %s247
    %p251 = pneg %p245
    %p252 = scmp.eq.s32.totalorder %s16, 1
    %p253 = por %p251, %p252
    %p254 = scmp.ne.s32.totalorder %s246, %s249
    %p255 = scmp.eq.s32.totalorder %s16, 0
    %p256 = por %p254, %p255
    %p257 = scmp.ne.s32.totalorder %s246, %s249
    %p258 = scmp.eq.s32.totalorder %s21, 1
    %p259 = por %p257, %p258
    %p260 = scmp.ne.s32.totalorder %s249, %s250
    %p261 = scmp.eq.s32.totalorder %s21, 0
    %p262 = por %p260, %p261
    %p263 = scmp.ne.s32.totalorder %s249, %s250
    %p264 = scmp.eq.s32.totalorder %s22, 1
    %p265 = por %p263, %p264
    %p267 = scmp.ne.s32.totalorder %s250, %s266
    %p268 = scmp.eq.s32.totalorder %s22, 0
    %p269 = por %p267, %p268
    %p270 = scmp.le.s32.totalorder 1, %s16
    %p271 = scmp.lt.s32.totalorder %s16, 3
    %p272 = pnand %p270, %p271
    %p273 = pneg %p272
    // Predicated region
    $region9: #{block_group_forward.21} parent=5 // pred_check
      _
    $region10: #{block_group_forward.21} parent=5 // pred_check_branch
      %275 = sbr.rel (%p272) target = $region12
    $region11: #{block_group_forward.21} parent=5 // pred_region
      %s276 = ssub.s32 %s16, 1
      // Predicated region
      $region13: #{block_group_forward.21} parent=11 // pred_check
        %p277 = pneg %p63
      $region14: #{block_group_forward.21} parent=11 // pred_check_branch
        %279 = sbr.rel (%p277) target = $region16
      $region15: #{block_group_forward.21} parent=11 // pred_region
        _
      $region16: #{block_group_forward.21} parent=11 // pred_fallthru
        _
      // Predicated region
      $region17: #{block_group_forward.21} parent=11 // pred_check
        %p280 = pneg %p84
      $region18: #{block_group_forward.21} parent=11 // pred_check_branch
        %282 = sbr.rel (%p280) target = $region20
      $region19: #{block_group_forward.21} parent=11 // pred_region
        _
      $region20: #{block_group_forward.21} parent=11 // pred_fallthru
        _
      // Predicated region
      $region21: #{block_group_forward.21} parent=11 // pred_check
        %p283 = pneg %p105
      $region22: #{block_group_forward.21} parent=11 // pred_check_branch
        %285 = sbr.rel (%p283) target = $region24
      $region23: #{block_group_forward.21} parent=11 // pred_region
        _
      $region24: #{block_group_forward.21} parent=11 // pred_fallthru
        _
      // Predicated region
      $region25: #{block_group_forward.21} parent=11 // pred_check
        %p286 = pneg %p126
      $region26: #{block_group_forward.21} parent=11 // pred_check_branch
        %288 = sbr.rel (%p286) target = $region28
      $region27: #{block_group_forward.21} parent=11 // pred_region
        _
      $region28: #{block_group_forward.21} parent=11 // pred_fallthru
        _
      // Predicated region
      $region29: #{block_group_forward.21} parent=11 // pred_check
        %p289 = pneg %p173
      $region30: #{block_group_forward.21} parent=11 // pred_check_branch
        %291 = sbr.rel (%p289) target = $region32
      $region31: #{block_group_forward.21} parent=11 // pred_region
        _
      $region32: #{block_group_forward.21} parent=11 // pred_fallthru
        _
      // Predicated region
      $region33: #{block_group_forward.21} parent=11 // pred_check
        %p292 = pneg %p194
      $region34: #{block_group_forward.21} parent=11 // pred_check_branch
        %294 = sbr.rel (%p292) target = $region36
      $region35: #{block_group_forward.21} parent=11 // pred_region
        _
      $region36: #{block_group_forward.21} parent=11 // pred_fallthru
        _
      // Predicated region
      $region37: #{block_group_forward.21} parent=11 // pred_check
        %p295 = pneg %p215
      $region38: #{block_group_forward.21} parent=11 // pred_check_branch
        %297 = sbr.rel (%p295) target = $region40
      $region39: #{block_group_forward.21} parent=11 // pred_region
        _
      $region40: #{block_group_forward.21} parent=11 // pred_fallthru
        _
      // Predicated region
      $region41: #{block_group_forward.21} parent=11 // pred_check
        %p298 = pneg %p236
      $region42: #{block_group_forward.21} parent=11 // pred_check_branch
        %300 = sbr.rel (%p298) target = $region44
      $region43: #{block_group_forward.21} parent=11 // pred_region
        _
      $region44: #{block_group_forward.21} parent=11 // pred_fallthru
        _
    $region12: #{block_group_forward.21} parent=5 // pred_fallthru
      _
    %p301 = scmp.lt.s32.totalorder %s16, 2
    // Predicated region
    $region45: #{block_group_forward.21} parent=5 // pred_check
      %p302 = pneg %p301
    $region46: #{block_group_forward.21} parent=5 // pred_check_branch
      %304 = sbr.rel (%p302) target = $region48
    $region47: #{block_group_forward.21} parent=5 // pred_region
      // Predicated region
      $region49: #{block_group_forward.21} parent=47 // pred_check
        %p305 = pneg %p36
      $region50: #{block_group_forward.21} parent=47 // pred_check_branch
        %307 = sbr.rel (%p305) target = $region52
      $region51: #{block_group_forward.21} parent=47 // pred_region
        %s308 = smul.u32 8, %s16
        %p309 = scmp.lt.s32.totalorder %s308, 15
        %s310 = scalar_select %p309, %s308, 15
        %s311 = smul.addr %s310, 8
        %s312 = scalar_lea.vmem %s0, %s311
        %s313 = smul.u32 8, %s16
      $region52: #{block_group_forward.21} parent=47 // pred_fallthru
        _
      // Predicated region
      $region53: #{block_group_forward.21} parent=47 // pred_check
        %p314 = pneg %p146
      $region54: #{block_group_forward.21} parent=47 // pred_check_branch
        %316 = sbr.rel (%p314) target = $region56
      $region55: #{block_group_forward.21} parent=47 // pred_region
        %s317 = smul.u32 8, %s16
        %p318 = scmp.lt.s32.totalorder %s317, 15
        %s319 = scalar_select %p318, %s317, 15
        %s320 = smul.addr %s319, 8
        %s321 = scalar_lea.vmem %s5, %s320
        %s322 = smul.u32 8, %s16
      $region56: #{block_group_forward.21} parent=47 // pred_fallthru
        _
    $region48: #{block_group_forward.21} parent=5 // pred_fallthru
      _
    %p323 = scmp.le.s32.totalorder 1, %s16
    %p324 = scmp.lt.s32.totalorder %s16, 3
    %p325 = pnand %p323, %p324
    %p326 = pneg %p325
    // Predicated region
    $region57: #{block_group_forward.21} parent=5 // pred_check
      _
    $region58: #{block_group_forward.21} parent=5 // pred_check_branch
      %328 = sbr.rel (%p325) target = $region60
    $region59: #{block_group_forward.21} parent=5 // pred_region
      %s329 = ssub.s32 %s16, 1
      %s330 = smul.u32 8, %s21
      %p331 = scmp.lt.s32.totalorder %s330, 15
      %s332 = scalar_select %p331, %s330, 15
      %s333 = smul.addr %s332, 8
      %s334 = scalar_lea.vmem %s0, %s333
      %p335 = pneg %p42
      %p336 = pneg %p39
      %p337 = pneg %p63
      %p338 = pneg %p60
      %p339 = pneg %p84
      %p340 = pneg %p81
      %p341 = pneg %p105
      %p342 = pneg %p102
      %p343 = pneg %p126
      %p344 = pneg %p123
      %s345 = smul.u32 8, %s21
      %p346 = scmp.lt.s32.totalorder %s345, 15
      %s347 = scalar_select %p346, %s345, 15
      %s348 = smul.addr %s347, 8
      %s349 = scalar_lea.vmem %s5, %s348
      %p350 = pneg %p152
      %p351 = pneg %p149
      %p352 = pneg %p173
      %p353 = pneg %p170
      %p354 = pneg %p194
      %p355 = pneg %p191
      %p356 = pneg %p215
      %p357 = pneg %p212
      %p358 = pneg %p236
      %p359 = pneg %p233
      %p360 = pneg %p262
      %p361 = pneg %p259
      %s362 = smul.u32 8, %s21
      %p363 = scmp.lt.s32.totalorder %s362, 15
      %s364 = scalar_select %p363, %s362, 15
      %s365 = smul.addr %s364, 8
      %s366 = scalar_lea.vmem %s10, %s365
      %s367 = smul.u32 8, %s21
      %p368 = scmp.lt.s32.totalorder %s367, 15
      %s369 = scalar_select %p368, %s367, 15
      %s370 = smul.addr %s369, 8
      %s371 = scalar_lea.vmem %s0, %s370
      %s372 = smul.u32 8, %s21
      %s373 = smul.u32 8, %s21
      %p374 = scmp.lt.s32.totalorder %s373, 15
      %s375 = scalar_select %p374, %s373, 15
      %s376 = smul.addr %s375, 8
      %s377 = scalar_lea.vmem %s5, %s376
      %s378 = smul.u32 8, %s21
      %s379 = smul.u32 8, %s21
      %p380 = scmp.lt.s32.totalorder %s379, 15
      %s381 = scalar_select %p380, %s379, 15
      %s382 = smul.addr %s381, 8
      %s383 = scalar_lea.vmem %s10, %s382
      %s384 = smul.u32 8, %s21
      %v385 = vld [vmem:[%s371] sm:$0xff]
      %v386 = vld [vmem:[%s371 + $0x8] sm:$0xff]
      %v387 = vld [vmem:[%s371 + $0x10] sm:$0xff]
      %v388 = vld [vmem:[%s371 + $0x18] sm:$0xff]
      %v389 = vld [vmem:[%s371 + $0x20] sm:$0xff]
      %v390 = vld [vmem:[%s371 + $0x28] sm:$0xff]
      %v391 = vld [vmem:[%s371 + $0x30] sm:$0xff]
      %v392 = vld [vmem:[%s371 + $0x38] sm:$0xff]
      %v393 = vld [vmem:[%s1] sm:$0x1]
      %v394 = vld [vmem:[%s2] sm:$0x1]
      %v395 = vld [vmem:[%s3] sm:$0x1]
      %v396 = vld [vmem:[%s4] sm:$0x1]
      %v397 = vmul.f32 %v393, 0.0078125
      %v398 = vmul.f32 %v397, 128.0
      %v399 = vmul.f32 %v398, %v397
      %v400 = vsub.f32 %v394, %v399
      %v401 = vmul.f32 %v400, 0.007874016
      %v402 = vmax.f32 %v401, 0.0
      %v404 = vlaneseq
      %v405 = vshrl.u32 %v404, 7
      %v406 = vsub.s32 0, %v405
      %v407 = vrot.slane %v397, %v406
      %v409 = vsub.f32 %v385, %v407
      %v410 = vsub.f32 %v386, %v407
      %v411 = vsub.f32 %v387, %v407
      %v412 = vsub.f32 %v388, %v407
      %v413 = vsub.f32 %v389, %v407
      %v414 = vsub.f32 %v390, %v407
      %v415 = vsub.f32 %v391, %v407
      %v416 = vsub.f32 %v392, %v407
      %v417 = vadd.f32 %v402, 1e-05
      %v418 = vrsqrt.pop %v417
      %v420 = vlaneseq
      %v421 = vshrl.u32 %v420, 7
      %v422 = vsub.s32 0, %v421
      %v423 = vrot.slane %v418, %v422
      %v425 = vmul.f32 %v409, %v423
      %v426 = vmul.f32 %v410, %v423
      %v427 = vmul.f32 %v411, %v423
      %v428 = vmul.f32 %v412, %v423
      %v429 = vmul.f32 %v413, %v423
      %v430 = vmul.f32 %v414, %v423
      %v431 = vmul.f32 %v415, %v423
      %v432 = vmul.f32 %v416, %v423
      %v434 = vlaneseq
      %v435 = vshrl.u32 %v434, 7
      %v436 = vsub.s32 0, %v435
      %v437 = vrot.slane %v395, %v436
      %v439 = vmul.f32 %v425, %v437
      %v440 = vmul.f32 %v426, %v437
      %v441 = vmul.f32 %v427, %v437
      %v442 = vmul.f32 %v428, %v437
      %v443 = vmul.f32 %v429, %v437
      %v444 = vmul.f32 %v430, %v437
      %v445 = vmul.f32 %v431, %v437
      %v446 = vmul.f32 %v432, %v437
      %v448 = vlaneseq
      %v449 = vshrl.u32 %v448, 7
      %v450 = vsub.s32 0, %v449
      %v451 = vrot.slane %v396, %v450
      %v453 = vadd.f32 %v439, %v451
      %v454 = vadd.f32 %v440, %v451
      %v455 = vadd.f32 %v441, %v451
      %v456 = vadd.f32 %v442, %v451
      %v457 = vadd.f32 %v443, %v451
      %v458 = vadd.f32 %v444, %v451
      %v459 = vadd.f32 %v445, %v451
      %v460 = vadd.f32 %v446, %v451
      %v461 = vld [vmem:[%s377] sm:$0xff]
      %v462 = vld [vmem:[%s377 + $0x8] sm:$0xff]
      %v463 = vld [vmem:[%s377 + $0x10] sm:$0xff]
      %v464 = vld [vmem:[%s377 + $0x18] sm:$0xff]
      %v465 = vld [vmem:[%s377 + $0x20] sm:$0xff]
      %v466 = vld [vmem:[%s377 + $0x28] sm:$0xff]
      %v467 = vld [vmem:[%s377 + $0x30] sm:$0xff]
      %v468 = vld [vmem:[%s377 + $0x38] sm:$0xff]
      %v469 = vld [vmem:[%s6] sm:$0x1]
      %v470 = vld [vmem:[%s7] sm:$0x1]
      %v471 = vld [vmem:[%s8] sm:$0x1]
      %v472 = vld [vmem:[%s9] sm:$0x1]
      %v473 = vmul.f32 %v469, 0.0078125
      %v474 = vmul.f32 %v473, 128.0
      %v475 = vmul.f32 %v474, %v473
      %v476 = vsub.f32 %v470, %v475
      %v477 = vmul.f32 %v476, 0.007874016
      %v478 = vmax.f32 %v477, 0.0
      %v480 = vlaneseq
      %v481 = vshrl.u32 %v480, 7
      %v482 = vsub.s32 0, %v481
      %v483 = vrot.slane %v473, %v482
      %v485 = vsub.f32 %v461, %v483
      %v486 = vsub.f32 %v462, %v483
      %v487 = vsub.f32 %v463, %v483
      %v488 = vsub.f32 %v464, %v483
      %v489 = vsub.f32 %v465, %v483
      %v490 = vsub.f32 %v466, %v483
      %v491 = vsub.f32 %v467, %v483
      %v492 = vsub.f32 %v468, %v483
      %v493 = vadd.f32 %v478, 1e-05
      %v494 = vrsqrt.pop %v493
      %v496 = vlaneseq
      %v497 = vshrl.u32 %v496, 7
      %v498 = vsub.s32 0, %v497
      %v499 = vrot.slane %v494, %v498
      %v501 = vmul.f32 %v485, %v499
      %v502 = vmul.f32 %v486, %v499
      %v503 = vmul.f32 %v487, %v499
      %v504 = vmul.f32 %v488, %v499
      %v505 = vmul.f32 %v489, %v499
      %v506 = vmul.f32 %v490, %v499
      %v507 = vmul.f32 %v491, %v499
      %v508 = vmul.f32 %v492, %v499
      %v510 = vlaneseq
      %v511 = vshrl.u32 %v510, 7
      %v512 = vsub.s32 0, %v511
      %v513 = vrot.slane %v471, %v512
      %v515 = vmul.f32 %v501, %v513
      %v516 = vmul.f32 %v502, %v513
      %v517 = vmul.f32 %v503, %v513
      %v518 = vmul.f32 %v504, %v513
      %v519 = vmul.f32 %v505, %v513
      %v520 = vmul.f32 %v506, %v513
      %v521 = vmul.f32 %v507, %v513
      %v522 = vmul.f32 %v508, %v513
      %v524 = vlaneseq
      %v525 = vshrl.u32 %v524, 7
      %v526 = vsub.s32 0, %v525
      %v527 = vrot.slane %v472, %v526
      %v529 = vadd.f32 %v515, %v527
      %v530 = vadd.f32 %v516, %v527
      %v531 = vadd.f32 %v517, %v527
      %v532 = vadd.f32 %v518, %v527
      %v533 = vadd.f32 %v519, %v527
      %v534 = vadd.f32 %v520, %v527
      %v535 = vadd.f32 %v521, %v527
      %v536 = vadd.f32 %v522, %v527
      %v537 = vadd.f32 %v453, %v529
      %v538 = vadd.f32 %v454, %v530
      %v539 = vadd.f32 %v455, %v531
      %v540 = vadd.f32 %v456, %v532
      %v541 = vadd.f32 %v457, %v533
      %v542 = vadd.f32 %v458, %v534
      %v543 = vadd.f32 %v459, %v535
      %v544 = vadd.f32 %v460, %v536
      %v545 = vmax.f32 %v537, 0.0
      %v546 = vmax.f32 %v538, 0.0
      %v547 = vmax.f32 %v539, 0.0
      %v548 = vmax.f32 %v540, 0.0
      %v549 = vmax.f32 %v541, 0.0
      %v550 = vmax.f32 %v542, 0.0
      %v551 = vmax.f32 %v543, 0.0
      %v552 = vmax.f32 %v544, 0.0
      %553 = vst [vmem:[%s383] sm:$0xff] %v545
      %554 = vst [vmem:[%s383 + $0x8] sm:$0xff] %v546
      %555 = vst [vmem:[%s383 + $0x10] sm:$0xff] %v547
      %556 = vst [vmem:[%s383 + $0x18] sm:$0xff] %v548
      %557 = vst [vmem:[%s383 + $0x20] sm:$0xff] %v549
      %558 = vst [vmem:[%s383 + $0x28] sm:$0xff] %v550
      %559 = vst [vmem:[%s383 + $0x30] sm:$0xff] %v551
      %560 = vst [vmem:[%s383 + $0x38] sm:$0xff] %v552
      %s561 = smul.u32 8, %s21
      %p562 = scmp.lt.s32.totalorder %s561, 15
      %s563 = scalar_select %p562, %s561, 15
      %s564 = smul.addr %s563, 8
      %s565 = scalar_lea.vmem %s10, %s564
      // Predicated region
      $region61: #{block_group_forward.21} parent=59 // pred_check
        %p566 = pneg %p259
      $region62: #{block_group_forward.21} parent=59 // pred_check_branch
        %568 = sbr.rel (%p566) target = $region64
      $region63: #{block_group_forward.21} parent=59 // pred_region
        %s569 = smul.u32 8, %s21
      $region64: #{block_group_forward.21} parent=59 // pred_fallthru
        _
    $region60: #{block_group_forward.21} parent=5 // pred_fallthru
      _
    %p570 = scmp.le.s32.totalorder 2, %s16
    // Predicated region
    $region65: #{block_group_forward.21} parent=5 // pred_check
      %p571 = pneg %p570
    $region66: #{block_group_forward.21} parent=5 // pred_check_branch
      %573 = sbr.rel (%p571) target = $region68
    $region67: #{block_group_forward.21} parent=5 // pred_region
      %s574 = ssub.s32 %s16, 2
      // Predicated region
      $region69: #{block_group_forward.21} parent=67 // pred_check
        %p575 = pneg %p265
      $region70: #{block_group_forward.21} parent=67 // pred_check_branch
        %577 = sbr.rel (%p575) target = $region72
      $region71: #{block_group_forward.21} parent=67 // pred_region
        %s578 = smul.u32 8, %s22
        %p579 = scmp.lt.s32.totalorder %s578, 15
        %s580 = scalar_select %p579, %s578, 15
        %s581 = smul.addr %s580, 8
        %s582 = scalar_lea.vmem %s10, %s581
      $region72: #{block_group_forward.21} parent=67 // pred_fallthru
        _
    $region68: #{block_group_forward.21} parent=5 // pred_fallthru
      _
  $region6: #{block_group_forward.21} parent=0 // loop_footer
    %s20 = sadd.s32 1, %s16
  $region7: #{block_group_forward.21} parent=0 // loop_footer_branch
    %15 = sbr.rel target = $region3
  $region8: #{block_group_forward.21} parent=0 // loop_exit
    _

</llo_original>
